<compile_context>
chip_gen: v5e
topology: v5e:2x2
jax: 0.10.0
libtpu: 0.0.40
codegen_flags: <defaults>
</compile_context>

<pallas_src>
import functools
import math

import jax
import jax.numpy as jnp
from jax.experimental import pallas as pl
from jax.experimental.pallas import tpu as pltpu


# Row indices into the per-layer vector bank V (each row is one bias / LN vector, zero-padded to 4C).
(_CONV_B, _LN_A_G, _LN_A_B, _INPJ_B, _OUTP_B, _LIN1_B, _LIN2_B,
 _LN1_G, _LN1_B, _LN2_G, _LN2_B, _DECV_B, _LN_B_G, _LN_B_B) = range(14)


# ----------------------------- single fused whole-network kernel -----------------------------

def _fused_decoder_kernel(x_ref, *refs, Ks, nhead):
    *wrefs, pred_ref, o_ref = refs
    f32 = jnp.float32
    bf16 = jnp.bfloat16

    def mm(a, b):
        # MXU matmul: bf16 inputs (single-pass), f32 accumulation.
        return jnp.dot(a.astype(bf16), b.astype(bf16), preferred_element_type=f32)

    def ln(v, g, b):
        mu = jnp.mean(v, axis=-1, keepdims=True)
        vc = v - mu
        var = jnp.mean(vc * vc, axis=-1, keepdims=True)
        return vc * jax.lax.rsqrt(var + 1e-5) * g + b

    x = x_ref[0].astype(f32)                     # (T, C) — this grid step's batch element
    T, C = x.shape
    dh = C // nhead

    for li, K in enumerate(Ks):                  # static Python loop over decoder layers
        Wa = wrefs[3 * li]                       # (C, 8C) bf16: [in_proj.T | out_proj.T | lin1.T]
        Wb = wrefs[3 * li + 1]                   # (2KC+4C, C) bf16: [conv_unf | lin2.T | deconv_unf]
        V = wrefs[3 * li + 2]                    # (14, 4C) f32 bias / LN bank
        Tc = T - K + 1
        res = x

        # ---- Conv1d (valid, stride 1) as ONE unfolded matmul, then ReLU + LayerNorm ----
        if K == 1:
            xu = x
        else:
            xu = jnp.concatenate([x[k:k + Tc, :] for k in range(K)], axis=1)        # (Tc, K*C)
        y = mm(xu, Wb[0:K * C, :]) + V[_CONV_B:_CONV_B + 1, 0:C]
        h = ln(jnp.maximum(y, 0.0), V[_LN_A_G:_LN_A_G + 1, 0:C], V[_LN_A_B:_LN_A_B + 1, 0:C])

        # ---- TransformerEncoderLayer (post-norm, ReLU, eval mode) ----
        # 1/sqrt(dh) is pre-folded into the Q columns of Wa and the Q part of in_proj_b.
        qkv = mm(h, Wa[:, 0:3 * C]) + V[_INPJ_B:_INPJ_B + 1, 0:3 * C]                # (Tc, 3C)
        attn = jnp.zeros((Tc, C), f32)
        for hd in range(nhead):                  # all heads inside the single kernel body
            q = qkv[:, hd * dh:(hd + 1) * dh]
            k_ = qkv[:, C + hd * dh:C + (hd + 1) * dh]
            v_ = qkv[:, 2 * C + hd * dh:2 * C + (hd + 1) * dh]
            s = jax.lax.dot_general(q.astype(bf16), k_.astype(bf16),
                                    (((1,), (1,)), ((), ())),
                                    preferred_element_type=f32)                      # (Tc, Tc)
            s = s - jnp.max(s, axis=-1, keepdims=True)
            p = jnp.exp(s)
            p = p / jnp.sum(p, axis=-1, keepdims=True)                               # exact softmax
            o_h = mm(p, v_)                                                          # (Tc, dh)
            # out_proj folded per head: concat_h(o_h) @ Wo == sum_h o_h @ Wo[h*dh:(h+1)*dh, :]
            attn = attn + mm(o_h, Wa[hd * dh:(hd + 1) * dh, 3 * C:4 * C])
        attn = attn + V[_OUTP_B:_OUTP_B + 1, 0:C]
        h = ln(h + attn, V[_LN1_G:_LN1_G + 1, 0:C], V[_LN1_B:_LN1_B + 1, 0:C])       # residual + norm1

        ff = jnp.maximum(mm(h, Wa[:, 4 * C:8 * C]) + V[_LIN1_B:_LIN1_B + 1, 0:4 * C], 0.0)
        ff = mm(ff, Wb[K * C:K * C + 4 * C, :]) + V[_LIN2_B:_LIN2_B + 1, 0:C]
        h = ln(h + ff, V[_LN2_G:_LN2_G + 1, 0:C], V[_LN2_B:_LN2_B + 1, 0:C])         # residual + norm2

        # ---- ConvTranspose1d (stride 1, pad 0) in gather form: ONE unfolded matmul ----
        if K == 1:
            hu = h
        else:
            zpad = jnp.zeros((K - 1, C), f32)
            hp = jnp.concatenate([zpad, h, zpad], axis=0)                            # (T + K - 1, C)
            hu = jnp.concatenate([hp[j:j + T, :] for j in range(K)], axis=1)         # (T, K*C)
        y = mm(hu, Wb[K * C + 4 * C:2 * K * C + 4 * C, :]) + V[_DECV_B:_DECV_B + 1, 0:C]
        y = ln(jnp.maximum(y, 0.0), V[_LN_B_G:_LN_B_G + 1, 0:C], V[_LN_B_B:_LN_B_B + 1, 0:C])

        x = res + y                                                                  # outer residual

    # ---- final Linear, lane-dense (zero-padded to n_pad >= 128 columns) ----
    out = mm(x, pred_ref[0:C, :]) + pred_ref[C:C + 1, :]
    o_ref[0] = out


def transformer_decoder_forward(x_nct, prep, *, nhead, n_classes):
    # (N, C, T) -> (N, T, C); per-batch-element processing == PyTorch (T, N, C) layout semantics.
    x = jnp.transpose(x_nct, (0, 2, 1)).astype(jnp.float32)
    N, T, C = x.shape
    n_pad = prep["pred"].shape[1]

    Ks = []
    operands = []
    for (Wa, Wb, V) in prep["layers"]:
        Ks.append((Wb.shape[0] - 4 * C) // (2 * C))
        operands += [Wa, Wb, V]
    operands.append(prep["pred"])

    def const_spec(a):
        return pl.BlockSpec(a.shape, lambda n: (0,) * a.ndim)

    in_specs = [pl.BlockSpec((1, T, C), lambda n: (n, 0, 0))] + [const_spec(a) for a in operands]

    out = pl.pallas_call(
        functools.partial(_fused_decoder_kernel, Ks=tuple(Ks), nhead=nhead),
        out_shape=jax.ShapeDtypeStruct((N, T, n_pad), jnp.float32),
        grid=(N,),
        in_specs=in_specs,
        out_specs=pl.BlockSpec((1, T, n_pad), lambda n: (n, 0, 0)),
        compiler_params=pltpu.CompilerParams(dimension_semantics=("parallel",)),
    )(x, *operands)
    return out[:, :, :n_classes]                 # (N, T, n_classes)


# ----------------------------- params -----------------------------

def init_params(key, input_size, n_classes, num_layers, nhead):
    """PyTorch-layout parameters (used directly by the pure-JAX reference)."""
    C = input_size
    keys = iter(jax.random.split(key, 1024))

    def w(shape, scale=0.1):
        return scale * jax.random.normal(next(keys), shape, jnp.float32)

    layers = []
    for i in range(num_layers):
        K = (num_layers - i) * 2 - 1
        enc = dict(
            in_proj_w=w((3 * C, C)), in_proj_b=w((3 * C,)),
            out_proj_w=w((C, C)), out_proj_b=w((C,)),
            lin1_w=w((4 * C, C)), lin1_b=w((4 * C,)),
            lin2_w=w((C, 4 * C)), lin2_b=w((C,)),
            ln1_g=jnp.ones((C,), jnp.float32), ln1_b=jnp.zeros((C,), jnp.float32),
            ln2_g=jnp.ones((C,), jnp.float32), ln2_b=jnp.zeros((C,), jnp.float32),
        )
        layers.append(dict(
            conv_w=w((C, C, K)), conv_b=w((C,)),          # Conv1d: (Cout, Cin, K)
            deconv_w=w((C, C, K)), deconv_b=w((C,)),      # ConvTranspose1d: (Cin, Cout, K)
            ln_a_g=jnp.ones((C,), jnp.float32), ln_a_b=jnp.zeros((C,), jnp.float32),
            ln_b_g=jnp.ones((C,), jnp.float32), ln_b_b=jnp.zeros((C,), jnp.float32),
            enc=enc,
        ))
    return dict(layers=layers, pred_w=w((n_classes, C)), pred_b=w((n_classes,)))


def prepare_params(params, nhead):
    """Pack / pre-transpose every weight ONCE into the kernel-ready layout (host side, outside jit)."""
    layers = []
    for lp in params["layers"]:
        enc = lp["enc"]
        C = lp["conv_b"].shape[0]
        K = lp["conv_w"].shape[2]
        dh = C // nhead
        scale = 1.0 / math.sqrt(dh)

        # Wa: (C, 8C) = [in_proj_w.T (Q cols pre-scaled) | out_proj_w.T | lin1_w.T], bf16.
        in_w = enc["in_proj_w"].T                                       # (C, 3C)
        in_w = jnp.concatenate([in_w[:, :C] * scale, in_w[:, C:]], axis=1)
        Wa = jnp.concatenate([in_w, enc["out_proj_w"].T, enc["lin1_w"].T],
                             axis=1).astype(jnp.bfloat16)

        # Wb: (2KC+4C, C) = [conv taps unfolded | lin2_w.T | deconv taps unfolded+flipped], bf16.
        conv_u = jnp.concatenate([lp["conv_w"][:, :, k].T for k in range(K)], axis=0)
        dec_u = jnp.concatenate([lp["deconv_w"][:, :, K - 1 - j] for j in range(K)], axis=0)
        Wb = jnp.concatenate([conv_u, enc["lin2_w"].T, dec_u], axis=0).astype(jnp.bfloat16)

        # V: (14, 4C) f32 bias / LayerNorm bank (Q part of in_proj_b pre-scaled).
        inb = jnp.concatenate([enc["in_proj_b"][:C] * scale, enc["in_proj_b"][C:]])

        def row(v):
            r = jnp.zeros((4 * C,), jnp.float32)
            return r.at[:v.shape[0]].set(v.astype(jnp.float32))

        rows = [lp["conv_b"], lp["ln_a_g"], lp["ln_a_b"], inb, enc["out_proj_b"],
                enc["lin1_b"], enc["lin2_b"], enc["ln1_g"], enc["ln1_b"],
                enc["ln2_g"], enc["ln2_b"], lp["deconv_b"], lp["ln_b_g"], lp["ln_b_b"]]
        V = jnp.stack([row(v) for v in rows], axis=0)
        layers.append((Wa, Wb, V))

    # pred pack: rows 0:C = pred_w.T zero-padded to a lane-dense width, row C = pred_b.
    pw = params["pred_w"].T                                             # (C, n_classes)
    C, ncls = pw.shape
    n_pad = max(128, ((ncls + 127) // 128) * 128)
    pred = jnp.zeros((C + 1, n_pad), jnp.float32)
    pred = pred.at[:C, :ncls].set(pw)
    pred = pred.at[C, :ncls].set(params["pred_b"])
    return dict(layers=layers, pred=pred)


# ----------------------------- pure-JAX f32 reference (sanity check) -----------------------------

def ref_forward(x_nct, params, nhead):
    def ln(x, g, b):
        mu = x.mean(-1, keepdims=True)
        v = ((x - mu) ** 2).mean(-1, keepdims=True)
        return (x - mu) / jnp.sqrt(v + 1e-5) * g + b

    x = jnp.transpose(x_nct, (2, 0, 1)).astype(jnp.float32)   # (T, N, C)
    for lp in params["layers"]:
        res = x
        xn = jnp.transpose(x, (1, 2, 0))                       # (N, C, T)
        y = jax.lax.conv_general_dilated(xn, lp["conv_w"], (1,), "VALID",
                                         dimension_numbers=("NCH", "OIH", "NCH"))
        y = y + lp["conv_b"][None, :, None]
        x = jax.nn.relu(jnp.transpose(y, (2, 0, 1)))
        x = ln(x, lp["ln_a_g"], lp["ln_a_b"])

        p = lp["enc"]
        T, N, C = x.shape
        dh = C // nhead
        qkv = x @ p["in_proj_w"].T + p["in_proj_b"]
        q, k, v = jnp.split(qkv, 3, axis=-1)
        heads = lambda a: a.reshape(T, N, nhead, dh).transpose(1, 2, 0, 3)
        q, k, v = heads(q), heads(k), heads(v)
        s = jnp.einsum("bhtd,bhsd->bhts", q, k) / math.sqrt(dh)
        a = jax.nn.softmax(s, axis=-1)
        o = jnp.einsum("bhts,bhsd->bhtd", a, v).transpose(2, 0, 1, 3).reshape(T, N, C)
        o = o @ p["out_proj_w"].T + p["out_proj_b"]
        x = ln(x + o, p["ln1_g"], p["ln1_b"])
        h = jax.nn.relu(x @ p["lin1_w"].T + p["lin1_b"])
        h = h @ p["lin2_w"].T + p["lin2_b"]
        x = ln(x + h, p["ln2_g"], p["ln2_b"])

        K = lp["deconv_w"].shape[2]
        xn = jnp.transpose(x, (1, 2, 0))
        wz = jnp.flip(lp["deconv_w"], 2).transpose(1, 0, 2)    # (Cout, Cin, K)
        y = jax.lax.conv_general_dilated(xn, wz, (1,), [(K - 1, K - 1)],
                                         dimension_numbers=("NCH", "OIH", "NCH"))
        y = y + lp["deconv_b"][None, :, None]
        x = jax.nn.relu(jnp.transpose(y, (2, 0, 1)))
        x = ln(x, lp["ln_b_g"], lp["ln_b_b"])
        x = res + x
    x = jnp.transpose(x, (1, 0, 2))
    return x @ params["pred_w"].T + params["pred_b"]


# ----------------------------- main -----------------------------

if __name__ == "__main__":
    input_size, n_classes, num_layers, dropout, nhead = 32, 8, 2, 0.0, 4
    N, T = 2, 16

    key = jax.random.PRNGKey(0)
    pkey, xkey = jax.random.split(key)
    params = init_params(pkey, input_size, n_classes, num_layers, nhead)
    prep = prepare_params(params, nhead)                       # packed / pre-transposed once
    x = jax.random.normal(xkey, (N, input_size, T), jnp.float32)   # (batch, channels, time)

    fwd = jax.jit(functools.partial(transformer_decoder_forward,
                                    nhead=nhead, n_classes=n_classes))
    out = jax.block_until_ready(fwd(x, prep))
    assert out.shape == (N, T, n_classes), out.shape

    with jax.default_matmul_precision("float32"):
        ref = ref_forward(x, params, nhead)
    err = float(jnp.max(jnp.abs(out - ref)))
    # Kernel uses bf16 MXU inputs (f32 accumulation / elementwise) vs. an f32 reference: expected
    # drift is ~1e-2; genuine logic bugs produce O(1) errors on these O(1)-magnitude outputs.
    assert err < 1.5e-1, f"max abs error vs f32 reference: {err}"

    print("KERNEL_OK")
</pallas_src>

<mosaic_0001>
module attributes {stable_mosaic.version = 11 : i64} {
  func.func @_fused_decoder_kernel(%arg0: i32, %arg1: memref<1x16x32xf32, #tpu.memory_space<vmem>>, %arg2: memref<32x256xbf16, #tpu.memory_space<vmem>>, %arg3: memref<320x32xbf16, #tpu.memory_space<vmem>>, %arg4: memref<14x128xf32, #tpu.memory_space<vmem>>, %arg5: memref<32x256xbf16, #tpu.memory_space<vmem>>, %arg6: memref<192x32xbf16, #tpu.memory_space<vmem>>, %arg7: memref<14x128xf32, #tpu.memory_space<vmem>>, %arg8: memref<33x128xf32, #tpu.memory_space<vmem>>, %arg9: memref<1x16x128xf32, #tpu.memory_space<vmem>>) attributes {dimension_semantics = [#tpu.dimension_semantics<parallel>], iteration_bounds = array<i64: 2>, scalar_prefetch = 0 : i64, scratch_operands = 0 : i64, tpu.core_type = #tpu.core_type<tc>, window_params = [{transform_indices = @transform_0, window_bounds = array<i64: 1, 16, 32>}, {pipeline_mode = #tpu.pipeline_mode<synchronous>, transform_indices = @transform_1, window_bounds = array<i64: 32, 256>}, {pipeline_mode = #tpu.pipeline_mode<synchronous>, transform_indices = @transform_2, window_bounds = array<i64: 320, 32>}, {pipeline_mode = #tpu.pipeline_mode<synchronous>, transform_indices = @transform_3, window_bounds = array<i64: 14, 128>}, {pipeline_mode = #tpu.pipeline_mode<synchronous>, transform_indices = @transform_4, window_bounds = array<i64: 32, 256>}, {pipeline_mode = #tpu.pipeline_mode<synchronous>, transform_indices = @transform_5, window_bounds = array<i64: 192, 32>}, {pipeline_mode = #tpu.pipeline_mode<synchronous>, transform_indices = @transform_6, window_bounds = array<i64: 14, 128>}, {pipeline_mode = #tpu.pipeline_mode<synchronous>, transform_indices = @transform_7, window_bounds = array<i64: 33, 128>}, {transform_indices = @transform_8, window_bounds = array<i64: 1, 16, 128>}]} {
    %c0 = arith.constant 0 : index
    %c0_0 = arith.constant 0 : index
    %c0_1 = arith.constant 0 : index
    %0 = vector.load %arg1[%c0, %c0_0, %c0_1] : memref<1x16x32xf32, #tpu.memory_space<vmem>>, vector<1x16x32xf32>
    %1 = vector.shape_cast %0 : vector<1x16x32xf32> to vector<16x32xf32>
    %2 = vector.extract_strided_slice %1 {offsets = [0, 0], sizes = [14, 32], strides = [1, 1]} : vector<16x32xf32> to vector<14x32xf32>
    %3 = vector.extract_strided_slice %1 {offsets = [1, 0], sizes = [14, 32], strides = [1, 1]} : vector<16x32xf32> to vector<14x32xf32>
    %4 = vector.extract_strided_slice %1 {offsets = [2, 0], sizes = [14, 32], strides = [1, 1]} : vector<16x32xf32> to vector<14x32xf32>
    %5 = tpu.concatenate %2, %3, %4 in 1 : vector<14x32xf32>, vector<14x32xf32>, vector<14x32xf32> -> vector<14x96xf32>
    %c0_2 = arith.constant 0 : index
    %c0_3 = arith.constant 0 : index
    %6 = vector.load %arg3[%c0_2, %c0_3] : memref<320x32xbf16, #tpu.memory_space<vmem>>, vector<96x32xbf16>
    %7 = arith.truncf %5 : vector<14x96xf32> to vector<14x96xbf16>
    %cst = arith.constant dense<0.000000e+00> : vector<14x32xf32>
    %8 = tpu.matmul %7, %6, %cst {dimension_numbers = #tpu.dot_dimension_numbers<[1], [0], [0], [1], [0, 0, 1, 1], [], []>} : vector<14x96xbf16>, vector<96x32xbf16>, vector<14x32xf32> -> vector<14x32xf32>
    %c0_4 = arith.constant 0 : index
    %c0_5 = arith.constant 0 : index
    %9 = vector.load %arg4[%c0_4, %c0_5] : memref<14x128xf32, #tpu.memory_space<vmem>>, vector<1x32xf32>
    %10 = vector.broadcast %9 : vector<1x32xf32> to vector<14x32xf32>
    %11 = arith.addf %8, %10 : vector<14x32xf32>
    %cst_6 = arith.constant 0.000000e+00 : f32
    %12 = vector.broadcast %cst_6 : f32 to vector<14x32xf32>
    %13 = arith.maximumf %11, %12 : vector<14x32xf32>
    %c1 = arith.constant 1 : index
    %c0_7 = arith.constant 0 : index
    %14 = vector.load %arg4[%c1, %c0_7] : memref<14x128xf32, #tpu.memory_space<vmem>>, vector<1x32xf32>
    %c2 = arith.constant 2 : index
    %c0_8 = arith.constant 0 : index
    %15 = vector.load %arg4[%c2, %c0_8] : memref<14x128xf32, #tpu.memory_space<vmem>>, vector<1x32xf32>
    %cst_9 = arith.constant dense<0.000000e+00> : vector<14xf32>
    %16 = vector.multi_reduction <add>, %13, %cst_9 [1] : vector<14x32xf32> to vector<14xf32>
    %17 = vector.shape_cast %16 : vector<14xf32> to vector<14x1xf32>
    %cst_10 = arith.constant 3.200000e+01 : f32
    %18 = vector.broadcast %cst_10 : f32 to vector<14x1xf32>
    %19 = arith.divf %17, %18 : vector<14x1xf32>
    %20 = vector.broadcast %19 : vector<14x1xf32> to vector<14x32xf32>
    %21 = arith.subf %13, %20 : vector<14x32xf32>
    %22 = arith.mulf %21, %21 : vector<14x32xf32>
    %cst_11 = arith.constant dense<0.000000e+00> : vector<14xf32>
    %23 = vector.multi_reduction <add>, %22, %cst_11 [1] : vector<14x32xf32> to vector<14xf32>
    %24 = vector.shape_cast %23 : vector<14xf32> to vector<14x1xf32>
    %cst_12 = arith.constant 3.200000e+01 : f32
    %25 = vector.broadcast %cst_12 : f32 to vector<14x1xf32>
    %26 = arith.divf %24, %25 : vector<14x1xf32>
    %cst_13 = arith.constant 9.99999974E-6 : f32
    %27 = vector.broadcast %cst_13 : f32 to vector<14x1xf32>
    %28 = arith.addf %26, %27 : vector<14x1xf32>
    %29 = math.rsqrt %28 : vector<14x1xf32>
    %30 = vector.broadcast %29 : vector<14x1xf32> to vector<14x32xf32>
    %31 = arith.mulf %21, %30 : vector<14x32xf32>
    %32 = vector.broadcast %14 : vector<1x32xf32> to vector<14x32xf32>
    %33 = arith.mulf %31, %32 : vector<14x32xf32>
    %34 = vector.broadcast %15 : vector<1x32xf32> to vector<14x32xf32>
    %35 = arith.addf %33, %34 : vector<14x32xf32>
    %c0_14 = arith.constant 0 : index
    %c0_15 = arith.constant 0 : index
    %36 = vector.load %arg2[%c0_14, %c0_15] : memref<32x256xbf16, #tpu.memory_space<vmem>>, vector<32x96xbf16>
    %37 = arith.truncf %35 : vector<14x32xf32> to vector<14x32xbf16>
    %cst_16 = arith.constant dense<0.000000e+00> : vector<14x96xf32>
    %38 = tpu.matmul %37, %36, %cst_16 {dimension_numbers = #tpu.dot_dimension_numbers<[1], [0], [0], [1], [0, 0, 1, 1], [], []>} : vector<14x32xbf16>, vector<32x96xbf16>, vector<14x96xf32> -> vector<14x96xf32>
    %c3 = arith.constant 3 : index
    %c0_17 = arith.constant 0 : index
    %39 = vector.load %arg4[%c3, %c0_17] : memref<14x128xf32, #tpu.memory_space<vmem>>, vector<1x96xf32>
    %40 = vector.broadcast %39 : vector<1x96xf32> to vector<14x96xf32>
    %41 = arith.addf %38, %40 : vector<14x96xf32>
    %cst_18 = arith.constant 0.000000e+00 : f32
    %42 = vector.broadcast %cst_18 : f32 to vector<14x32xf32>
    %43 = vector.extract_strided_slice %41 {offsets = [0, 0], sizes = [14, 8], strides = [1, 1]} : vector<14x96xf32> to vector<14x8xf32>
    %44 = vector.extract_strided_slice %41 {offsets = [0, 32], sizes = [14, 8], strides = [1, 1]} : vector<14x96xf32> to vector<14x8xf32>
    %45 = vector.extract_strided_slice %41 {offsets = [0, 64], sizes = [14, 8], strides = [1, 1]} : vector<14x96xf32> to vector<14x8xf32>
    %46 = arith.truncf %43 : vector<14x8xf32> to vector<14x8xbf16>
    %47 = arith.truncf %44 : vector<14x8xf32> to vector<14x8xbf16>
    %cst_19 = arith.constant dense<0.000000e+00> : vector<14x14xf32>
    %48 = tpu.matmul %46, %47, %cst_19 {dimension_numbers = #tpu.dot_dimension_numbers<[1], [1], [0], [0], [0, 0, 1, 0], [], []>} : vector<14x8xbf16>, vector<14x8xbf16>, vector<14x14xf32> -> vector<14x14xf32>
    %cst_20 = arith.constant dense<0xFF800000> : vector<14xf32>
    %49 = vector.multi_reduction <maximumf>, %48, %cst_20 [1] : vector<14x14xf32> to vector<14xf32>
    %50 = vector.shape_cast %49 : vector<14xf32> to vector<14x1xf32>
    %51 = vector.broadcast %50 : vector<14x1xf32> to vector<14x14xf32>
    %52 = arith.subf %48, %51 : vector<14x14xf32>
    %53 = math.exp %52 : vector<14x14xf32>
    %cst_21 = arith.constant dense<0.000000e+00> : vector<14xf32>
    %54 = vector.multi_reduction <add>, %53, %cst_21 [1] : vector<14x14xf32> to vector<14xf32>
    %55 = vector.shape_cast %54 : vector<14xf32> to vector<14x1xf32>
    %56 = vector.broadcast %55 : vector<14x1xf32> to vector<14x14xf32>
    %57 = arith.divf %53, %56 : vector<14x14xf32>
    %58 = arith.truncf %57 : vector<14x14xf32> to vector<14x14xbf16>
    %59 = arith.truncf %45 : vector<14x8xf32> to vector<14x8xbf16>
    %cst_22 = arith.constant dense<0.000000e+00> : vector<14x8xf32>
    %60 = tpu.matmul %58, %59, %cst_22 {dimension_numbers = #tpu.dot_dimension_numbers<[1], [0], [0], [1], [0, 0, 1, 1], [], []>} : vector<14x14xbf16>, vector<14x8xbf16>, vector<14x8xf32> -> vector<14x8xf32>
    %c0_23 = arith.constant 0 : index
    %c96 = arith.constant 96 : index
    %61 = vector.load %arg2[%c0_23, %c96] : memref<32x256xbf16, #tpu.memory_space<vmem>>, vector<8x32xbf16>
    %62 = arith.truncf %60 : vector<14x8xf32> to vector<14x8xbf16>
    %cst_24 = arith.constant dense<0.000000e+00> : vector<14x32xf32>
    %63 = tpu.matmul %62, %61, %cst_24 {dimension_numbers = #tpu.dot_dimension_numbers<[1], [0], [0], [1], [0, 0, 1, 1], [], []>} : vector<14x8xbf16>, vector<8x32xbf16>, vector<14x32xf32> -> vector<14x32xf32>
    %64 = arith.addf %42, %63 : vector<14x32xf32>
    %65 = vector.extract_strided_slice %41 {offsets = [0, 8], sizes = [14, 8], strides = [1, 1]} : vector<14x96xf32> to vector<14x8xf32>
    %66 = vector.extract_strided_slice %41 {offsets = [0, 40], sizes = [14, 8], strides = [1, 1]} : vector<14x96xf32> to vector<14x8xf32>
    %67 = vector.extract_strided_slice %41 {offsets = [0, 72], sizes = [14, 8], strides = [1, 1]} : vector<14x96xf32> to vector<14x8xf32>
    %68 = arith.truncf %65 : vector<14x8xf32> to vector<14x8xbf16>
    %69 = arith.truncf %66 : vector<14x8xf32> to vector<14x8xbf16>
    %cst_25 = arith.constant dense<0.000000e+00> : vector<14x14xf32>
    %70 = tpu.matmul %68, %69, %cst_25 {dimension_numbers = #tpu.dot_dimension_numbers<[1], [1], [0], [0], [0, 0, 1, 0], [], []>} : vector<14x8xbf16>, vector<14x8xbf16>, vector<14x14xf32> -> vector<14x14xf32>
    %cst_26 = arith.constant dense<0xFF800000> : vector<14xf32>
    %71 = vector.multi_reduction <maximumf>, %70, %cst_26 [1] : vector<14x14xf32> to vector<14xf32>
    %72 = vector.shape_cast %71 : vector<14xf32> to vector<14x1xf32>
    %73 = vector.broadcast %72 : vector<14x1xf32> to vector<14x14xf32>
    %74 = arith.subf %70, %73 : vector<14x14xf32>
    %75 = math.exp %74 : vector<14x14xf32>
    %cst_27 = arith.constant dense<0.000000e+00> : vector<14xf32>
    %76 = vector.multi_reduction <add>, %75, %cst_27 [1] : vector<14x14xf32> to vector<14xf32>
    %77 = vector.shape_cast %76 : vector<14xf32> to vector<14x1xf32>
    %78 = vector.broadcast %77 : vector<14x1xf32> to vector<14x14xf32>
    %79 = arith.divf %75, %78 : vector<14x14xf32>
    %80 = arith.truncf %79 : vector<14x14xf32> to vector<14x14xbf16>
    %81 = arith.truncf %67 : vector<14x8xf32> to vector<14x8xbf16>
    %cst_28 = arith.constant dense<0.000000e+00> : vector<14x8xf32>
    %82 = tpu.matmul %80, %81, %cst_28 {dimension_numbers = #tpu.dot_dimension_numbers<[1], [0], [0], [1], [0, 0, 1, 1], [], []>} : vector<14x14xbf16>, vector<14x8xbf16>, vector<14x8xf32> -> vector<14x8xf32>
    %c8 = arith.constant 8 : index
    %c96_29 = arith.constant 96 : index
    %83 = vector.load %arg2[%c8, %c96_29] : memref<32x256xbf16, #tpu.memory_space<vmem>>, vector<8x32xbf16>
    %84 = arith.truncf %82 : vector<14x8xf32> to vector<14x8xbf16>
    %cst_30 = arith.constant dense<0.000000e+00> : vector<14x32xf32>
    %85 = tpu.matmul %84, %83, %cst_30 {dimension_numbers = #tpu.dot_dimension_numbers<[1], [0], [0], [1], [0, 0, 1, 1], [], []>} : vector<14x8xbf16>, vector<8x32xbf16>, vector<14x32xf32> -> vector<14x32xf32>
    %86 = arith.addf %64, %85 : vector<14x32xf32>
    %87 = vector.extract_strided_slice %41 {offsets = [0, 16], sizes = [14, 8], strides = [1, 1]} : vector<14x96xf32> to vector<14x8xf32>
    %88 = vector.extract_strided_slice %41 {offsets = [0, 48], sizes = [14, 8], strides = [1, 1]} : vector<14x96xf32> to vector<14x8xf32>
    %89 = vector.extract_strided_slice %41 {offsets = [0, 80], sizes = [14, 8], strides = [1, 1]} : vector<14x96xf32> to vector<14x8xf32>
    %90 = arith.truncf %87 : vector<14x8xf32> to vector<14x8xbf16>
    %91 = arith.truncf %88 : vector<14x8xf32> to vector<14x8xbf16>
    %cst_31 = arith.constant dense<0.000000e+00> : vector<14x14xf32>
    %92 = tpu.matmul %90, %91, %cst_31 {dimension_numbers = #tpu.dot_dimension_numbers<[1], [1], [0], [0], [0, 0, 1, 0], [], []>} : vector<14x8xbf16>, vector<14x8xbf16>, vector<14x14xf32> -> vector<14x14xf32>
    %cst_32 = arith.constant dense<0xFF800000> : vector<14xf32>
    %93 = vector.multi_reduction <maximumf>, %92, %cst_32 [1] : vector<14x14xf32> to vector<14xf32>
    %94 = vector.shape_cast %93 : vector<14xf32> to vector<14x1xf32>
    %95 = vector.broadcast %94 : vector<14x1xf32> to vector<14x14xf32>
    %96 = arith.subf %92, %95 : vector<14x14xf32>
    %97 = math.exp %96 : vector<14x14xf32>
    %cst_33 = arith.constant dense<0.000000e+00> : vector<14xf32>
    %98 = vector.multi_reduction <add>, %97, %cst_33 [1] : vector<14x14xf32> to vector<14xf32>
    %99 = vector.shape_cast %98 : vector<14xf32> to vector<14x1xf32>
    %100 = vector.broadcast %99 : vector<14x1xf32> to vector<14x14xf32>
    %101 = arith.divf %97, %100 : vector<14x14xf32>
    %102 = arith.truncf %101 : vector<14x14xf32> to vector<14x14xbf16>
    %103 = arith.truncf %89 : vector<14x8xf32> to vector<14x8xbf16>
    %cst_34 = arith.constant dense<0.000000e+00> : vector<14x8xf32>
    %104 = tpu.matmul %102, %103, %cst_34 {dimension_numbers = #tpu.dot_dimension_numbers<[1], [0], [0], [1], [0, 0, 1, 1], [], []>} : vector<14x14xbf16>, vector<14x8xbf16>, vector<14x8xf32> -> vector<14x8xf32>
    %c16 = arith.constant 16 : index
    %c96_35 = arith.constant 96 : index
    %105 = vector.load %arg2[%c16, %c96_35] : memref<32x256xbf16, #tpu.memory_space<vmem>>, vector<8x32xbf16>
    %106 = arith.truncf %104 : vector<14x8xf32> to vector<14x8xbf16>
    %cst_36 = arith.constant dense<0.000000e+00> : vector<14x32xf32>
    %107 = tpu.matmul %106, %105, %cst_36 {dimension_numbers = #tpu.dot_dimension_numbers<[1], [0], [0], [1], [0, 0, 1, 1], [], []>} : vector<14x8xbf16>, vector<8x32xbf16>, vector<14x32xf32> -> vector<14x32xf32>
    %108 = arith.addf %86, %107 : vector<14x32xf32>
    %109 = vector.extract_strided_slice %41 {offsets = [0, 24], sizes = [14, 8], strides = [1, 1]} : vector<14x96xf32> to vector<14x8xf32>
    %110 = vector.extract_strided_slice %41 {offsets = [0, 56], sizes = [14, 8], strides = [1, 1]} : vector<14x96xf32> to vector<14x8xf32>
    %111 = vector.extract_strided_slice %41 {offsets = [0, 88], sizes = [14, 8], strides = [1, 1]} : vector<14x96xf32> to vector<14x8xf32>
    %112 = arith.truncf %109 : vector<14x8xf32> to vector<14x8xbf16>
    %113 = arith.truncf %110 : vector<14x8xf32> to vector<14x8xbf16>
    %cst_37 = arith.constant dense<0.000000e+00> : vector<14x14xf32>
    %114 = tpu.matmul %112, %113, %cst_37 {dimension_numbers = #tpu.dot_dimension_numbers<[1], [1], [0], [0], [0, 0, 1, 0], [], []>} : vector<14x8xbf16>, vector<14x8xbf16>, vector<14x14xf32> -> vector<14x14xf32>
    %cst_38 = arith.constant dense<0xFF800000> : vector<14xf32>
    %115 = vector.multi_reduction <maximumf>, %114, %cst_38 [1] : vector<14x14xf32> to vector<14xf32>
    %116 = vector.shape_cast %115 : vector<14xf32> to vector<14x1xf32>
    %117 = vector.broadcast %116 : vector<14x1xf32> to vector<14x14xf32>
    %118 = arith.subf %114, %117 : vector<14x14xf32>
    %119 = math.exp %118 : vector<14x14xf32>
    %cst_39 = arith.constant dense<0.000000e+00> : vector<14xf32>
    %120 = vector.multi_reduction <add>, %119, %cst_39 [1] : vector<14x14xf32> to vector<14xf32>
    %121 = vector.shape_cast %120 : vector<14xf32> to vector<14x1xf32>
    %122 = vector.broadcast %121 : vector<14x1xf32> to vector<14x14xf32>
    %123 = arith.divf %119, %122 : vector<14x14xf32>
    %124 = arith.truncf %123 : vector<14x14xf32> to vector<14x14xbf16>
    %125 = arith.truncf %111 : vector<14x8xf32> to vector<14x8xbf16>
    %cst_40 = arith.constant dense<0.000000e+00> : vector<14x8xf32>
    %126 = tpu.matmul %124, %125, %cst_40 {dimension_numbers = #tpu.dot_dimension_numbers<[1], [0], [0], [1], [0, 0, 1, 1], [], []>} : vector<14x14xbf16>, vector<14x8xbf16>, vector<14x8xf32> -> vector<14x8xf32>
    %c24 = arith.constant 24 : index
    %c96_41 = arith.constant 96 : index
    %127 = vector.load %arg2[%c24, %c96_41] : memref<32x256xbf16, #tpu.memory_space<vmem>>, vector<8x32xbf16>
    %128 = arith.truncf %126 : vector<14x8xf32> to vector<14x8xbf16>
    %cst_42 = arith.constant dense<0.000000e+00> : vector<14x32xf32>
    %129 = tpu.matmul %128, %127, %cst_42 {dimension_numbers = #tpu.dot_dimension_numbers<[1], [0], [0], [1], [0, 0, 1, 1], [], []>} : vector<14x8xbf16>, vector<8x32xbf16>, vector<14x32xf32> -> vector<14x32xf32>
    %130 = arith.addf %108, %129 : vector<14x32xf32>
    %c4 = arith.constant 4 : index
    %c0_43 = arith.constant 0 : index
    %131 = vector.load %arg4[%c4, %c0_43] : memref<14x128xf32, #tpu.memory_space<vmem>>, vector<1x32xf32>
    %132 = vector.broadcast %131 : vector<1x32xf32> to vector<14x32xf32>
    %133 = arith.addf %130, %132 : vector<14x32xf32>
    %134 = arith.addf %35, %133 : vector<14x32xf32>
    %c7 = arith.constant 7 : index
    %c0_44 = arith.constant 0 : index
    %135 = vector.load %arg4[%c7, %c0_44] : memref<14x128xf32, #tpu.memory_space<vmem>>, vector<1x32xf32>
    %c8_45 = arith.constant 8 : index
    %c0_46 = arith.constant 0 : index
    %136 = vector.load %arg4[%c8_45, %c0_46] : memref<14x128xf32, #tpu.memory_space<vmem>>, vector<1x32xf32>
    %cst_47 = arith.constant dense<0.000000e+00> : vector<14xf32>
    %137 = vector.multi_reduction <add>, %134, %cst_47 [1] : vector<14x32xf32> to vector<14xf32>
    %138 = vector.shape_cast %137 : vector<14xf32> to vector<14x1xf32>
    %cst_48 = arith.constant 3.200000e+01 : f32
    %139 = vector.broadcast %cst_48 : f32 to vector<14x1xf32>
    %140 = arith.divf %138, %139 : vector<14x1xf32>
    %141 = vector.broadcast %140 : vector<14x1xf32> to vector<14x32xf32>
    %142 = arith.subf %134, %141 : vector<14x32xf32>
    %143 = arith.mulf %142, %142 : vector<14x32xf32>
    %cst_49 = arith.constant dense<0.000000e+00> : vector<14xf32>
    %144 = vector.multi_reduction <add>, %143, %cst_49 [1] : vector<14x32xf32> to vector<14xf32>
    %145 = vector.shape_cast %144 : vector<14xf32> to vector<14x1xf32>
    %cst_50 = arith.constant 3.200000e+01 : f32
    %146 = vector.broadcast %cst_50 : f32 to vector<14x1xf32>
    %147 = arith.divf %145, %146 : vector<14x1xf32>
    %cst_51 = arith.constant 9.99999974E-6 : f32
    %148 = vector.broadcast %cst_51 : f32 to vector<14x1xf32>
    %149 = arith.addf %147, %148 : vector<14x1xf32>
    %150 = math.rsqrt %149 : vector<14x1xf32>
    %151 = vector.broadcast %150 : vector<14x1xf32> to vector<14x32xf32>
    %152 = arith.mulf %142, %151 : vector<14x32xf32>
    %153 = vector.broadcast %135 : vector<1x32xf32> to vector<14x32xf32>
    %154 = arith.mulf %152, %153 : vector<14x32xf32>
    %155 = vector.broadcast %136 : vector<1x32xf32> to vector<14x32xf32>
    %156 = arith.addf %154, %155 : vector<14x32xf32>
    %c0_52 = arith.constant 0 : index
    %c128 = arith.constant 128 : index
    %157 = vector.load %arg2[%c0_52, %c128] : memref<32x256xbf16, #tpu.memory_space<vmem>>, vector<32x128xbf16>
    %158 = arith.truncf %156 : vector<14x32xf32> to vector<14x32xbf16>
    %cst_53 = arith.constant dense<0.000000e+00> : vector<14x128xf32>
    %159 = tpu.matmul %158, %157, %cst_53 {dimension_numbers = #tpu.dot_dimension_numbers<[1], [0], [0], [1], [0, 0, 1, 1], [], []>} : vector<14x32xbf16>, vector<32x128xbf16>, vector<14x128xf32> -> vector<14x128xf32>
    %c5 = arith.constant 5 : index
    %c0_54 = arith.constant 0 : index
    %160 = vector.load %arg4[%c5, %c0_54] : memref<14x128xf32, #tpu.memory_space<vmem>>, vector<1x128xf32>
    %161 = vector.broadcast %160 : vector<1x128xf32> to vector<14x128xf32>
    %162 = arith.addf %159, %161 : vector<14x128xf32>
    %cst_55 = arith.constant 0.000000e+00 : f32
    %163 = vector.broadcast %cst_55 : f32 to vector<14x128xf32>
    %164 = arith.maximumf %162, %163 : vector<14x128xf32>
    %c96_56 = arith.constant 96 : index
    %c0_57 = arith.constant 0 : index
    %165 = vector.load %arg3[%c96_56, %c0_57] : memref<320x32xbf16, #tpu.memory_space<vmem>>, vector<128x32xbf16>
    %166 = arith.truncf %164 : vector<14x128xf32> to vector<14x128xbf16>
    %cst_58 = arith.constant dense<0.000000e+00> : vector<14x32xf32>
    %167 = tpu.matmul %166, %165, %cst_58 {dimension_numbers = #tpu.dot_dimension_numbers<[1], [0], [0], [1], [0, 0, 1, 1], [], []>} : vector<14x128xbf16>, vector<128x32xbf16>, vector<14x32xf32> -> vector<14x32xf32>
    %c6 = arith.constant 6 : index
    %c0_59 = arith.constant 0 : index
    %168 = vector.load %arg4[%c6, %c0_59] : memref<14x128xf32, #tpu.memory_space<vmem>>, vector<1x32xf32>
    %169 = vector.broadcast %168 : vector<1x32xf32> to vector<14x32xf32>
    %170 = arith.addf %167, %169 : vector<14x32xf32>
    %171 = arith.addf %156, %170 : vector<14x32xf32>
    %c9 = arith.constant 9 : index
    %c0_60 = arith.constant 0 : index
    %172 = vector.load %arg4[%c9, %c0_60] : memref<14x128xf32, #tpu.memory_space<vmem>>, vector<1x32xf32>
    %c10 = arith.constant 10 : index
    %c0_61 = arith.constant 0 : index
    %173 = vector.load %arg4[%c10, %c0_61] : memref<14x128xf32, #tpu.memory_space<vmem>>, vector<1x32xf32>
    %cst_62 = arith.constant dense<0.000000e+00> : vector<14xf32>
    %174 = vector.multi_reduction <add>, %171, %cst_62 [1] : vector<14x32xf32> to vector<14xf32>
    %175 = vector.shape_cast %174 : vector<14xf32> to vector<14x1xf32>
    %cst_63 = arith.constant 3.200000e+01 : f32
    %176 = vector.broadcast %cst_63 : f32 to vector<14x1xf32>
    %177 = arith.divf %175, %176 : vector<14x1xf32>
    %178 = vector.broadcast %177 : vector<14x1xf32> to vector<14x32xf32>
    %179 = arith.subf %171, %178 : vector<14x32xf32>
    %180 = arith.mulf %179, %179 : vector<14x32xf32>
    %cst_64 = arith.constant dense<0.000000e+00> : vector<14xf32>
    %181 = vector.multi_reduction <add>, %180, %cst_64 [1] : vector<14x32xf32> to vector<14xf32>
    %182 = vector.shape_cast %181 : vector<14xf32> to vector<14x1xf32>
    %cst_65 = arith.constant 3.200000e+01 : f32
    %183 = vector.broadcast %cst_65 : f32 to vector<14x1xf32>
    %184 = arith.divf %182, %183 : vector<14x1xf32>
    %cst_66 = arith.constant 9.99999974E-6 : f32
    %185 = vector.broadcast %cst_66 : f32 to vector<14x1xf32>
    %186 = arith.addf %184, %185 : vector<14x1xf32>
    %187 = math.rsqrt %186 : vector<14x1xf32>
    %188 = vector.broadcast %187 : vector<14x1xf32> to vector<14x32xf32>
    %189 = arith.mulf %179, %188 : vector<14x32xf32>
    %190 = vector.broadcast %172 : vector<1x32xf32> to vector<14x32xf32>
    %191 = arith.mulf %189, %190 : vector<14x32xf32>
    %192 = vector.broadcast %173 : vector<1x32xf32> to vector<14x32xf32>
    %193 = arith.addf %191, %192 : vector<14x32xf32>
    %cst_67 = arith.constant 0.000000e+00 : f32
    %194 = vector.broadcast %cst_67 : f32 to vector<2x32xf32>
    %195 = tpu.concatenate %194, %193, %194 in 0 : vector<2x32xf32>, vector<14x32xf32>, vector<2x32xf32> -> vector<18x32xf32>
    %196 = vector.extract_strided_slice %195 {offsets = [0, 0], sizes = [16, 32], strides = [1, 1]} : vector<18x32xf32> to vector<16x32xf32>
    %197 = vector.extract_strided_slice %195 {offsets = [1, 0], sizes = [16, 32], strides = [1, 1]} : vector<18x32xf32> to vector<16x32xf32>
    %198 = vector.extract_strided_slice %195 {offsets = [2, 0], sizes = [16, 32], strides = [1, 1]} : vector<18x32xf32> to vector<16x32xf32>
    %199 = tpu.concatenate %196, %197, %198 in 1 : vector<16x32xf32>, vector<16x32xf32>, vector<16x32xf32> -> vector<16x96xf32>
    %c224 = arith.constant 224 : index
    %c0_68 = arith.constant 0 : index
    %200 = vector.load %arg3[%c224, %c0_68] : memref<320x32xbf16, #tpu.memory_space<vmem>>, vector<96x32xbf16>
    %201 = arith.truncf %199 : vector<16x96xf32> to vector<16x96xbf16>
    %cst_69 = arith.constant dense<0.000000e+00> : vector<16x32xf32>
    %202 = tpu.matmul %201, %200, %cst_69 {dimension_numbers = #tpu.dot_dimension_numbers<[1], [0], [0], [1], [0, 0, 1, 1], [], []>} : vector<16x96xbf16>, vector<96x32xbf16>, vector<16x32xf32> -> vector<16x32xf32>
    %c11 = arith.constant 11 : index
    %c0_70 = arith.constant 0 : index
    %203 = vector.load %arg4[%c11, %c0_70] : memref<14x128xf32, #tpu.memory_space<vmem>>, vector<1x32xf32>
    %204 = vector.broadcast %203 : vector<1x32xf32> to vector<16x32xf32>
    %205 = arith.addf %202, %204 : vector<16x32xf32>
    %cst_71 = arith.constant 0.000000e+00 : f32
    %206 = vector.broadcast %cst_71 : f32 to vector<16x32xf32>
    %207 = arith.maximumf %205, %206 : vector<16x32xf32>
    %c12 = arith.constant 12 : index
    %c0_72 = arith.constant 0 : index
    %208 = vector.load %arg4[%c12, %c0_72] : memref<14x128xf32, #tpu.memory_space<vmem>>, vector<1x32xf32>
    %c13 = arith.constant 13 : index
    %c0_73 = arith.constant 0 : index
    %209 = vector.load %arg4[%c13, %c0_73] : memref<14x128xf32, #tpu.memory_space<vmem>>, vector<1x32xf32>
    %cst_74 = arith.constant dense<0.000000e+00> : vector<16xf32>
    %210 = vector.multi_reduction <add>, %207, %cst_74 [1] : vector<16x32xf32> to vector<16xf32>
    %211 = vector.shape_cast %210 : vector<16xf32> to vector<16x1xf32>
    %cst_75 = arith.constant 3.200000e+01 : f32
    %212 = vector.broadcast %cst_75 : f32 to vector<16x1xf32>
    %213 = arith.divf %211, %212 : vector<16x1xf32>
    %214 = vector.broadcast %213 : vector<16x1xf32> to vector<16x32xf32>
    %215 = arith.subf %207, %214 : vector<16x32xf32>
    %216 = arith.mulf %215, %215 : vector<16x32xf32>
    %cst_76 = arith.constant dense<0.000000e+00> : vector<16xf32>
    %217 = vector.multi_reduction <add>, %216, %cst_76 [1] : vector<16x32xf32> to vector<16xf32>
    %218 = vector.shape_cast %217 : vector<16xf32> to vector<16x1xf32>
    %cst_77 = arith.constant 3.200000e+01 : f32
    %219 = vector.broadcast %cst_77 : f32 to vector<16x1xf32>
    %220 = arith.divf %218, %219 : vector<16x1xf32>
    %cst_78 = arith.constant 9.99999974E-6 : f32
    %221 = vector.broadcast %cst_78 : f32 to vector<16x1xf32>
    %222 = arith.addf %220, %221 : vector<16x1xf32>
    %223 = math.rsqrt %222 : vector<16x1xf32>
    %224 = vector.broadcast %223 : vector<16x1xf32> to vector<16x32xf32>
    %225 = arith.mulf %215, %224 : vector<16x32xf32>
    %226 = vector.broadcast %208 : vector<1x32xf32> to vector<16x32xf32>
    %227 = arith.mulf %225, %226 : vector<16x32xf32>
    %228 = vector.broadcast %209 : vector<1x32xf32> to vector<16x32xf32>
    %229 = arith.addf %227, %228 : vector<16x32xf32>
    %230 = arith.addf %1, %229 : vector<16x32xf32>
    %c0_79 = arith.constant 0 : index
    %c0_80 = arith.constant 0 : index
    %231 = vector.load %arg6[%c0_79, %c0_80] : memref<192x32xbf16, #tpu.memory_space<vmem>>, vector<32x32xbf16>
    %232 = arith.truncf %230 : vector<16x32xf32> to vector<16x32xbf16>
    %cst_81 = arith.constant dense<0.000000e+00> : vector<16x32xf32>
    %233 = tpu.matmul %232, %231, %cst_81 {dimension_numbers = #tpu.dot_dimension_numbers<[1], [0], [0], [1], [0, 0, 1, 1], [], []>} : vector<16x32xbf16>, vector<32x32xbf16>, vector<16x32xf32> -> vector<16x32xf32>
    %c0_82 = arith.constant 0 : index
    %c0_83 = arith.constant 0 : index
    %234 = vector.load %arg7[%c0_82, %c0_83] : memref<14x128xf32, #tpu.memory_space<vmem>>, vector<1x32xf32>
    %235 = vector.broadcast %234 : vector<1x32xf32> to vector<16x32xf32>
    %236 = arith.addf %233, %235 : vector<16x32xf32>
    %cst_84 = arith.constant 0.000000e+00 : f32
    %237 = vector.broadcast %cst_84 : f32 to vector<16x32xf32>
    %238 = arith.maximumf %236, %237 : vector<16x32xf32>
    %c1_85 = arith.constant 1 : index
    %c0_86 = arith.constant 0 : index
    %239 = vector.load %arg7[%c1_85, %c0_86] : memref<14x128xf32, #tpu.memory_space<vmem>>, vector<1x32xf32>
    %c2_87 = arith.constant 2 : index
    %c0_88 = arith.constant 0 : index
    %240 = vector.load %arg7[%c2_87, %c0_88] : memref<14x128xf32, #tpu.memory_space<vmem>>, vector<1x32xf32>
    %cst_89 = arith.constant dense<0.000000e+00> : vector<16xf32>
    %241 = vector.multi_reduction <add>, %238, %cst_89 [1] : vector<16x32xf32> to vector<16xf32>
    %242 = vector.shape_cast %241 : vector<16xf32> to vector<16x1xf32>
    %cst_90 = arith.constant 3.200000e+01 : f32
    %243 = vector.broadcast %cst_90 : f32 to vector<16x1xf32>
    %244 = arith.divf %242, %243 : vector<16x1xf32>
    %245 = vector.broadcast %244 : vector<16x1xf32> to vector<16x32xf32>
    %246 = arith.subf %238, %245 : vector<16x32xf32>
    %247 = arith.mulf %246, %246 : vector<16x32xf32>
    %cst_91 = arith.constant dense<0.000000e+00> : vector<16xf32>
    %248 = vector.multi_reduction <add>, %247, %cst_91 [1] : vector<16x32xf32> to vector<16xf32>
    %249 = vector.shape_cast %248 : vector<16xf32> to vector<16x1xf32>
    %cst_92 = arith.constant 3.200000e+01 : f32
    %250 = vector.broadcast %cst_92 : f32 to vector<16x1xf32>
    %251 = arith.divf %249, %250 : vector<16x1xf32>
    %cst_93 = arith.constant 9.99999974E-6 : f32
    %252 = vector.broadcast %cst_93 : f32 to vector<16x1xf32>
    %253 = arith.addf %251, %252 : vector<16x1xf32>
    %254 = math.rsqrt %253 : vector<16x1xf32>
    %255 = vector.broadcast %254 : vector<16x1xf32> to vector<16x32xf32>
    %256 = arith.mulf %246, %255 : vector<16x32xf32>
    %257 = vector.broadcast %239 : vector<1x32xf32> to vector<16x32xf32>
    %258 = arith.mulf %256, %257 : vector<16x32xf32>
    %259 = vector.broadcast %240 : vector<1x32xf32> to vector<16x32xf32>
    %260 = arith.addf %258, %259 : vector<16x32xf32>
    %c0_94 = arith.constant 0 : index
    %c0_95 = arith.constant 0 : index
    %261 = vector.load %arg5[%c0_94, %c0_95] : memref<32x256xbf16, #tpu.memory_space<vmem>>, vector<32x96xbf16>
    %262 = arith.truncf %260 : vector<16x32xf32> to vector<16x32xbf16>
    %cst_96 = arith.constant dense<0.000000e+00> : vector<16x96xf32>
    %263 = tpu.matmul %262, %261, %cst_96 {dimension_numbers = #tpu.dot_dimension_numbers<[1], [0], [0], [1], [0, 0, 1, 1], [], []>} : vector<16x32xbf16>, vector<32x96xbf16>, vector<16x96xf32> -> vector<16x96xf32>
    %c3_97 = arith.constant 3 : index
    %c0_98 = arith.constant 0 : index
    %264 = vector.load %arg7[%c3_97, %c0_98] : memref<14x128xf32, #tpu.memory_space<vmem>>, vector<1x96xf32>
    %265 = vector.broadcast %264 : vector<1x96xf32> to vector<16x96xf32>
    %266 = arith.addf %263, %265 : vector<16x96xf32>
    %cst_99 = arith.constant 0.000000e+00 : f32
    %267 = vector.broadcast %cst_99 : f32 to vector<16x32xf32>
    %268 = vector.extract_strided_slice %266 {offsets = [0, 0], sizes = [16, 8], strides = [1, 1]} : vector<16x96xf32> to vector<16x8xf32>
    %269 = vector.extract_strided_slice %266 {offsets = [0, 32], sizes = [16, 8], strides = [1, 1]} : vector<16x96xf32> to vector<16x8xf32>
    %270 = vector.extract_strided_slice %266 {offsets = [0, 64], sizes = [16, 8], strides = [1, 1]} : vector<16x96xf32> to vector<16x8xf32>
    %271 = arith.truncf %268 : vector<16x8xf32> to vector<16x8xbf16>
    %272 = arith.truncf %269 : vector<16x8xf32> to vector<16x8xbf16>
    %cst_100 = arith.constant dense<0.000000e+00> : vector<16x16xf32>
    %273 = tpu.matmul %271, %272, %cst_100 {dimension_numbers = #tpu.dot_dimension_numbers<[1], [1], [0], [0], [0, 0, 1, 0], [], []>} : vector<16x8xbf16>, vector<16x8xbf16>, vector<16x16xf32> -> vector<16x16xf32>
    %cst_101 = arith.constant dense<0xFF800000> : vector<16xf32>
    %274 = vector.multi_reduction <maximumf>, %273, %cst_101 [1] : vector<16x16xf32> to vector<16xf32>
    %275 = vector.shape_cast %274 : vector<16xf32> to vector<16x1xf32>
    %276 = vector.broadcast %275 : vector<16x1xf32> to vector<16x16xf32>
    %277 = arith.subf %273, %276 : vector<16x16xf32>
    %278 = math.exp %277 : vector<16x16xf32>
    %cst_102 = arith.constant dense<0.000000e+00> : vector<16xf32>
    %279 = vector.multi_reduction <add>, %278, %cst_102 [1] : vector<16x16xf32> to vector<16xf32>
    %280 = vector.shape_cast %279 : vector<16xf32> to vector<16x1xf32>
    %281 = vector.broadcast %280 : vector<16x1xf32> to vector<16x16xf32>
    %282 = arith.divf %278, %281 : vector<16x16xf32>
    %283 = arith.truncf %282 : vector<16x16xf32> to vector<16x16xbf16>
    %284 = arith.truncf %270 : vector<16x8xf32> to vector<16x8xbf16>
    %cst_103 = arith.constant dense<0.000000e+00> : vector<16x8xf32>
    %285 = tpu.matmul %283, %284, %cst_103 {dimension_numbers = #tpu.dot_dimension_numbers<[1], [0], [0], [1], [0, 0, 1, 1], [], []>} : vector<16x16xbf16>, vector<16x8xbf16>, vector<16x8xf32> -> vector<16x8xf32>
    %c0_104 = arith.constant 0 : index
    %c96_105 = arith.constant 96 : index
    %286 = vector.load %arg5[%c0_104, %c96_105] : memref<32x256xbf16, #tpu.memory_space<vmem>>, vector<8x32xbf16>
    %287 = arith.truncf %285 : vector<16x8xf32> to vector<16x8xbf16>
    %cst_106 = arith.constant dense<0.000000e+00> : vector<16x32xf32>
    %288 = tpu.matmul %287, %286, %cst_106 {dimension_numbers = #tpu.dot_dimension_numbers<[1], [0], [0], [1], [0, 0, 1, 1], [], []>} : vector<16x8xbf16>, vector<8x32xbf16>, vector<16x32xf32> -> vector<16x32xf32>
    %289 = arith.addf %267, %288 : vector<16x32xf32>
    %290 = vector.extract_strided_slice %266 {offsets = [0, 8], sizes = [16, 8], strides = [1, 1]} : vector<16x96xf32> to vector<16x8xf32>
    %291 = vector.extract_strided_slice %266 {offsets = [0, 40], sizes = [16, 8], strides = [1, 1]} : vector<16x96xf32> to vector<16x8xf32>
    %292 = vector.extract_strided_slice %266 {offsets = [0, 72], sizes = [16, 8], strides = [1, 1]} : vector<16x96xf32> to vector<16x8xf32>
    %293 = arith.truncf %290 : vector<16x8xf32> to vector<16x8xbf16>
    %294 = arith.truncf %291 : vector<16x8xf32> to vector<16x8xbf16>
    %cst_107 = arith.constant dense<0.000000e+00> : vector<16x16xf32>
    %295 = tpu.matmul %293, %294, %cst_107 {dimension_numbers = #tpu.dot_dimension_numbers<[1], [1], [0], [0], [0, 0, 1, 0], [], []>} : vector<16x8xbf16>, vector<16x8xbf16>, vector<16x16xf32> -> vector<16x16xf32>
    %cst_108 = arith.constant dense<0xFF800000> : vector<16xf32>
    %296 = vector.multi_reduction <maximumf>, %295, %cst_108 [1] : vector<16x16xf32> to vector<16xf32>
    %297 = vector.shape_cast %296 : vector<16xf32> to vector<16x1xf32>
    %298 = vector.broadcast %297 : vector<16x1xf32> to vector<16x16xf32>
    %299 = arith.subf %295, %298 : vector<16x16xf32>
    %300 = math.exp %299 : vector<16x16xf32>
    %cst_109 = arith.constant dense<0.000000e+00> : vector<16xf32>
    %301 = vector.multi_reduction <add>, %300, %cst_109 [1] : vector<16x16xf32> to vector<16xf32>
    %302 = vector.shape_cast %301 : vector<16xf32> to vector<16x1xf32>
    %303 = vector.broadcast %302 : vector<16x1xf32> to vector<16x16xf32>
    %304 = arith.divf %300, %303 : vector<16x16xf32>
    %305 = arith.truncf %304 : vector<16x16xf32> to vector<16x16xbf16>
    %306 = arith.truncf %292 : vector<16x8xf32> to vector<16x8xbf16>
    %cst_110 = arith.constant dense<0.000000e+00> : vector<16x8xf32>
    %307 = tpu.matmul %305, %306, %cst_110 {dimension_numbers = #tpu.dot_dimension_numbers<[1], [0], [0], [1], [0, 0, 1, 1], [], []>} : vector<16x16xbf16>, vector<16x8xbf16>, vector<16x8xf32> -> vector<16x8xf32>
    %c8_111 = arith.constant 8 : index
    %c96_112 = arith.constant 96 : index
    %308 = vector.load %arg5[%c8_111, %c96_112] : memref<32x256xbf16, #tpu.memory_space<vmem>>, vector<8x32xbf16>
    %309 = arith.truncf %307 : vector<16x8xf32> to vector<16x8xbf16>
    %cst_113 = arith.constant dense<0.000000e+00> : vector<16x32xf32>
    %310 = tpu.matmul %309, %308, %cst_113 {dimension_numbers = #tpu.dot_dimension_numbers<[1], [0], [0], [1], [0, 0, 1, 1], [], []>} : vector<16x8xbf16>, vector<8x32xbf16>, vector<16x32xf32> -> vector<16x32xf32>
    %311 = arith.addf %289, %310 : vector<16x32xf32>
    %312 = vector.extract_strided_slice %266 {offsets = [0, 16], sizes = [16, 8], strides = [1, 1]} : vector<16x96xf32> to vector<16x8xf32>
    %313 = vector.extract_strided_slice %266 {offsets = [0, 48], sizes = [16, 8], strides = [1, 1]} : vector<16x96xf32> to vector<16x8xf32>
    %314 = vector.extract_strided_slice %266 {offsets = [0, 80], sizes = [16, 8], strides = [1, 1]} : vector<16x96xf32> to vector<16x8xf32>
    %315 = arith.truncf %312 : vector<16x8xf32> to vector<16x8xbf16>
    %316 = arith.truncf %313 : vector<16x8xf32> to vector<16x8xbf16>
    %cst_114 = arith.constant dense<0.000000e+00> : vector<16x16xf32>
    %317 = tpu.matmul %315, %316, %cst_114 {dimension_numbers = #tpu.dot_dimension_numbers<[1], [1], [0], [0], [0, 0, 1, 0], [], []>} : vector<16x8xbf16>, vector<16x8xbf16>, vector<16x16xf32> -> vector<16x16xf32>
    %cst_115 = arith.constant dense<0xFF800000> : vector<16xf32>
    %318 = vector.multi_reduction <maximumf>, %317, %cst_115 [1] : vector<16x16xf32> to vector<16xf32>
    %319 = vector.shape_cast %318 : vector<16xf32> to vector<16x1xf32>
    %320 = vector.broadcast %319 : vector<16x1xf32> to vector<16x16xf32>
    %321 = arith.subf %317, %320 : vector<16x16xf32>
    %322 = math.exp %321 : vector<16x16xf32>
    %cst_116 = arith.constant dense<0.000000e+00> : vector<16xf32>
    %323 = vector.multi_reduction <add>, %322, %cst_116 [1] : vector<16x16xf32> to vector<16xf32>
    %324 = vector.shape_cast %323 : vector<16xf32> to vector<16x1xf32>
    %325 = vector.broadcast %324 : vector<16x1xf32> to vector<16x16xf32>
    %326 = arith.divf %322, %325 : vector<16x16xf32>
    %327 = arith.truncf %326 : vector<16x16xf32> to vector<16x16xbf16>
    %328 = arith.truncf %314 : vector<16x8xf32> to vector<16x8xbf16>
    %cst_117 = arith.constant dense<0.000000e+00> : vector<16x8xf32>
    %329 = tpu.matmul %327, %328, %cst_117 {dimension_numbers = #tpu.dot_dimension_numbers<[1], [0], [0], [1], [0, 0, 1, 1], [], []>} : vector<16x16xbf16>, vector<16x8xbf16>, vector<16x8xf32> -> vector<16x8xf32>
    %c16_118 = arith.constant 16 : index
    %c96_119 = arith.constant 96 : index
    %330 = vector.load %arg5[%c16_118, %c96_119] : memref<32x256xbf16, #tpu.memory_space<vmem>>, vector<8x32xbf16>
    %331 = arith.truncf %329 : vector<16x8xf32> to vector<16x8xbf16>
    %cst_120 = arith.constant dense<0.000000e+00> : vector<16x32xf32>
    %332 = tpu.matmul %331, %330, %cst_120 {dimension_numbers = #tpu.dot_dimension_numbers<[1], [0], [0], [1], [0, 0, 1, 1], [], []>} : vector<16x8xbf16>, vector<8x32xbf16>, vector<16x32xf32> -> vector<16x32xf32>
    %333 = arith.addf %311, %332 : vector<16x32xf32>
    %334 = vector.extract_strided_slice %266 {offsets = [0, 24], sizes = [16, 8], strides = [1, 1]} : vector<16x96xf32> to vector<16x8xf32>
    %335 = vector.extract_strided_slice %266 {offsets = [0, 56], sizes = [16, 8], strides = [1, 1]} : vector<16x96xf32> to vector<16x8xf32>
    %336 = vector.extract_strided_slice %266 {offsets = [0, 88], sizes = [16, 8], strides = [1, 1]} : vector<16x96xf32> to vector<16x8xf32>
    %337 = arith.truncf %334 : vector<16x8xf32> to vector<16x8xbf16>
    %338 = arith.truncf %335 : vector<16x8xf32> to vector<16x8xbf16>
    %cst_121 = arith.constant dense<0.000000e+00> : vector<16x16xf32>
    %339 = tpu.matmul %337, %338, %cst_121 {dimension_numbers = #tpu.dot_dimension_numbers<[1], [1], [0], [0], [0, 0, 1, 0], [], []>} : vector<16x8xbf16>, vector<16x8xbf16>, vector<16x16xf32> -> vector<16x16xf32>
    %cst_122 = arith.constant dense<0xFF800000> : vector<16xf32>
    %340 = vector.multi_reduction <maximumf>, %339, %cst_122 [1] : vector<16x16xf32> to vector<16xf32>
    %341 = vector.shape_cast %340 : vector<16xf32> to vector<16x1xf32>
    %342 = vector.broadcast %341 : vector<16x1xf32> to vector<16x16xf32>
    %343 = arith.subf %339, %342 : vector<16x16xf32>
    %344 = math.exp %343 : vector<16x16xf32>
    %cst_123 = arith.constant dense<0.000000e+00> : vector<16xf32>
    %345 = vector.multi_reduction <add>, %344, %cst_123 [1] : vector<16x16xf32> to vector<16xf32>
    %346 = vector.shape_cast %345 : vector<16xf32> to vector<16x1xf32>
    %347 = vector.broadcast %346 : vector<16x1xf32> to vector<16x16xf32>
    %348 = arith.divf %344, %347 : vector<16x16xf32>
    %349 = arith.truncf %348 : vector<16x16xf32> to vector<16x16xbf16>
    %350 = arith.truncf %336 : vector<16x8xf32> to vector<16x8xbf16>
    %cst_124 = arith.constant dense<0.000000e+00> : vector<16x8xf32>
    %351 = tpu.matmul %349, %350, %cst_124 {dimension_numbers = #tpu.dot_dimension_numbers<[1], [0], [0], [1], [0, 0, 1, 1], [], []>} : vector<16x16xbf16>, vector<16x8xbf16>, vector<16x8xf32> -> vector<16x8xf32>
    %c24_125 = arith.constant 24 : index
    %c96_126 = arith.constant 96 : index
    %352 = vector.load %arg5[%c24_125, %c96_126] : memref<32x256xbf16, #tpu.memory_space<vmem>>, vector<8x32xbf16>
    %353 = arith.truncf %351 : vector<16x8xf32> to vector<16x8xbf16>
    %cst_127 = arith.constant dense<0.000000e+00> : vector<16x32xf32>
    %354 = tpu.matmul %353, %352, %cst_127 {dimension_numbers = #tpu.dot_dimension_numbers<[1], [0], [0], [1], [0, 0, 1, 1], [], []>} : vector<16x8xbf16>, vector<8x32xbf16>, vector<16x32xf32> -> vector<16x32xf32>
    %355 = arith.addf %333, %354 : vector<16x32xf32>
    %c4_128 = arith.constant 4 : index
    %c0_129 = arith.constant 0 : index
    %356 = vector.load %arg7[%c4_128, %c0_129] : memref<14x128xf32, #tpu.memory_space<vmem>>, vector<1x32xf32>
    %357 = vector.broadcast %356 : vector<1x32xf32> to vector<16x32xf32>
    %358 = arith.addf %355, %357 : vector<16x32xf32>
    %359 = arith.addf %260, %358 : vector<16x32xf32>
    %c7_130 = arith.constant 7 : index
    %c0_131 = arith.constant 0 : index
    %360 = vector.load %arg7[%c7_130, %c0_131] : memref<14x128xf32, #tpu.memory_space<vmem>>, vector<1x32xf32>
    %c8_132 = arith.constant 8 : index
    %c0_133 = arith.constant 0 : index
    %361 = vector.load %arg7[%c8_132, %c0_133] : memref<14x128xf32, #tpu.memory_space<vmem>>, vector<1x32xf32>
    %cst_134 = arith.constant dense<0.000000e+00> : vector<16xf32>
    %362 = vector.multi_reduction <add>, %359, %cst_134 [1] : vector<16x32xf32> to vector<16xf32>
    %363 = vector.shape_cast %362 : vector<16xf32> to vector<16x1xf32>
    %cst_135 = arith.constant 3.200000e+01 : f32
    %364 = vector.broadcast %cst_135 : f32 to vector<16x1xf32>
    %365 = arith.divf %363, %364 : vector<16x1xf32>
    %366 = vector.broadcast %365 : vector<16x1xf32> to vector<16x32xf32>
    %367 = arith.subf %359, %366 : vector<16x32xf32>
    %368 = arith.mulf %367, %367 : vector<16x32xf32>
    %cst_136 = arith.constant dense<0.000000e+00> : vector<16xf32>
    %369 = vector.multi_reduction <add>, %368, %cst_136 [1] : vector<16x32xf32> to vector<16xf32>
    %370 = vector.shape_cast %369 : vector<16xf32> to vector<16x1xf32>
    %cst_137 = arith.constant 3.200000e+01 : f32
    %371 = vector.broadcast %cst_137 : f32 to vector<16x1xf32>
    %372 = arith.divf %370, %371 : vector<16x1xf32>
    %cst_138 = arith.constant 9.99999974E-6 : f32
    %373 = vector.broadcast %cst_138 : f32 to vector<16x1xf32>
    %374 = arith.addf %372, %373 : vector<16x1xf32>
    %375 = math.rsqrt %374 : vector<16x1xf32>
    %376 = vector.broadcast %375 : vector<16x1xf32> to vector<16x32xf32>
    %377 = arith.mulf %367, %376 : vector<16x32xf32>
    %378 = vector.broadcast %360 : vector<1x32xf32> to vector<16x32xf32>
    %379 = arith.mulf %377, %378 : vector<16x32xf32>
    %380 = vector.broadcast %361 : vector<1x32xf32> to vector<16x32xf32>
    %381 = arith.addf %379, %380 : vector<16x32xf32>
    %c0_139 = arith.constant 0 : index
    %c128_140 = arith.constant 128 : index
    %382 = vector.load %arg5[%c0_139, %c128_140] : memref<32x256xbf16, #tpu.memory_space<vmem>>, vector<32x128xbf16>
    %383 = arith.truncf %381 : vector<16x32xf32> to vector<16x32xbf16>
    %cst_141 = arith.constant dense<0.000000e+00> : vector<16x128xf32>
    %384 = tpu.matmul %383, %382, %cst_141 {dimension_numbers = #tpu.dot_dimension_numbers<[1], [0], [0], [1], [0, 0, 1, 1], [], []>} : vector<16x32xbf16>, vector<32x128xbf16>, vector<16x128xf32> -> vector<16x128xf32>
    %c5_142 = arith.constant 5 : index
    %c0_143 = arith.constant 0 : index
    %385 = vector.load %arg7[%c5_142, %c0_143] : memref<14x128xf32, #tpu.memory_space<vmem>>, vector<1x128xf32>
    %386 = vector.broadcast %385 : vector<1x128xf32> to vector<16x128xf32>
    %387 = arith.addf %384, %386 : vector<16x128xf32>
    %cst_144 = arith.constant 0.000000e+00 : f32
    %388 = vector.broadcast %cst_144 : f32 to vector<16x128xf32>
    %389 = arith.maximumf %387, %388 : vector<16x128xf32>
    %c32 = arith.constant 32 : index
    %c0_145 = arith.constant 0 : index
    %390 = vector.load %arg6[%c32, %c0_145] : memref<192x32xbf16, #tpu.memory_space<vmem>>, vector<128x32xbf16>
    %391 = arith.truncf %389 : vector<16x128xf32> to vector<16x128xbf16>
    %cst_146 = arith.constant dense<0.000000e+00> : vector<16x32xf32>
    %392 = tpu.matmul %391, %390, %cst_146 {dimension_numbers = #tpu.dot_dimension_numbers<[1], [0], [0], [1], [0, 0, 1, 1], [], []>} : vector<16x128xbf16>, vector<128x32xbf16>, vector<16x32xf32> -> vector<16x32xf32>
    %c6_147 = arith.constant 6 : index
    %c0_148 = arith.constant 0 : index
    %393 = vector.load %arg7[%c6_147, %c0_148] : memref<14x128xf32, #tpu.memory_space<vmem>>, vector<1x32xf32>
    %394 = vector.broadcast %393 : vector<1x32xf32> to vector<16x32xf32>
    %395 = arith.addf %392, %394 : vector<16x32xf32>
    %396 = arith.addf %381, %395 : vector<16x32xf32>
    %c9_149 = arith.constant 9 : index
    %c0_150 = arith.constant 0 : index
    %397 = vector.load %arg7[%c9_149, %c0_150] : memref<14x128xf32, #tpu.memory_space<vmem>>, vector<1x32xf32>
    %c10_151 = arith.constant 10 : index
    %c0_152 = arith.constant 0 : index
    %398 = vector.load %arg7[%c10_151, %c0_152] : memref<14x128xf32, #tpu.memory_space<vmem>>, vector<1x32xf32>
    %cst_153 = arith.constant dense<0.000000e+00> : vector<16xf32>
    %399 = vector.multi_reduction <add>, %396, %cst_153 [1] : vector<16x32xf32> to vector<16xf32>
    %400 = vector.shape_cast %399 : vector<16xf32> to vector<16x1xf32>
    %cst_154 = arith.constant 3.200000e+01 : f32
    %401 = vector.broadcast %cst_154 : f32 to vector<16x1xf32>
    %402 = arith.divf %400, %401 : vector<16x1xf32>
    %403 = vector.broadcast %402 : vector<16x1xf32> to vector<16x32xf32>
    %404 = arith.subf %396, %403 : vector<16x32xf32>
    %405 = arith.mulf %404, %404 : vector<16x32xf32>
    %cst_155 = arith.constant dense<0.000000e+00> : vector<16xf32>
    %406 = vector.multi_reduction <add>, %405, %cst_155 [1] : vector<16x32xf32> to vector<16xf32>
    %407 = vector.shape_cast %406 : vector<16xf32> to vector<16x1xf32>
    %cst_156 = arith.constant 3.200000e+01 : f32
    %408 = vector.broadcast %cst_156 : f32 to vector<16x1xf32>
    %409 = arith.divf %407, %408 : vector<16x1xf32>
    %cst_157 = arith.constant 9.99999974E-6 : f32
    %410 = vector.broadcast %cst_157 : f32 to vector<16x1xf32>
    %411 = arith.addf %409, %410 : vector<16x1xf32>
    %412 = math.rsqrt %411 : vector<16x1xf32>
    %413 = vector.broadcast %412 : vector<16x1xf32> to vector<16x32xf32>
    %414 = arith.mulf %404, %413 : vector<16x32xf32>
    %415 = vector.broadcast %397 : vector<1x32xf32> to vector<16x32xf32>
    %416 = arith.mulf %414, %415 : vector<16x32xf32>
    %417 = vector.broadcast %398 : vector<1x32xf32> to vector<16x32xf32>
    %418 = arith.addf %416, %417 : vector<16x32xf32>
    %c160 = arith.constant 160 : index
    %c0_158 = arith.constant 0 : index
    %419 = vector.load %arg6[%c160, %c0_158] : memref<192x32xbf16, #tpu.memory_space<vmem>>, vector<32x32xbf16>
    %420 = arith.truncf %418 : vector<16x32xf32> to vector<16x32xbf16>
    %cst_159 = arith.constant dense<0.000000e+00> : vector<16x32xf32>
    %421 = tpu.matmul %420, %419, %cst_159 {dimension_numbers = #tpu.dot_dimension_numbers<[1], [0], [0], [1], [0, 0, 1, 1], [], []>} : vector<16x32xbf16>, vector<32x32xbf16>, vector<16x32xf32> -> vector<16x32xf32>
    %c11_160 = arith.constant 11 : index
    %c0_161 = arith.constant 0 : index
    %422 = vector.load %arg7[%c11_160, %c0_161] : memref<14x128xf32, #tpu.memory_space<vmem>>, vector<1x32xf32>
    %423 = vector.broadcast %422 : vector<1x32xf32> to vector<16x32xf32>
    %424 = arith.addf %421, %423 : vector<16x32xf32>
    %cst_162 = arith.constant 0.000000e+00 : f32
    %425 = vector.broadcast %cst_162 : f32 to vector<16x32xf32>
    %426 = arith.maximumf %424, %425 : vector<16x32xf32>
    %c12_163 = arith.constant 12 : index
    %c0_164 = arith.constant 0 : index
    %427 = vector.load %arg7[%c12_163, %c0_164] : memref<14x128xf32, #tpu.memory_space<vmem>>, vector<1x32xf32>
    %c13_165 = arith.constant 13 : index
    %c0_166 = arith.constant 0 : index
    %428 = vector.load %arg7[%c13_165, %c0_166] : memref<14x128xf32, #tpu.memory_space<vmem>>, vector<1x32xf32>
    %cst_167 = arith.constant dense<0.000000e+00> : vector<16xf32>
    %429 = vector.multi_reduction <add>, %426, %cst_167 [1] : vector<16x32xf32> to vector<16xf32>
    %430 = vector.shape_cast %429 : vector<16xf32> to vector<16x1xf32>
    %cst_168 = arith.constant 3.200000e+01 : f32
    %431 = vector.broadcast %cst_168 : f32 to vector<16x1xf32>
    %432 = arith.divf %430, %431 : vector<16x1xf32>
    %433 = vector.broadcast %432 : vector<16x1xf32> to vector<16x32xf32>
    %434 = arith.subf %426, %433 : vector<16x32xf32>
    %435 = arith.mulf %434, %434 : vector<16x32xf32>
    %cst_169 = arith.constant dense<0.000000e+00> : vector<16xf32>
    %436 = vector.multi_reduction <add>, %435, %cst_169 [1] : vector<16x32xf32> to vector<16xf32>
    %437 = vector.shape_cast %436 : vector<16xf32> to vector<16x1xf32>
    %cst_170 = arith.constant 3.200000e+01 : f32
    %438 = vector.broadcast %cst_170 : f32 to vector<16x1xf32>
    %439 = arith.divf %437, %438 : vector<16x1xf32>
    %cst_171 = arith.constant 9.99999974E-6 : f32
    %440 = vector.broadcast %cst_171 : f32 to vector<16x1xf32>
    %441 = arith.addf %439, %440 : vector<16x1xf32>
    %442 = math.rsqrt %441 : vector<16x1xf32>
    %443 = vector.broadcast %442 : vector<16x1xf32> to vector<16x32xf32>
    %444 = arith.mulf %434, %443 : vector<16x32xf32>
    %445 = vector.broadcast %427 : vector<1x32xf32> to vector<16x32xf32>
    %446 = arith.mulf %444, %445 : vector<16x32xf32>
    %447 = vector.broadcast %428 : vector<1x32xf32> to vector<16x32xf32>
    %448 = arith.addf %446, %447 : vector<16x32xf32>
    %449 = arith.addf %230, %448 : vector<16x32xf32>
    %c0_172 = arith.constant 0 : index
    %c0_173 = arith.constant 0 : index
    %450 = vector.load %arg8[%c0_172, %c0_173] : memref<33x128xf32, #tpu.memory_space<vmem>>, vector<32x128xf32>
    %451 = arith.truncf %449 : vector<16x32xf32> to vector<16x32xbf16>
    %452 = arith.truncf %450 : vector<32x128xf32> to vector<32x128xbf16>
    %cst_174 = arith.constant dense<0.000000e+00> : vector<16x128xf32>
    %453 = tpu.matmul %451, %452, %cst_174 {dimension_numbers = #tpu.dot_dimension_numbers<[1], [0], [0], [1], [0, 0, 1, 1], [], []>} : vector<16x32xbf16>, vector<32x128xbf16>, vector<16x128xf32> -> vector<16x128xf32>
    %c32_175 = arith.constant 32 : index
    %c0_176 = arith.constant 0 : index
    %454 = vector.load %arg8[%c32_175, %c0_176] : memref<33x128xf32, #tpu.memory_space<vmem>>, vector<1x128xf32>
    %455 = vector.broadcast %454 : vector<1x128xf32> to vector<16x128xf32>
    %456 = arith.addf %453, %455 : vector<16x128xf32>
    %c0_177 = arith.constant 0 : index
    %c0_178 = arith.constant 0 : index
    %c0_179 = arith.constant 0 : index
    %457 = vector.load %arg9[%c0_177, %c0_178, %c0_179] : memref<1x16x128xf32, #tpu.memory_space<vmem>>, vector<1x16x128xf32>
    %458 = vector.shape_cast %457 : vector<1x16x128xf32> to vector<16x128xf32>
    %459 = vector.shape_cast %456 : vector<16x128xf32> to vector<1x16x128xf32>
    tpu.vector_store %arg9[%c0_177, %c0_178, %c0_179], %459 {strides = array<i32>} : memref<1x16x128xf32, #tpu.memory_space<vmem>>, vector<1x16x128xf32>,
    return
  }
  func.func @transform_0(%arg0: i32) -> (i32, i32, i32) {
    %c0_i32 = arith.constant 0 : i32
    %c0_i32_0 = arith.constant 0 : i32
    %c0_i32_1 = arith.constant 0 : i32
    return %arg0, %c0_i32, %c0_i32_0 : i32, i32, i32
  }
  func.func @transform_1(%arg0: i32) -> (i32, i32) {
    %c0_i32 = arith.constant 0 : i32
    %c0_i32_0 = arith.constant 0 : i32
    %c0_i32_1 = arith.constant 0 : i32
    return %c0_i32, %c0_i32_0 : i32, i32
  }
  func.func @transform_2(%arg0: i32) -> (i32, i32) {
    %c0_i32 = arith.constant 0 : i32
    %c0_i32_0 = arith.constant 0 : i32
    %c0_i32_1 = arith.constant 0 : i32
    return %c0_i32, %c0_i32_0 : i32, i32
  }
  func.func @transform_3(%arg0: i32) -> (i32, i32) {
    %c0_i32 = arith.constant 0 : i32
    %c0_i32_0 = arith.constant 0 : i32
    %c0_i32_1 = arith.constant 0 : i32
    return %c0_i32, %c0_i32_0 : i32, i32
  }
  func.func @transform_4(%arg0: i32) -> (i32, i32) {
    %c0_i32 = arith.constant 0 : i32
    %c0_i32_0 = arith.constant 0 : i32
    %c0_i32_1 = arith.constant 0 : i32
    return %c0_i32, %c0_i32_0 : i32, i32
  }
  func.func @transform_5(%arg0: i32) -> (i32, i32) {
    %c0_i32 = arith.constant 0 : i32
    %c0_i32_0 = arith.constant 0 : i32
    %c0_i32_1 = arith.constant 0 : i32
    return %c0_i32, %c0_i32_0 : i32, i32
  }
  func.func @transform_6(%arg0: i32) -> (i32, i32) {
    %c0_i32 = arith.constant 0 : i32
    %c0_i32_0 = arith.constant 0 : i32
    %c0_i32_1 = arith.constant 0 : i32
    return %c0_i32, %c0_i32_0 : i32, i32
  }
  func.func @transform_7(%arg0: i32) -> (i32, i32) {
    %c0_i32 = arith.constant 0 : i32
    %c0_i32_0 = arith.constant 0 : i32
    %c0_i32_1 = arith.constant 0 : i32
    return %c0_i32, %c0_i32_0 : i32, i32
  }
  func.func @transform_8(%arg0: i32) -> (i32, i32, i32) {
    %c0_i32 = arith.constant 0 : i32
    %c0_i32_0 = arith.constant 0 : i32
    %c0_i32_1 = arith.constant 0 : i32
    return %arg0, %c0_i32, %c0_i32_0 : i32, i32, i32
  }
}

</mosaic_0001>

<llo_original>
// kernel: transformer_decoder_forward.1
$region0: #{transformer_decoder_forward.1}
  #allocation0 [shape = 'u32[]', space=smem, size = 0x4, offset = 0x4, fixed_abs, tag = 'smem constant byte address 0x4 - core index']
  #allocation1 [shape = 'u32[72,128]{1,0:T(1,128)}', space=vmem, size = 0x9000, scoped, tag = 'internal scratch']
  %s0 = inlined_call_operand.vmem [shape: f32[2,16,32], index: 0, kind: input, shape index: {}]
  %s1 = inlined_call_operand.vmem [shape: bf16[32,256], index: 1, kind: input, shape index: {}]
  %s2 = inlined_call_operand.vmem [shape: bf16[320,32], index: 2, kind: input, shape index: {}]
  %s3 = inlined_call_operand.vmem [shape: f32[14,128], index: 3, kind: input, shape index: {}]
  %s4 = inlined_call_operand.vmem [shape: bf16[32,256], index: 4, kind: input, shape index: {}]
  %s5 = inlined_call_operand.vmem [shape: bf16[192,32], index: 5, kind: input, shape index: {}]
  %s6 = inlined_call_operand.vmem [shape: f32[14,128], index: 6, kind: input, shape index: {}]
  %s7 = inlined_call_operand.vmem [shape: f32[33,128], index: 7, kind: input, shape index: {}]
  %s8 = inlined_call_operand.vmem [shape: f32[2,16,128], index: 8, kind: output, shape index: {}]
  %s9 = sld [smem:[#allocation0]]
  $region65: #{transformer_decoder_forward.1} parent=0
    _
  %s11 = ssub.s32 1, %s9
  %s12 = scalar_select 0, %s11, %s9
  loop: start=0, step=1, limit=4
  $region2: #{transformer_decoder_forward.1} parent=0 // loop_pre_header
    _
  $region3: #{transformer_decoder_forward.1} parent=0 // loop_header
    %s14 = sphi 0, %s18
    %p15 = scmp.ge.s32.totalorder %s14, 4
    %s24 = sphi 0, %s26
    %s27 = sphi 0, %s24
    %s28 = sphi 0, %s27
    %s44 = sphi 0, %s28
    %s48 = sphi 0, %s48
    %s50 = sphi 0, %s48
    %s51 = sphi 0, %s50
    %s65 = sphi 0, %s51
    %s69 = sphi 0, %s69
    %s71 = sphi 0, %s69
    %s72 = sphi 0, %s71
    %s86 = sphi 0, %s72
    %s90 = sphi 0, %s90
    %s92 = sphi 0, %s90
    %s93 = sphi 0, %s92
    %s107 = sphi 0, %s93
    %s111 = sphi 0, %s111
    %s113 = sphi 0, %s111
    %s114 = sphi 0, %s113
    %s128 = sphi 0, %s114
    %s132 = sphi 0, %s132
    %s134 = sphi 0, %s132
    %s135 = sphi 0, %s134
    %s149 = sphi 0, %s135
    %s153 = sphi 0, %s153
    %s155 = sphi 0, %s153
    %s156 = sphi 0, %s155
    %s170 = sphi 0, %s156
    %s174 = sphi 0, %s174
    %s176 = sphi 0, %s174
    %s177 = sphi 0, %s176
    %s191 = sphi 0, %s177
    %s197 = sphi 0, %s199
    %s200 = sphi 0, %s197
    %s201 = sphi 0, %s200
    %s217 = sphi 0, %s201
  $region4: #{transformer_decoder_forward.1} parent=0 // loop_header_branch
    %17 = sbr.rel (%p15) target = $region8
  $region5: #{transformer_decoder_forward.1} parent=0 // loop_body
    %s19 = ssub.s32 %s14, 1
    %s20 = ssub.s32 %s14, 2
    %s21 = sadd.s32 %s14, 1
    %s22 = ssub.s32 %s14, %s21
    %p23 = scmp.eq.s32.totalorder %s22, 0
    %s25 = sadd.s32 %s24, 1
    %s26 = scalar_select %p23, %s24, %s25
    %p29 = pneg %p23
    %p30 = scmp.eq.s32.totalorder %s14, 1
    %p31 = por %p29, %p30
    %p32 = scmp.ne.s32.totalorder %s24, %s27
    %p33 = scmp.eq.s32.totalorder %s14, 0
    %p34 = por %p32, %p33
    %p35 = scmp.ne.s32.totalorder %s24, %s27
    %p36 = scmp.eq.s32.totalorder %s19, 1
    %p37 = por %p35, %p36
    %p38 = scmp.ne.s32.totalorder %s27, %s28
    %p39 = scmp.eq.s32.totalorder %s19, 0
    %p40 = por %p38, %p39
    %p41 = scmp.ne.s32.totalorder %s27, %s28
    %p42 = scmp.eq.s32.totalorder %s20, 1
    %p43 = por %p41, %p42
    %p45 = scmp.ne.s32.totalorder %s28, %s44
    %p46 = scmp.eq.s32.totalorder %s20, 0
    %p47 = por %p45, %p46
    %s49 = sadd.s32 %s48, 1
    %p52 = scmp.eq.s32.totalorder %s14, 1
    %p53 = scmp.ne.s32.totalorder %s48, %s50
    %p54 = scmp.eq.s32.totalorder %s14, 0
    %p55 = por %p53, %p54
    %p56 = scmp.ne.s32.totalorder %s48, %s50
    %p57 = scmp.eq.s32.totalorder %s19, 1
    %p58 = por %p56, %p57
    %p59 = scmp.ne.s32.totalorder %s50, %s51
    %p60 = scmp.eq.s32.totalorder %s19, 0
    %p61 = por %p59, %p60
    %p62 = scmp.ne.s32.totalorder %s50, %s51
    %p63 = scmp.eq.s32.totalorder %s20, 1
    %p64 = por %p62, %p63
    %p66 = scmp.ne.s32.totalorder %s51, %s65
    %p67 = scmp.eq.s32.totalorder %s20, 0
    %p68 = por %p66, %p67
    %s70 = sadd.s32 %s69, 1
    %p73 = scmp.eq.s32.totalorder %s14, 1
    %p74 = scmp.ne.s32.totalorder %s69, %s71
    %p75 = scmp.eq.s32.totalorder %s14, 0
    %p76 = por %p74, %p75
    %p77 = scmp.ne.s32.totalorder %s69, %s71
    %p78 = scmp.eq.s32.totalorder %s19, 1
    %p79 = por %p77, %p78
    %p80 = scmp.ne.s32.totalorder %s71, %s72
    %p81 = scmp.eq.s32.totalorder %s19, 0
    %p82 = por %p80, %p81
    %p83 = scmp.ne.s32.totalorder %s71, %s72
    %p84 = scmp.eq.s32.totalorder %s20, 1
    %p85 = por %p83, %p84
    %p87 = scmp.ne.s32.totalorder %s72, %s86
    %p88 = scmp.eq.s32.totalorder %s20, 0
    %p89 = por %p87, %p88
    %s91 = sadd.s32 %s90, 1
    %p94 = scmp.eq.s32.totalorder %s14, 1
    %p95 = scmp.ne.s32.totalorder %s90, %s92
    %p96 = scmp.eq.s32.totalorder %s14, 0
    %p97 = por %p95, %p96
    %p98 = scmp.ne.s32.totalorder %s90, %s92
    %p99 = scmp.eq.s32.totalorder %s19, 1
    %p100 = por %p98, %p99
    %p101 = scmp.ne.s32.totalorder %s92, %s93
    %p102 = scmp.eq.s32.totalorder %s19, 0
    %p103 = por %p101, %p102
    %p104 = scmp.ne.s32.totalorder %s92, %s93
    %p105 = scmp.eq.s32.totalorder %s20, 1
    %p106 = por %p104, %p105
    %p108 = scmp.ne.s32.totalorder %s93, %s107
    %p109 = scmp.eq.s32.totalorder %s20, 0
    %p110 = por %p108, %p109
    %s112 = sadd.s32 %s111, 1
    %p115 = scmp.eq.s32.totalorder %s14, 1
    %p116 = scmp.ne.s32.totalorder %s111, %s113
    %p117 = scmp.eq.s32.totalorder %s14, 0
    %p118 = por %p116, %p117
    %p119 = scmp.ne.s32.totalorder %s111, %s113
    %p120 = scmp.eq.s32.totalorder %s19, 1
    %p121 = por %p119, %p120
    %p122 = scmp.ne.s32.totalorder %s113, %s114
    %p123 = scmp.eq.s32.totalorder %s19, 0
    %p124 = por %p122, %p123
    %p125 = scmp.ne.s32.totalorder %s113, %s114
    %p126 = scmp.eq.s32.totalorder %s20, 1
    %p127 = por %p125, %p126
    %p129 = scmp.ne.s32.totalorder %s114, %s128
    %p130 = scmp.eq.s32.totalorder %s20, 0
    %p131 = por %p129, %p130
    %s133 = sadd.s32 %s132, 1
    %p136 = scmp.eq.s32.totalorder %s14, 1
    %p137 = scmp.ne.s32.totalorder %s132, %s134
    %p138 = scmp.eq.s32.totalorder %s14, 0
    %p139 = por %p137, %p138
    %p140 = scmp.ne.s32.totalorder %s132, %s134
    %p141 = scmp.eq.s32.totalorder %s19, 1
    %p142 = por %p140, %p141
    %p143 = scmp.ne.s32.totalorder %s134, %s135
    %p144 = scmp.eq.s32.totalorder %s19, 0
    %p145 = por %p143, %p144
    %p146 = scmp.ne.s32.totalorder %s134, %s135
    %p147 = scmp.eq.s32.totalorder %s20, 1
    %p148 = por %p146, %p147
    %p150 = scmp.ne.s32.totalorder %s135, %s149
    %p151 = scmp.eq.s32.totalorder %s20, 0
    %p152 = por %p150, %p151
    %s154 = sadd.s32 %s153, 1
    %p157 = scmp.eq.s32.totalorder %s14, 1
    %p158 = scmp.ne.s32.totalorder %s153, %s155
    %p159 = scmp.eq.s32.totalorder %s14, 0
    %p160 = por %p158, %p159
    %p161 = scmp.ne.s32.totalorder %s153, %s155
    %p162 = scmp.eq.s32.totalorder %s19, 1
    %p163 = por %p161, %p162
    %p164 = scmp.ne.s32.totalorder %s155, %s156
    %p165 = scmp.eq.s32.totalorder %s19, 0
    %p166 = por %p164, %p165
    %p167 = scmp.ne.s32.totalorder %s155, %s156
    %p168 = scmp.eq.s32.totalorder %s20, 1
    %p169 = por %p167, %p168
    %p171 = scmp.ne.s32.totalorder %s156, %s170
    %p172 = scmp.eq.s32.totalorder %s20, 0
    %p173 = por %p171, %p172
    %s175 = sadd.s32 %s174, 1
    %p178 = scmp.eq.s32.totalorder %s14, 1
    %p179 = scmp.ne.s32.totalorder %s174, %s176
    %p180 = scmp.eq.s32.totalorder %s14, 0
    %p181 = por %p179, %p180
    %p182 = scmp.ne.s32.totalorder %s174, %s176
    %p183 = scmp.eq.s32.totalorder %s19, 1
    %p184 = por %p182, %p183
    %p185 = scmp.ne.s32.totalorder %s176, %s177
    %p186 = scmp.eq.s32.totalorder %s19, 0
    %p187 = por %p185, %p186
    %p188 = scmp.ne.s32.totalorder %s176, %s177
    %p189 = scmp.eq.s32.totalorder %s20, 1
    %p190 = por %p188, %p189
    %p192 = scmp.ne.s32.totalorder %s177, %s191
    %p193 = scmp.eq.s32.totalorder %s20, 0
    %p194 = por %p192, %p193
    %s195 = ssub.s32 %s14, %s21
    %p196 = scmp.eq.s32.totalorder %s195, 0
    %s198 = sadd.s32 %s197, 1
    %s199 = scalar_select %p196, %s197, %s198
    %p202 = pneg %p196
    %p203 = scmp.eq.s32.totalorder %s14, 1
    %p204 = por %p202, %p203
    %p205 = scmp.ne.s32.totalorder %s197, %s200
    %p206 = scmp.eq.s32.totalorder %s14, 0
    %p207 = por %p205, %p206
    %p208 = scmp.ne.s32.totalorder %s197, %s200
    %p209 = scmp.eq.s32.totalorder %s19, 1
    %p210 = por %p208, %p209
    %p211 = scmp.ne.s32.totalorder %s200, %s201
    %p212 = scmp.eq.s32.totalorder %s19, 0
    %p213 = por %p211, %p212
    %p214 = scmp.ne.s32.totalorder %s200, %s201
    %p215 = scmp.eq.s32.totalorder %s20, 1
    %p216 = por %p214, %p215
    %p218 = scmp.ne.s32.totalorder %s201, %s217
    %p219 = scmp.eq.s32.totalorder %s20, 0
    %p220 = por %p218, %p219
    %p221 = scmp.le.s32.totalorder 1, %s14
    %p222 = scmp.lt.s32.totalorder %s14, 3
    %p223 = pnand %p221, %p222
    %p224 = pneg %p223
    // Predicated region
    $region9: #{transformer_decoder_forward.1} parent=5 // pred_check
      _
    $region10: #{transformer_decoder_forward.1} parent=5 // pred_check_branch
      %226 = sbr.rel (%p223) target = $region12
    $region11: #{transformer_decoder_forward.1} parent=5 // pred_region
      %s227 = ssub.s32 %s14, 1
      // Predicated region
      $region13: #{transformer_decoder_forward.1} parent=11 // pred_check
        %p228 = pneg %p61
      $region14: #{transformer_decoder_forward.1} parent=11 // pred_check_branch
        %230 = sbr.rel (%p228) target = $region16
      $region15: #{transformer_decoder_forward.1} parent=11 // pred_region
        _
      $region16: #{transformer_decoder_forward.1} parent=11 // pred_fallthru
        _
      // Predicated region
      $region17: #{transformer_decoder_forward.1} parent=11 // pred_check
        %p231 = pneg %p82
      $region18: #{transformer_decoder_forward.1} parent=11 // pred_check_branch
        %233 = sbr.rel (%p231) target = $region20
      $region19: #{transformer_decoder_forward.1} parent=11 // pred_region
        _
      $region20: #{transformer_decoder_forward.1} parent=11 // pred_fallthru
        _
      // Predicated region
      $region21: #{transformer_decoder_forward.1} parent=11 // pred_check
        %p234 = pneg %p103
      $region22: #{transformer_decoder_forward.1} parent=11 // pred_check_branch
        %236 = sbr.rel (%p234) target = $region24
      $region23: #{transformer_decoder_forward.1} parent=11 // pred_region
        _
      $region24: #{transformer_decoder_forward.1} parent=11 // pred_fallthru
        _
      // Predicated region
      $region25: #{transformer_decoder_forward.1} parent=11 // pred_check
        %p237 = pneg %p124
      $region26: #{transformer_decoder_forward.1} parent=11 // pred_check_branch
        %239 = sbr.rel (%p237) target = $region28
      $region27: #{transformer_decoder_forward.1} parent=11 // pred_region
        _
      $region28: #{transformer_decoder_forward.1} parent=11 // pred_fallthru
        _
      // Predicated region
      $region29: #{transformer_decoder_forward.1} parent=11 // pred_check
        %p240 = pneg %p145
      $region30: #{transformer_decoder_forward.1} parent=11 // pred_check_branch
        %242 = sbr.rel (%p240) target = $region32
      $region31: #{transformer_decoder_forward.1} parent=11 // pred_region
        _
      $region32: #{transformer_decoder_forward.1} parent=11 // pred_fallthru
        _
      // Predicated region
      $region33: #{transformer_decoder_forward.1} parent=11 // pred_check
        %p243 = pneg %p166
      $region34: #{transformer_decoder_forward.1} parent=11 // pred_check_branch
        %245 = sbr.rel (%p243) target = $region36
      $region35: #{transformer_decoder_forward.1} parent=11 // pred_region
        _
      $region36: #{transformer_decoder_forward.1} parent=11 // pred_fallthru
        _
      // Predicated region
      $region37: #{transformer_decoder_forward.1} parent=11 // pred_check
        %p246 = pneg %p187
      $region38: #{transformer_decoder_forward.1} parent=11 // pred_check_branch
        %248 = sbr.rel (%p246) target = $region40
      $region39: #{transformer_decoder_forward.1} parent=11 // pred_region
        _
      $region40: #{transformer_decoder_forward.1} parent=11 // pred_fallthru
        _
    $region12: #{transformer_decoder_forward.1} parent=5 // pred_fallthru
      _
    %p249 = scmp.lt.s32.totalorder %s14, 2
    // Predicated region
    $region41: #{transformer_decoder_forward.1} parent=5 // pred_check
      %p250 = pneg %p249
    $region42: #{transformer_decoder_forward.1} parent=5 // pred_check_branch
      %252 = sbr.rel (%p250) target = $region44
    $region43: #{transformer_decoder_forward.1} parent=5 // pred_region
      // Predicated region
      $region45: #{transformer_decoder_forward.1} parent=43 // pred_check
        %p253 = pneg %p34
      $region46: #{transformer_decoder_forward.1} parent=43 // pred_check_branch
        %255 = sbr.rel (%p253) target = $region48
      $region47: #{transformer_decoder_forward.1} parent=43 // pred_region
        %p256 = scmp.lt.s32.totalorder %s14, 1
        %s257 = scalar_select %p256, %s14, 1
        %s258 = smul.addr %s257, 2
        %s259 = smul.addr %s258, 8
        %s260 = scalar_lea.vmem %s0, %s259
      $region48: #{transformer_decoder_forward.1} parent=43 // pred_fallthru
        _
    $region44: #{transformer_decoder_forward.1} parent=5 // pred_fallthru
      _
    %p261 = scmp.le.s32.totalorder 1, %s14
    %p262 = scmp.lt.s32.totalorder %s14, 3
    %p263 = pnand %p261, %p262
    %p264 = pneg %p263
    // Predicated region
    $region49: #{transformer_decoder_forward.1} parent=5 // pred_check
      _
    $region50: #{transformer_decoder_forward.1} parent=5 // pred_check_branch
      %266 = sbr.rel (%p263) target = $region52
    $region51: #{transformer_decoder_forward.1} parent=5 // pred_region
      %s267 = ssub.s32 %s14, 1
      %p268 = scmp.lt.s32.totalorder %s19, 1
      %s269 = scalar_select %p268, %s19, 1
      %s270 = smul.addr %s269, 2
      %s271 = smul.addr %s270, 8
      %s272 = scalar_lea.vmem %s0, %s271
      %p273 = pneg %p40
      %p274 = pneg %p37
      %p275 = pneg %p61
      %p276 = pneg %p58
      %p277 = pneg %p82
      %p278 = pneg %p79
      %p279 = pneg %p103
      %p280 = pneg %p100
      %p281 = pneg %p124
      %p282 = pneg %p121
      %p283 = pneg %p145
      %p284 = pneg %p142
      %p285 = pneg %p166
      %p286 = pneg %p163
      %p287 = pneg %p187
      %p288 = pneg %p184
      %p289 = pneg %p213
      %p290 = pneg %p210
      %p291 = scmp.lt.s32.totalorder %s19, 1
      %s292 = scalar_select %p291, %s19, 1
      %s293 = smul.addr %s292, 2
      %s294 = smul.addr %s293, 8
      %s295 = scalar_lea.vmem %s8, %s294
      %p296 = scmp.lt.s32.totalorder %s19, 1
      %s297 = scalar_select %p296, %s19, 1
      %s298 = smul.addr %s297, 2
      %s299 = smul.addr %s298, 8
      %s300 = scalar_lea.vmem %s0, %s299
      %p301 = scmp.lt.s32.totalorder %s19, 1
      %s302 = scalar_select %p301, %s19, 1
      %s303 = smul.addr %s302, 2
      %s304 = smul.addr %s303, 8
      %s305 = scalar_lea.vmem %s8, %s304
      %v307 = vld [vmem:[%s300] sm:$0xff]
      %v308 = vld [vmem:[%s300 + $0x8] sm:$0xff]
      %vm311 = vcmask 1046528
      %v312 = vrot.slane %v307, 1
      %v313 = vrot.slane %v308, 1
      %v314 = vsel %vm311, %v312, %v313
      %315 = vrot.lane.b32.xlu0 %v314, 32
      %v316 = vpop.permute.xlu0 %315
      %317 = vrot.lane.b32.xlu0 %v313, 32
      %v318 = vpop.permute.xlu0 %317
      %vm321 = vcmask 1045504
      %v322 = vrot.slane %v307, 2
      %v323 = vrot.slane %v308, 2
      %v324 = vsel %vm321, %v322, %v323
      %325 = vrot.lane.b32.xlu0 %v324, 64
      %v326 = vpop.permute.xlu0 %325
      %327 = vrot.lane.b32.xlu0 %v323, 64
      %v328 = vpop.permute.xlu0 %327
      %vm331 = vcmask 261120
      %v332 = vsel %vm331, %v307, %v316
      %v333 = vsel %vm331, %v308, %v318
      %vm334 = vcmask 523264
      %v335 = vsel %vm334, %v332, %v326
      %v336 = vsel %vm334, %v333, %v328
      %v337 = vld [vmem:[%s2] sm:$0xf]
      %v338 = vld [vmem:[%s2 + $0x4] sm:$0xf]
      %v339 = vld [vmem:[%s2 + $0x8] sm:$0xf]
      %v340 = vld [vmem:[%s2 + $0xc] sm:$0xf]
      %v341 = vld [vmem:[%s2 + $0x10] sm:$0xf]
      %v342 = vld [vmem:[%s2 + $0x14] sm:$0xf]
      %v343 = vld [vmem:[%s2 + $0x18] sm:$0xf]
      %v344 = vld [vmem:[%s2 + $0x1c] sm:$0xf]
      %v345 = vld [vmem:[%s2 + $0x20] sm:$0xf]
      %v346 = vld [vmem:[%s2 + $0x24] sm:$0xf]
      %v347 = vld [vmem:[%s2 + $0x28] sm:$0xf]
      %v348 = vld [vmem:[%s2 + $0x2c] sm:$0xf]
      %v349 = vpack.c.bf16 %v336, %v335
      %v350 = vld [vmem:[%s3] sm:$0x1]
      %v351 = vperm.slane %v350, 0
      %v364 = vunpack.c.l.b16 %v337
      %v365 = vunpack.c.l.b16 %v338
      %v366 = vunpack.c.l.b16 %v339
      %v367 = vunpack.c.l.b16 %v340
      %v368 = vunpack.c.l.b16 %v341
      %v369 = vunpack.c.l.b16 %v342
      %v370 = vunpack.c.l.b16 %v343
      %v371 = vunpack.c.l.b16 %v344
      %v372 = vunpack.c.l.b16 %v345
      %v373 = vunpack.c.l.b16 %v346
      %v374 = vunpack.c.l.b16 %v347
      %v375 = vunpack.c.l.b16 %v348
      %v376 = vpack.c.b16 %v365, %v364
      %v377 = vpack.c.b16 %v367, %v366
      %v378 = vpack.c.b16 %v369, %v368
      %v379 = vpack.c.b16 %v371, %v370
      %v380 = vpack.c.b16 %v373, %v372
      %v381 = vpack.c.b16 %v375, %v374
      %vm388 = vcmask 785408
      %v390 = vsel %vm388, %v349, 0
      %392 = vmatpush.bf16.msra.mxu0 0
      %393 = vmatpush.bf16.msra.mxu0 0
      %394 = vmatpush.bf16.msra.mxu0 %v381
      %395 = vmatpush.bf16.msra.mxu0 %v380
      %396 = vmatpush.bf16.msra.mxu0 %v379
      %397 = vmatpush.bf16.msra.mxu0 %v378
      %398 = vmatpush.bf16.msra.mxu0 %v377
      %399 = vmatpush.bf16.msra.mxu0 %v376
      %400 = vmatmul.bf16.gmra.mxu0 %v390
      %v401 = vpop.f32.mrf.mxu0
      %v402 = vadd.f32 %v351, %v401
      %v403 = vpop.f32.mrf.mxu0
      %v404 = vadd.f32 %v351, %v403
      %405 = vdwg.mxu0
      %v406 = vmax.f32 %v402, 0.0
      %v407 = vmax.f32 %v404, 0.0
      %v408 = vld [vmem:[%s3 + $0x1] sm:$0x1]
      %v409 = vld [vmem:[%s3 + $0x2] sm:$0x1]
      %v410 = vsel %vm331, %v406, 0.0
      %411 = vadd.xlane.f32.xlu0 %v410
      %v412 = vpop.xlane.xlu0 %411
      %vm413 = vcmask 259072
      %v414 = vsel %vm413, %v407, 0.0
      %415 = vadd.xlane.f32.xlu0 %v414
      %v416 = vpop.xlane.xlu0 %415
      %v417 = vrcp.pop 32.0
      %v418 = vmul.f32 32.0, %v417
      %v419 = vsub.f32 1.0, %v418
      %v420 = vmul.f32 %v417, %v419
      %v421 = vadd.f32 %v417, %v420
      %vm422 = vweird.f32 %v417
      %v423 = vsel %vm422, %v417, %v421
      %v424 = vmul.f32 %v412, %v423
      %v425 = vmul.f32 %v416, %v423
      %v426 = vsub.f32 %v406, %v424
      %v427 = vsub.f32 %v407, %v425
      %v428 = vmul.f32 %v426, %v426
      %v429 = vmul.f32 %v427, %v427
      %v430 = vsel %vm331, %v428, 0.0
      %431 = vadd.xlane.f32.xlu0 %v430
      %v432 = vpop.xlane.xlu0 %431
      %v433 = vsel %vm413, %v429, 0.0
      %434 = vadd.xlane.f32.xlu0 %v433
      %v435 = vpop.xlane.xlu0 %434
      %v436 = vmul.f32 %v432, %v423
      %v437 = vmul.f32 %v435, %v423
      %v438 = vadd.f32 %v436, 1e-05
      %v439 = vadd.f32 %v437, 1e-05
      %v440 = vrsqrt.pop %v438
      %v441 = vmul.f32 %v440, %v438
      %v442 = vmul.f32 %v441, %v440
      %v443 = vmul.f32 0.5, %v442
      %v444 = vsub.f32 1.5, %v443
      %v445 = vmul.f32 %v440, %v444
      %vm446 = vweird.f32 %v438
      %vm447 = vweird.f32 %v440
      %vm448 = vmor %vm446, %vm447
      %v449 = vsel %vm448, %v440, %v445
      %v450 = vrsqrt.pop %v439
      %v451 = vmul.f32 %v450, %v439
      %v452 = vmul.f32 %v451, %v450
      %v453 = vmul.f32 0.5, %v452
      %v454 = vsub.f32 1.5, %v453
      %v455 = vmul.f32 %v450, %v454
      %vm456 = vweird.f32 %v439
      %vm457 = vweird.f32 %v450
      %vm458 = vmor %vm456, %vm457
      %v459 = vsel %vm458, %v450, %v455
      %v460 = vmul.f32 %v426, %v449
      %v461 = vmul.f32 %v427, %v459
      %v462 = vperm.slane %v408, 0
      %v463 = vmul.f32 %v460, %v462
      %v464 = vmul.f32 %v461, %v462
      %v465 = vperm.slane %v409, 0
      %v466 = vadd.f32 %v463, %v465
      %v467 = vadd.f32 %v464, %v465
      %v468 = vld [vmem:[%s1] sm:$0xf]
      %v469 = vld [vmem:[%s1 + $0x8] sm:$0xf]
      %v470 = vld [vmem:[%s1 + $0x10] sm:$0xf]
      %v471 = vld [vmem:[%s1 + $0x18] sm:$0xf]
      %v472 = vpack.c.bf16 %v467, %v466
      %v473 = vld [vmem:[%s3 + $0x3] sm:$0x1]
      %v474 = vperm.slane %v473, 0
      %v479 = vunpack.c.l.b16 %v468
      %v480 = vunpack.c.l.b16 %v469
      %v481 = vunpack.c.l.b16 %v470
      %v482 = vunpack.c.l.b16 %v471
      %v483 = vpack.c.b16 %v480, %v479
      %v484 = vpack.c.b16 %v482, %v481
      %v488 = vsel %vm331, %v472, 0
      %490 = vmatpush.bf16.msra.mxu0 0
      %491 = vmatpush.bf16.msra.mxu0 0
      %492 = vmatpush.bf16.msra.mxu0 0
      %493 = vmatpush.bf16.msra.mxu0 0
      %494 = vmatpush.bf16.msra.mxu0 0
      %495 = vmatpush.bf16.msra.mxu0 0
      %496 = vmatpush.bf16.msra.mxu0 %v484
      %497 = vmatpush.bf16.msra.mxu0 %v483
      %498 = vmatmul.bf16.gmra.mxu0 %v488
      %v499 = vpop.f32.mrf.mxu0
      %v500 = vadd.f32 %v474, %v499
      %v501 = vpop.f32.mrf.mxu0
      %v502 = vadd.f32 %v474, %v501
      %503 = vdwg.mxu0
      %v504 = vpack.c.bf16 %v502, %v500
      %506 = vrot.lane.b32.xlu0 %v504, 96
      %v507 = vpop.permute.xlu0 %506
      %vm508 = vcmask 64512
      %v510 = vsel %vm508, %v504, 0
      %v513 = vsel %vm508, %v507, 0
      %515 = vmatpush.bf16.xpose.msra.mxu0 0
      %516 = vmatpush.bf16.xpose.msra.mxu0 0
      %517 = vmatpush.bf16.xpose.msra.mxu0 0
      %518 = vmatpush.bf16.xpose.msra.mxu0 0
      %519 = vmatpush.bf16.xpose.msra.mxu0 0
      %520 = vmatpush.bf16.xpose.msra.mxu0 0
      %521 = vmatpush.bf16.xpose.msra.mxu0 0
      %522 = vmatpush.bf16.xpose.msra.mxu0 %v513
      %523 = vmatmul.bf16.gmra.mxu0 %v510
      %v524 = vpop.f32.mrf.mxu0
      %v525 = vadd.f32 0.0, %v524
      %v526 = vpop.f32.mrf.mxu0
      %v527 = vadd.f32 0.0, %v526
      %528 = vdwg.mxu0
      %vm529 = vcmask 113664
      %v530 = vsel %vm529, %v525, -inf
      %531 = vmax.xlane.f32.xlu0 %v530
      %v532 = vpop.xlane.xlu0 %531
      %vm533 = vcmask 111616
      %v534 = vsel %vm533, %v527, -inf
      %535 = vmax.xlane.f32.xlu0 %v534
      %v536 = vpop.xlane.xlu0 %535
      %v537 = vsub.f32 %v525, %v532
      %v538 = vsub.f32 %v527, %v536
      %v539 = vmul.f32 %v537, 1.442695
      %v540 = vpow.pop %v539
      %v541 = vmul.f32 %v538, 1.442695
      %v542 = vpow.pop %v541
      %v543 = vsel %vm529, %v540, 0.0
      %544 = vadd.xlane.f32.xlu0 %v543
      %v545 = vpop.xlane.xlu0 %544
      %v546 = vsel %vm533, %v542, 0.0
      %547 = vadd.xlane.f32.xlu0 %v546
      %v548 = vpop.xlane.xlu0 %547
      %v549 = vrcp.pop %v545
      %v550 = vmul.f32 %v545, %v549
      %v551 = vsub.f32 1.0, %v550
      %v552 = vmul.f32 %v549, %v551
      %v553 = vadd.f32 %v549, %v552
      %vm554 = vweird.f32 %v545
      %vm555 = vweird.f32 %v549
      %vm556 = vmor %vm554, %vm555
      %v557 = vsel %vm556, %v549, %v553
      %v558 = vand.u32 2147483647, %v545
      %vm559 = vcmp.eq.f32.partialorder %v558, 8.507059e+37
      %v560 = vand.u32 %v545, 2147483648
      %v561 = vor.u32 1.1754944e-38, %v560
      %v562 = vsel %vm559, %v561, %v557
      %v563 = vmul.f32 %v540, %v562
      %v564 = vrcp.pop %v548
      %v565 = vmul.f32 %v548, %v564
      %v566 = vsub.f32 1.0, %v565
      %v567 = vmul.f32 %v564, %v566
      %v568 = vadd.f32 %v564, %v567
      %vm569 = vweird.f32 %v548
      %vm570 = vweird.f32 %v564
      %vm571 = vmor %vm569, %vm570
      %v572 = vsel %vm571, %v564, %v568
      %v573 = vand.u32 2147483647, %v548
      %vm574 = vcmp.eq.f32.partialorder %v573, 8.507059e+37
      %v575 = vand.u32 %v548, 2147483648
      %v576 = vor.u32 1.1754944e-38, %v575
      %v577 = vsel %vm574, %v576, %v572
      %v578 = vmul.f32 %v542, %v577
      %v579 = vpack.c.bf16 %v578, %v563
      %580 = vrot.lane.b32.xlu0 %v504, 64
      %v581 = vpop.permute.xlu0 %580
      %v583 = vsel %vm529, %v579, 0
      %v586 = vsel %vm311, %v581, 0
      %588 = vmatpush.bf16.msra.mxu0 0
      %589 = vmatpush.bf16.msra.mxu0 0
      %590 = vmatpush.bf16.msra.mxu0 0
      %591 = vmatpush.bf16.msra.mxu0 0
      %592 = vmatpush.bf16.msra.mxu0 0
      %593 = vmatpush.bf16.msra.mxu0 0
      %594 = vmatpush.bf16.msra.mxu0 0
      %595 = vmatpush.bf16.msra.mxu0 %v586
      %596 = vmatmul.bf16.gmra.mxu0 %v583
      %v597 = vpop.f32.mrf.mxu0
      %v598 = vadd.f32 0.0, %v597
      %v599 = vpop.f32.mrf.mxu0
      %v600 = vadd.f32 0.0, %v599
      %601 = vdwg.mxu0
      %v602 = vld [vmem:[%s1] sm:$0xf]
      %v603 = vpack.c.bf16 %v600, %v598
      %604 = vrot.lane.b32.xlu0 %v504, 120
      %v605 = vpop.permute.xlu0 %604
      %606 = vrot.lane.b32.xlu0 %v504, 88
      %v607 = vpop.permute.xlu0 %606
      %v609 = vsel %vm508, %v605, 0
      %v612 = vsel %vm508, %v607, 0
      %614 = vmatpush.bf16.xpose.msra.mxu0 0
      %615 = vmatpush.bf16.xpose.msra.mxu0 0
      %616 = vmatpush.bf16.xpose.msra.mxu0 0
      %617 = vmatpush.bf16.xpose.msra.mxu0 0
      %618 = vmatpush.bf16.xpose.msra.mxu0 0
      %619 = vmatpush.bf16.xpose.msra.mxu0 0
      %620 = vmatpush.bf16.xpose.msra.mxu0 0
      %621 = vmatpush.bf16.xpose.msra.mxu0 %v612
      %622 = vmatmul.bf16.gmra.mxu0 %v609
      %v623 = vpop.f32.mrf.mxu0
      %v624 = vadd.f32 0.0, %v623
      %v625 = vpop.f32.mrf.mxu0
      %v626 = vadd.f32 0.0, %v625
      %627 = vdwg.mxu0
      %v628 = vsel %vm529, %v624, -inf
      %629 = vmax.xlane.f32.xlu0 %v628
      %v630 = vpop.xlane.xlu0 %629
      %v631 = vsel %vm533, %v626, -inf
      %632 = vmax.xlane.f32.xlu0 %v631
      %v633 = vpop.xlane.xlu0 %632
      %v634 = vsub.f32 %v624, %v630
      %v635 = vsub.f32 %v626, %v633
      %v636 = vmul.f32 %v634, 1.442695
      %v637 = vpow.pop %v636
      %v638 = vmul.f32 %v635, 1.442695
      %v639 = vpow.pop %v638
      %v640 = vsel %vm529, %v637, 0.0
      %641 = vadd.xlane.f32.xlu0 %v640
      %v642 = vpop.xlane.xlu0 %641
      %v643 = vsel %vm533, %v639, 0.0
      %644 = vadd.xlane.f32.xlu0 %v643
      %v645 = vpop.xlane.xlu0 %644
      %v646 = vrcp.pop %v642
      %v647 = vmul.f32 %v642, %v646
      %v648 = vsub.f32 1.0, %v647
      %v649 = vmul.f32 %v646, %v648
      %v650 = vadd.f32 %v646, %v649
      %vm651 = vweird.f32 %v642
      %vm652 = vweird.f32 %v646
      %vm653 = vmor %vm651, %vm652
      %v654 = vsel %vm653, %v646, %v650
      %v655 = vand.u32 2147483647, %v642
      %vm656 = vcmp.eq.f32.partialorder %v655, 8.507059e+37
      %v657 = vand.u32 %v642, 2147483648
      %v658 = vor.u32 1.1754944e-38, %v657
      %v659 = vsel %vm656, %v658, %v654
      %v660 = vmul.f32 %v637, %v659
      %v661 = vrcp.pop %v645
      %v662 = vmul.f32 %v645, %v661
      %v663 = vsub.f32 1.0, %v662
      %v664 = vmul.f32 %v661, %v663
      %v665 = vadd.f32 %v661, %v664
      %vm666 = vweird.f32 %v645
      %vm667 = vweird.f32 %v661
      %vm668 = vmor %vm666, %vm667
      %v669 = vsel %vm668, %v661, %v665
      %v670 = vand.u32 2147483647, %v645
      %vm671 = vcmp.eq.f32.partialorder %v670, 8.507059e+37
      %v672 = vand.u32 %v645, 2147483648
      %v673 = vor.u32 1.1754944e-38, %v672
      %v674 = vsel %vm671, %v673, %v669
      %v675 = vmul.f32 %v639, %v674
      %v676 = vpack.c.bf16 %v675, %v660
      %677 = vrot.lane.b32.xlu0 %v504, 56
      %v678 = vpop.permute.xlu0 %677
      %v680 = vsel %vm529, %v676, 0
      %v683 = vsel %vm311, %v678, 0
      %685 = vmatpush.bf16.msra.mxu0 0
      %686 = vmatpush.bf16.msra.mxu0 0
      %687 = vmatpush.bf16.msra.mxu0 0
      %688 = vmatpush.bf16.msra.mxu0 0
      %689 = vmatpush.bf16.msra.mxu0 0
      %690 = vmatpush.bf16.msra.mxu0 0
      %691 = vmatpush.bf16.msra.mxu0 0
      %692 = vmatpush.bf16.msra.mxu0 %v683
      %693 = vmatmul.bf16.gmra.mxu0 %v680
      %v694 = vpop.f32.mrf.mxu0
      %v695 = vadd.f32 0.0, %v694
      %v696 = vpop.f32.mrf.mxu0
      %v697 = vadd.f32 0.0, %v696
      %698 = vdwg.mxu0
      %v699 = vld [vmem:[%s1 + $0x8] sm:$0xf]
      %v700 = vpack.c.bf16 %v697, %v695
      %v702 = vunpack.c.l.b16 %v699
      %v703 = vpack.c.b16 %v702, %v702
      %704 = vrot.lane.b32.xlu0 %v703, 32
      %v705 = vpop.permute.xlu0 %704
      %v707 = vsel %vm508, %v700, 0
      %vm709 = vcmask 1043456
      %v711 = vsel %vm709, %v705, 0
      %713 = vmatpush.bf16.msra.mxu0 0
      %714 = vmatpush.bf16.msra.mxu0 0
      %715 = vmatpush.bf16.msra.mxu0 0
      %716 = vmatpush.bf16.msra.mxu0 0
      %717 = vmatpush.bf16.msra.mxu0 0
      %718 = vmatpush.bf16.msra.mxu0 0
      %719 = vmatpush.bf16.msra.mxu0 0
      %720 = vmatpush.bf16.msra.mxu0 %v711
      %721 = vmatmul.bf16.gmra.mxu0 %v707
      %v722 = vpop.f32.mrf.mxu0
      %v723 = vadd.f32 0.0, %v722
      %v724 = vpop.f32.mrf.mxu0
      %v725 = vadd.f32 0.0, %v724
      %726 = vdwg.mxu0
      %v728 = vunpack.c.l.b16 %v602
      %v729 = vpack.c.b16 %v728, %v728
      %730 = vrot.lane.b32.xlu0 %v729, 32
      %v731 = vpop.permute.xlu0 %730
      %v733 = vsel %vm508, %v603, 0
      %v736 = vsel %vm709, %v731, 0
      %738 = vmatpush.bf16.msra.mxu0 0
      %739 = vmatpush.bf16.msra.mxu0 0
      %740 = vmatpush.bf16.msra.mxu0 0
      %741 = vmatpush.bf16.msra.mxu0 0
      %742 = vmatpush.bf16.msra.mxu0 0
      %743 = vmatpush.bf16.msra.mxu0 0
      %744 = vmatpush.bf16.msra.mxu0 0
      %745 = vmatpush.bf16.msra.mxu0 %v736
      %746 = vmatmul.bf16.gmra.mxu0 %v733
      %v747 = vpop.f32.mrf.mxu0
      %v748 = vadd.f32 %v723, %v747
      %v749 = vpop.f32.mrf.mxu0
      %v750 = vadd.f32 %v725, %v749
      %751 = vdwg.mxu0
      %752 = vrot.lane.b32.xlu0 %v504, 112
      %v753 = vpop.permute.xlu0 %752
      %754 = vrot.lane.b32.xlu0 %v504, 80
      %v755 = vpop.permute.xlu0 %754
      %v757 = vsel %vm508, %v753, 0
      %v760 = vsel %vm508, %v755, 0
      %762 = vmatpush.bf16.xpose.msra.mxu0 0
      %763 = vmatpush.bf16.xpose.msra.mxu0 0
      %764 = vmatpush.bf16.xpose.msra.mxu0 0
      %765 = vmatpush.bf16.xpose.msra.mxu0 0
      %766 = vmatpush.bf16.xpose.msra.mxu0 0
      %767 = vmatpush.bf16.xpose.msra.mxu0 0
      %768 = vmatpush.bf16.xpose.msra.mxu0 0
      %769 = vmatpush.bf16.xpose.msra.mxu0 %v760
      %770 = vmatmul.bf16.gmra.mxu0 %v757
      %v771 = vpop.f32.mrf.mxu0
      %v772 = vadd.f32 0.0, %v771
      %v773 = vpop.f32.mrf.mxu0
      %v774 = vadd.f32 0.0, %v773
      %775 = vdwg.mxu0
      %v776 = vsel %vm529, %v772, -inf
      %777 = vmax.xlane.f32.xlu0 %v776
      %v778 = vpop.xlane.xlu0 %777
      %v779 = vsel %vm533, %v774, -inf
      %780 = vmax.xlane.f32.xlu0 %v779
      %v781 = vpop.xlane.xlu0 %780
      %v782 = vsub.f32 %v772, %v778
      %v783 = vsub.f32 %v774, %v781
      %v784 = vmul.f32 %v782, 1.442695
      %v785 = vpow.pop %v784
      %v786 = vmul.f32 %v783, 1.442695
      %v787 = vpow.pop %v786
      %v788 = vsel %vm529, %v785, 0.0
      %789 = vadd.xlane.f32.xlu0 %v788
      %v790 = vpop.xlane.xlu0 %789
      %v791 = vsel %vm533, %v787, 0.0
      %792 = vadd.xlane.f32.xlu0 %v791
      %v793 = vpop.xlane.xlu0 %792
      %v794 = vrcp.pop %v790
      %v795 = vmul.f32 %v790, %v794
      %v796 = vsub.f32 1.0, %v795
      %v797 = vmul.f32 %v794, %v796
      %v798 = vadd.f32 %v794, %v797
      %vm799 = vweird.f32 %v790
      %vm800 = vweird.f32 %v794
      %vm801 = vmor %vm799, %vm800
      %v802 = vsel %vm801, %v794, %v798
      %v803 = vand.u32 2147483647, %v790
      %vm804 = vcmp.eq.f32.partialorder %v803, 8.507059e+37
      %v805 = vand.u32 %v790, 2147483648
      %v806 = vor.u32 1.1754944e-38, %v805
      %v807 = vsel %vm804, %v806, %v802
      %v808 = vmul.f32 %v785, %v807
      %v809 = vrcp.pop %v793
      %v810 = vmul.f32 %v793, %v809
      %v811 = vsub.f32 1.0, %v810
      %v812 = vmul.f32 %v809, %v811
      %v813 = vadd.f32 %v809, %v812
      %vm814 = vweird.f32 %v793
      %vm815 = vweird.f32 %v809
      %vm816 = vmor %vm814, %vm815
      %v817 = vsel %vm816, %v809, %v813
      %v818 = vand.u32 2147483647, %v793
      %vm819 = vcmp.eq.f32.partialorder %v818, 8.507059e+37
      %v820 = vand.u32 %v793, 2147483648
      %v821 = vor.u32 1.1754944e-38, %v820
      %v822 = vsel %vm819, %v821, %v817
      %v823 = vmul.f32 %v787, %v822
      %v824 = vpack.c.bf16 %v823, %v808
      %825 = vrot.lane.b32.xlu0 %v504, 48
      %v826 = vpop.permute.xlu0 %825
      %v828 = vsel %vm529, %v824, 0
      %v831 = vsel %vm311, %v826, 0
      %833 = vmatpush.bf16.msra.mxu0 0
      %834 = vmatpush.bf16.msra.mxu0 0
      %835 = vmatpush.bf16.msra.mxu0 0
      %836 = vmatpush.bf16.msra.mxu0 0
      %837 = vmatpush.bf16.msra.mxu0 0
      %838 = vmatpush.bf16.msra.mxu0 0
      %839 = vmatpush.bf16.msra.mxu0 0
      %840 = vmatpush.bf16.msra.mxu0 %v831
      %841 = vmatmul.bf16.gmra.mxu0 %v828
      %v842 = vpop.f32.mrf.mxu0
      %v843 = vadd.f32 0.0, %v842
      %v844 = vpop.f32.mrf.mxu0
      %v845 = vadd.f32 0.0, %v844
      %846 = vdwg.mxu0
      %v847 = vld [vmem:[%s1 + $0x10] sm:$0xf]
      %v848 = vpack.c.bf16 %v845, %v843
      %v850 = vunpack.c.l.b16 %v847
      %v851 = vpack.c.b16 %v850, %v850
      %852 = vrot.lane.b32.xlu0 %v851, 32
      %v853 = vpop.permute.xlu0 %852
      %v855 = vsel %vm508, %v848, 0
      %v858 = vsel %vm709, %v853, 0
      %860 = vmatpush.bf16.msra.mxu0 0
      %861 = vmatpush.bf16.msra.mxu0 0
      %862 = vmatpush.bf16.msra.mxu0 0
      %863 = vmatpush.bf16.msra.mxu0 0
      %864 = vmatpush.bf16.msra.mxu0 0
      %865 = vmatpush.bf16.msra.mxu0 0
      %866 = vmatpush.bf16.msra.mxu0 0
      %867 = vmatpush.bf16.msra.mxu0 %v858
      %868 = vmatmul.bf16.gmra.mxu0 %v855
      %v869 = vpop.f32.mrf.mxu0
      %v870 = vadd.f32 0.0, %v869
      %v871 = vpop.f32.mrf.mxu0
      %v872 = vadd.f32 0.0, %v871
      %873 = vdwg.mxu0
      %v874 = vadd.f32 %v748, %v870
      %v875 = vadd.f32 %v750, %v872
      %876 = vrot.lane.b32.xlu0 %v504, 104
      %v877 = vpop.permute.xlu0 %876
      %878 = vrot.lane.b32.xlu0 %v504, 72
      %v879 = vpop.permute.xlu0 %878
      %v881 = vsel %vm508, %v877, 0
      %v884 = vsel %vm508, %v879, 0
      %886 = vmatpush.bf16.xpose.msra.mxu0 0
      %887 = vmatpush.bf16.xpose.msra.mxu0 0
      %888 = vmatpush.bf16.xpose.msra.mxu0 0
      %889 = vmatpush.bf16.xpose.msra.mxu0 0
      %890 = vmatpush.bf16.xpose.msra.mxu0 0
      %891 = vmatpush.bf16.xpose.msra.mxu0 0
      %892 = vmatpush.bf16.xpose.msra.mxu0 0
      %893 = vmatpush.bf16.xpose.msra.mxu0 %v884
      %894 = vmatmul.bf16.gmra.mxu0 %v881
      %v895 = vpop.f32.mrf.mxu0
      %v896 = vadd.f32 0.0, %v895
      %v897 = vpop.f32.mrf.mxu0
      %v898 = vadd.f32 0.0, %v897
      %899 = vdwg.mxu0
      %v900 = vsel %vm529, %v896, -inf
      %901 = vmax.xlane.f32.xlu0 %v900
      %v902 = vpop.xlane.xlu0 %901
      %v903 = vsel %vm533, %v898, -inf
      %904 = vmax.xlane.f32.xlu0 %v903
      %v905 = vpop.xlane.xlu0 %904
      %v906 = vsub.f32 %v896, %v902
      %v907 = vsub.f32 %v898, %v905
      %v908 = vmul.f32 %v906, 1.442695
      %v909 = vpow.pop %v908
      %v910 = vmul.f32 %v907, 1.442695
      %v911 = vpow.pop %v910
      %v912 = vsel %vm529, %v909, 0.0
      %913 = vadd.xlane.f32.xlu0 %v912
      %v914 = vpop.xlane.xlu0 %913
      %v915 = vsel %vm533, %v911, 0.0
      %916 = vadd.xlane.f32.xlu0 %v915
      %v917 = vpop.xlane.xlu0 %916
      %v918 = vrcp.pop %v914
      %v919 = vmul.f32 %v914, %v918
      %v920 = vsub.f32 1.0, %v919
      %v921 = vmul.f32 %v918, %v920
      %v922 = vadd.f32 %v918, %v921
      %vm923 = vweird.f32 %v914
      %vm924 = vweird.f32 %v918
      %vm925 = vmor %vm923, %vm924
      %v926 = vsel %vm925, %v918, %v922
      %v927 = vand.u32 2147483647, %v914
      %vm928 = vcmp.eq.f32.partialorder %v927, 8.507059e+37
      %v929 = vand.u32 %v914, 2147483648
      %v930 = vor.u32 1.1754944e-38, %v929
      %v931 = vsel %vm928, %v930, %v926
      %v932 = vmul.f32 %v909, %v931
      %v933 = vrcp.pop %v917
      %v934 = vmul.f32 %v917, %v933
      %v935 = vsub.f32 1.0, %v934
      %v936 = vmul.f32 %v933, %v935
      %v937 = vadd.f32 %v933, %v936
      %vm938 = vweird.f32 %v917
      %vm939 = vweird.f32 %v933
      %vm940 = vmor %vm938, %vm939
      %v941 = vsel %vm940, %v933, %v937
      %v942 = vand.u32 2147483647, %v917
      %vm943 = vcmp.eq.f32.partialorder %v942, 8.507059e+37
      %v944 = vand.u32 %v917, 2147483648
      %v945 = vor.u32 1.1754944e-38, %v944
      %v946 = vsel %vm943, %v945, %v941
      %v947 = vmul.f32 %v911, %v946
      %v948 = vpack.c.bf16 %v947, %v932
      %949 = vrot.lane.b32.xlu0 %v504, 40
      %v950 = vpop.permute.xlu0 %949
      %v952 = vsel %vm529, %v948, 0
      %v955 = vsel %vm311, %v950, 0
      %957 = vmatpush.bf16.msra.mxu0 0
      %958 = vmatpush.bf16.msra.mxu0 0
      %959 = vmatpush.bf16.msra.mxu0 0
      %960 = vmatpush.bf16.msra.mxu0 0
      %961 = vmatpush.bf16.msra.mxu0 0
      %962 = vmatpush.bf16.msra.mxu0 0
      %963 = vmatpush.bf16.msra.mxu0 0
      %964 = vmatpush.bf16.msra.mxu0 %v955
      %965 = vmatmul.bf16.gmra.mxu0 %v952
      %v966 = vpop.f32.mrf.mxu0
      %v967 = vadd.f32 0.0, %v966
      %v968 = vpop.f32.mrf.mxu0
      %v969 = vadd.f32 0.0, %v968
      %970 = vdwg.mxu0
      %v971 = vpack.c.bf16 %v969, %v967
      %v972 = vpack.c.b16 %v482, %v482
      %973 = vrot.lane.b32.xlu0 %v972, 32
      %v974 = vpop.permute.xlu0 %973
      %v976 = vsel %vm508, %v971, 0
      %v979 = vsel %vm709, %v974, 0
      %981 = vmatpush.bf16.msra.mxu0 0
      %982 = vmatpush.bf16.msra.mxu0 0
      %983 = vmatpush.bf16.msra.mxu0 0
      %984 = vmatpush.bf16.msra.mxu0 0
      %985 = vmatpush.bf16.msra.mxu0 0
      %986 = vmatpush.bf16.msra.mxu0 0
      %987 = vmatpush.bf16.msra.mxu0 0
      %988 = vmatpush.bf16.msra.mxu0 %v979
      %989 = vmatmul.bf16.gmra.mxu0 %v976
      %v990 = vpop.f32.mrf.mxu0
      %v991 = vadd.f32 0.0, %v990
      %v992 = vpop.f32.mrf.mxu0
      %v993 = vadd.f32 0.0, %v992
      %994 = vdwg.mxu0
      %v995 = vadd.f32 %v874, %v991
      %v996 = vadd.f32 %v875, %v993
      %v997 = vld [vmem:[%s3 + $0x4] sm:$0x1]
      %v998 = vperm.slane %v997, 0
      %v999 = vadd.f32 %v995, %v998
      %v1000 = vadd.f32 %v996, %v998
      %v1001 = vadd.f32 %v466, %v999
      %v1002 = vadd.f32 %v467, %v1000
      %v1003 = vld [vmem:[%s3 + $0x7] sm:$0x1]
      %v1004 = vld [vmem:[%s3 + $0x8] sm:$0x1]
      %v1005 = vsel %vm331, %v1001, 0.0
      %1006 = vadd.xlane.f32.xlu0 %v1005
      %v1007 = vpop.xlane.xlu0 %1006
      %v1008 = vsel %vm413, %v1002, 0.0
      %1009 = vadd.xlane.f32.xlu0 %v1008
      %v1010 = vpop.xlane.xlu0 %1009
      %v1011 = vmul.f32 %v1007, %v423
      %v1012 = vmul.f32 %v1010, %v423
      %v1013 = vsub.f32 %v1001, %v1011
      %v1014 = vsub.f32 %v1002, %v1012
      %v1015 = vmul.f32 %v1013, %v1013
      %v1016 = vmul.f32 %v1014, %v1014
      %v1017 = vsel %vm331, %v1015, 0.0
      %1018 = vadd.xlane.f32.xlu0 %v1017
      %v1019 = vpop.xlane.xlu0 %1018
      %v1020 = vsel %vm413, %v1016, 0.0
      %1021 = vadd.xlane.f32.xlu0 %v1020
      %v1022 = vpop.xlane.xlu0 %1021
      %v1023 = vmul.f32 %v1019, %v423
      %v1024 = vmul.f32 %v1022, %v423
      %v1025 = vadd.f32 %v1023, 1e-05
      %v1026 = vadd.f32 %v1024, 1e-05
      %v1027 = vrsqrt.pop %v1025
      %v1028 = vmul.f32 %v1027, %v1025
      %v1029 = vmul.f32 %v1028, %v1027
      %v1030 = vmul.f32 0.5, %v1029
      %v1031 = vsub.f32 1.5, %v1030
      %v1032 = vmul.f32 %v1027, %v1031
      %vm1033 = vweird.f32 %v1025
      %vm1034 = vweird.f32 %v1027
      %vm1035 = vmor %vm1033, %vm1034
      %v1036 = vsel %vm1035, %v1027, %v1032
      %v1037 = vrsqrt.pop %v1026
      %v1038 = vmul.f32 %v1037, %v1026
      %v1039 = vmul.f32 %v1038, %v1037
      %v1040 = vmul.f32 0.5, %v1039
      %v1041 = vsub.f32 1.5, %v1040
      %v1042 = vmul.f32 %v1037, %v1041
      %vm1043 = vweird.f32 %v1026
      %vm1044 = vweird.f32 %v1037
      %vm1045 = vmor %vm1043, %vm1044
      %v1046 = vsel %vm1045, %v1037, %v1042
      %v1047 = vmul.f32 %v1013, %v1036
      %v1048 = vmul.f32 %v1014, %v1046
      %v1049 = vperm.slane %v1003, 0
      %v1050 = vmul.f32 %v1047, %v1049
      %v1051 = vmul.f32 %v1048, %v1049
      %v1052 = vperm.slane %v1004, 0
      %v1053 = vadd.f32 %v1050, %v1052
      %v1054 = vadd.f32 %v1051, %v1052
      %v1055 = vld [vmem:[%s1 + $0x4] sm:$0xf]
      %v1056 = vld [vmem:[%s1 + $0xc] sm:$0xf]
      %v1057 = vld [vmem:[%s1 + $0x14] sm:$0xf]
      %v1058 = vld [vmem:[%s1 + $0x1c] sm:$0xf]
      %v1059 = vpack.c.bf16 %v1054, %v1053
      %v1060 = vld [vmem:[%s3 + $0x5] sm:$0x1]
      %v1061 = vperm.slane %v1060, 0
      %v1066 = vunpack.c.l.b16 %v1055
      %v1067 = vunpack.c.l.b16 %v1056
      %v1068 = vunpack.c.l.b16 %v1057
      %v1069 = vunpack.c.l.b16 %v1058
      %v1070 = vpack.c.b16 %v1067, %v1066
      %v1071 = vpack.c.b16 %v1069, %v1068
      %v1075 = vsel %vm331, %v1059, 0
      %1077 = vmatpush.bf16.msra.mxu0 0
      %1078 = vmatpush.bf16.msra.mxu0 0
      %1079 = vmatpush.bf16.msra.mxu0 0
      %1080 = vmatpush.bf16.msra.mxu0 0
      %1081 = vmatpush.bf16.msra.mxu0 0
      %1082 = vmatpush.bf16.msra.mxu0 0
      %1083 = vmatpush.bf16.msra.mxu0 %v1071
      %1084 = vmatpush.bf16.msra.mxu0 %v1070
      %1085 = vmatmul.bf16.gmra.mxu0 %v1075
      %v1086 = vpop.f32.mrf.mxu0
      %v1087 = vadd.f32 %v1061, %v1086
      %v1088 = vpop.f32.mrf.mxu0
      %v1089 = vadd.f32 %v1061, %v1088
      %1090 = vdwg.mxu0
      %v1091 = vmax.f32 %v1087, 0.0
      %v1092 = vmax.f32 %v1089, 0.0
      %v1093 = vld [vmem:[%s2 + $0x30] sm:$0xf]
      %v1094 = vld [vmem:[%s2 + $0x34] sm:$0xf]
      %v1095 = vld [vmem:[%s2 + $0x38] sm:$0xf]
      %v1096 = vld [vmem:[%s2 + $0x3c] sm:$0xf]
      %v1097 = vld [vmem:[%s2 + $0x40] sm:$0xf]
      %v1098 = vld [vmem:[%s2 + $0x44] sm:$0xf]
      %v1099 = vld [vmem:[%s2 + $0x48] sm:$0xf]
      %v1100 = vld [vmem:[%s2 + $0x4c] sm:$0xf]
      %v1101 = vld [vmem:[%s2 + $0x50] sm:$0xf]
      %v1102 = vld [vmem:[%s2 + $0x54] sm:$0xf]
      %v1103 = vld [vmem:[%s2 + $0x58] sm:$0xf]
      %v1104 = vld [vmem:[%s2 + $0x5c] sm:$0xf]
      %v1105 = vld [vmem:[%s2 + $0x60] sm:$0xf]
      %v1106 = vld [vmem:[%s2 + $0x64] sm:$0xf]
      %v1107 = vld [vmem:[%s2 + $0x68] sm:$0xf]
      %v1108 = vld [vmem:[%s2 + $0x6c] sm:$0xf]
      %v1109 = vpack.c.bf16 %v1092, %v1091
      %v1110 = vld [vmem:[%s3 + $0x6] sm:$0x1]
      %v1111 = vperm.slane %v1110, 0
      %v1128 = vunpack.c.l.b16 %v1093
      %v1129 = vunpack.c.l.b16 %v1094
      %v1130 = vunpack.c.l.b16 %v1095
      %v1131 = vunpack.c.l.b16 %v1096
      %v1132 = vunpack.c.l.b16 %v1097
      %v1133 = vunpack.c.l.b16 %v1098
      %v1134 = vunpack.c.l.b16 %v1099
      %v1135 = vunpack.c.l.b16 %v1100
      %v1136 = vunpack.c.l.b16 %v1101
      %v1137 = vunpack.c.l.b16 %v1102
      %v1138 = vunpack.c.l.b16 %v1103
      %v1139 = vunpack.c.l.b16 %v1104
      %v1140 = vunpack.c.l.b16 %v1105
      %v1141 = vunpack.c.l.b16 %v1106
      %v1142 = vunpack.c.l.b16 %v1107
      %v1143 = vunpack.c.l.b16 %v1108
      %v1144 = vpack.c.b16 %v1129, %v1128
      %v1145 = vpack.c.b16 %v1131, %v1130
      %v1146 = vpack.c.b16 %v1133, %v1132
      %v1147 = vpack.c.b16 %v1135, %v1134
      %v1148 = vpack.c.b16 %v1137, %v1136
      %v1149 = vpack.c.b16 %v1139, %v1138
      %v1150 = vpack.c.b16 %v1141, %v1140
      %v1151 = vpack.c.b16 %v1143, %v1142
      %1160 = vmatpush.bf16.msra.mxu0 %v1151
      %1161 = vmatpush.bf16.msra.mxu0 %v1150
      %1162 = vmatpush.bf16.msra.mxu0 %v1149
      %1163 = vmatpush.bf16.msra.mxu0 %v1148
      %1164 = vmatpush.bf16.msra.mxu0 %v1147
      %1165 = vmatpush.bf16.msra.mxu0 %v1146
      %1166 = vmatpush.bf16.msra.mxu0 %v1145
      %1167 = vmatpush.bf16.msra.mxu0 %v1144
      %1168 = vmatmul.bf16.gmra.mxu0 %v1109
      %v1169 = vpop.f32.mrf.mxu0
      %v1170 = vadd.f32 %v1111, %v1169
      %v1171 = vpop.f32.mrf.mxu0
      %v1172 = vadd.f32 %v1111, %v1171
      %1173 = vdwg.mxu0
      %v1174 = vadd.f32 %v1053, %v1170
      %v1175 = vadd.f32 %v1054, %v1172
      %v1176 = vld [vmem:[%s3 + $0x9] sm:$0x1]
      %v1177 = vld [vmem:[%s3 + $0xa] sm:$0x1]
      %v1178 = vsel %vm331, %v1174, 0.0
      %1179 = vadd.xlane.f32.xlu0 %v1178
      %v1180 = vpop.xlane.xlu0 %1179
      %v1181 = vsel %vm413, %v1175, 0.0
      %1182 = vadd.xlane.f32.xlu0 %v1181
      %v1183 = vpop.xlane.xlu0 %1182
      %v1184 = vmul.f32 %v1180, %v423
      %v1185 = vmul.f32 %v1183, %v423
      %v1186 = vsub.f32 %v1174, %v1184
      %v1187 = vsub.f32 %v1175, %v1185
      %v1188 = vmul.f32 %v1186, %v1186
      %v1189 = vmul.f32 %v1187, %v1187
      %v1190 = vsel %vm331, %v1188, 0.0
      %1191 = vadd.xlane.f32.xlu0 %v1190
      %v1192 = vpop.xlane.xlu0 %1191
      %v1193 = vsel %vm413, %v1189, 0.0
      %1194 = vadd.xlane.f32.xlu0 %v1193
      %v1195 = vpop.xlane.xlu0 %1194
      %v1196 = vmul.f32 %v1192, %v423
      %v1197 = vmul.f32 %v1195, %v423
      %v1198 = vadd.f32 %v1196, 1e-05
      %v1199 = vadd.f32 %v1197, 1e-05
      %v1200 = vrsqrt.pop %v1198
      %v1201 = vmul.f32 %v1200, %v1198
      %v1202 = vmul.f32 %v1201, %v1200
      %v1203 = vmul.f32 0.5, %v1202
      %v1204 = vsub.f32 1.5, %v1203
      %v1205 = vmul.f32 %v1200, %v1204
      %vm1206 = vweird.f32 %v1198
      %vm1207 = vweird.f32 %v1200
      %vm1208 = vmor %vm1206, %vm1207
      %v1209 = vsel %vm1208, %v1200, %v1205
      %v1210 = vrsqrt.pop %v1199
      %v1211 = vmul.f32 %v1210, %v1199
      %v1212 = vmul.f32 %v1211, %v1210
      %v1213 = vmul.f32 0.5, %v1212
      %v1214 = vsub.f32 1.5, %v1213
      %v1215 = vmul.f32 %v1210, %v1214
      %vm1216 = vweird.f32 %v1199
      %vm1217 = vweird.f32 %v1210
      %vm1218 = vmor %vm1216, %vm1217
      %v1219 = vsel %vm1218, %v1210, %v1215
      %v1220 = vmul.f32 %v1186, %v1209
      %v1221 = vmul.f32 %v1187, %v1219
      %v1222 = vperm.slane %v1176, 0
      %v1223 = vmul.f32 %v1220, %v1222
      %v1224 = vmul.f32 %v1221, %v1222
      %v1225 = vperm.slane %v1177, 0
      %v1226 = vadd.f32 %v1223, %v1225
      %v1227 = vadd.f32 %v1224, %v1225
      %vm1230 = vcmask 1041408
      %v1231 = vrot.slane %v1226, 6
      %v1232 = vrot.slane %v1227, 6
      %v1233 = vsel %vm1230, %v1231, %v1232
      %v1236 = vsel %vm1230, 0.0, %v1231
      %v1239 = vrot.slane %v1236, 1
      %v1240 = vrot.slane %v1233, 1
      %v1241 = vsel %vm311, %v1239, %v1240
      %v1242 = vrot.slane 0.0, 1
      %v1243 = vsel %vm311, %v1240, %v1242
      %1244 = vrot.lane.b32.xlu0 %v1241, 32
      %v1245 = vpop.permute.xlu0 %1244
      %1246 = vrot.lane.b32.xlu0 %v1243, 32
      %v1247 = vpop.permute.xlu0 %1246
      %v1250 = vrot.slane %v1236, 2
      %v1251 = vrot.slane %v1233, 2
      %v1252 = vsel %vm321, %v1250, %v1251
      %v1253 = vrot.slane 0.0, 2
      %v1254 = vsel %vm321, %v1251, %v1253
      %1255 = vrot.lane.b32.xlu0 %v1252, 64
      %v1256 = vpop.permute.xlu0 %1255
      %1257 = vrot.lane.b32.xlu0 %v1254, 64
      %v1258 = vpop.permute.xlu0 %1257
      %v1261 = vsel %vm331, %v1236, %v1245
      %v1262 = vsel %vm331, %v1233, %v1247
      %v1263 = vsel %vm334, %v1261, %v1256
      %v1264 = vsel %vm334, %v1262, %v1258
      %v1265 = vld [vmem:[%s2 + $0x70] sm:$0xf]
      %v1266 = vld [vmem:[%s2 + $0x74] sm:$0xf]
      %v1267 = vld [vmem:[%s2 + $0x78] sm:$0xf]
      %v1268 = vld [vmem:[%s2 + $0x7c] sm:$0xf]
      %v1269 = vld [vmem:[%s2 + $0x80] sm:$0xf]
      %v1270 = vld [vmem:[%s2 + $0x84] sm:$0xf]
      %v1271 = vld [vmem:[%s2 + $0x88] sm:$0xf]
      %v1272 = vld [vmem:[%s2 + $0x8c] sm:$0xf]
      %v1273 = vld [vmem:[%s2 + $0x90] sm:$0xf]
      %v1274 = vld [vmem:[%s2 + $0x94] sm:$0xf]
      %v1275 = vld [vmem:[%s2 + $0x98] sm:$0xf]
      %v1276 = vld [vmem:[%s2 + $0x9c] sm:$0xf]
      %v1277 = vpack.c.bf16 %v1264, %v1263
      %v1278 = vld [vmem:[%s3 + $0xb] sm:$0x1]
      %v1279 = vperm.slane %v1278, 0
      %v1292 = vunpack.c.l.b16 %v1265
      %v1293 = vunpack.c.l.b16 %v1266
      %v1294 = vunpack.c.l.b16 %v1267
      %v1295 = vunpack.c.l.b16 %v1268
      %v1296 = vunpack.c.l.b16 %v1269
      %v1297 = vunpack.c.l.b16 %v1270
      %v1298 = vunpack.c.l.b16 %v1271
      %v1299 = vunpack.c.l.b16 %v1272
      %v1300 = vunpack.c.l.b16 %v1273
      %v1301 = vunpack.c.l.b16 %v1274
      %v1302 = vunpack.c.l.b16 %v1275
      %v1303 = vunpack.c.l.b16 %v1276
      %v1304 = vpack.c.b16 %v1293, %v1292
      %v1305 = vpack.c.b16 %v1295, %v1294
      %v1306 = vpack.c.b16 %v1297, %v1296
      %v1307 = vpack.c.b16 %v1299, %v1298
      %v1308 = vpack.c.b16 %v1301, %v1300
      %v1309 = vpack.c.b16 %v1303, %v1302
      %v1317 = vsel %vm388, %v1277, 0
      %1319 = vmatpush.bf16.msra.mxu0 0
      %1320 = vmatpush.bf16.msra.mxu0 0
      %1321 = vmatpush.bf16.msra.mxu0 %v1309
      %1322 = vmatpush.bf16.msra.mxu0 %v1308
      %1323 = vmatpush.bf16.msra.mxu0 %v1307
      %1324 = vmatpush.bf16.msra.mxu0 %v1306
      %1325 = vmatpush.bf16.msra.mxu0 %v1305
      %1326 = vmatpush.bf16.msra.mxu0 %v1304
      %1327 = vmatmul.bf16.gmra.mxu0 %v1317
      %v1328 = vpop.f32.mrf.mxu0
      %v1329 = vadd.f32 %v1279, %v1328
      %v1330 = vpop.f32.mrf.mxu0
      %v1331 = vadd.f32 %v1279, %v1330
      %1332 = vdwg.mxu0
      %v1333 = vmax.f32 %v1329, 0.0
      %v1334 = vmax.f32 %v1331, 0.0
      %v1335 = vld [vmem:[%s3 + $0xc] sm:$0x1]
      %v1336 = vld [vmem:[%s3 + $0xd] sm:$0x1]
      %v1337 = vsel %vm331, %v1333, 0.0
      %1338 = vadd.xlane.f32.xlu0 %v1337
      %v1339 = vpop.xlane.xlu0 %1338
      %v1340 = vsel %vm331, %v1334, 0.0
      %1341 = vadd.xlane.f32.xlu0 %v1340
      %v1342 = vpop.xlane.xlu0 %1341
      %v1343 = vmul.f32 %v1339, %v423
      %v1344 = vmul.f32 %v1342, %v423
      %v1345 = vsub.f32 %v1333, %v1343
      %v1346 = vsub.f32 %v1334, %v1344
      %v1347 = vmul.f32 %v1345, %v1345
      %v1348 = vmul.f32 %v1346, %v1346
      %v1349 = vsel %vm331, %v1347, 0.0
      %1350 = vadd.xlane.f32.xlu0 %v1349
      %v1351 = vpop.xlane.xlu0 %1350
      %v1352 = vsel %vm331, %v1348, 0.0
      %1353 = vadd.xlane.f32.xlu0 %v1352
      %v1354 = vpop.xlane.xlu0 %1353
      %v1355 = vmul.f32 %v1351, %v423
      %v1356 = vmul.f32 %v1354, %v423
      %v1357 = vadd.f32 %v1355, 1e-05
      %v1358 = vadd.f32 %v1356, 1e-05
      %v1359 = vrsqrt.pop %v1357
      %v1360 = vmul.f32 %v1359, %v1357
      %v1361 = vmul.f32 %v1360, %v1359
      %v1362 = vmul.f32 0.5, %v1361
      %v1363 = vsub.f32 1.5, %v1362
      %v1364 = vmul.f32 %v1359, %v1363
      %vm1365 = vweird.f32 %v1357
      %vm1366 = vweird.f32 %v1359
      %vm1367 = vmor %vm1365, %vm1366
      %v1368 = vsel %vm1367, %v1359, %v1364
      %v1369 = vrsqrt.pop %v1358
      %v1370 = vmul.f32 %v1369, %v1358
      %v1371 = vmul.f32 %v1370, %v1369
      %v1372 = vmul.f32 0.5, %v1371
      %v1373 = vsub.f32 1.5, %v1372
      %v1374 = vmul.f32 %v1369, %v1373
      %vm1375 = vweird.f32 %v1358
      %vm1376 = vweird.f32 %v1369
      %vm1377 = vmor %vm1375, %vm1376
      %v1378 = vsel %vm1377, %v1369, %v1374
      %v1379 = vmul.f32 %v1345, %v1368
      %v1380 = vmul.f32 %v1346, %v1378
      %v1381 = vperm.slane %v1335, 0
      %v1382 = vmul.f32 %v1379, %v1381
      %v1383 = vmul.f32 %v1380, %v1381
      %v1384 = vperm.slane %v1336, 0
      %v1385 = vadd.f32 %v1382, %v1384
      %v1386 = vadd.f32 %v1383, %v1384
      %v1387 = vadd.f32 %v307, %v1385
      %v1388 = vadd.f32 %v308, %v1386
      %v1389 = vld [vmem:[%s5] sm:$0xf]
      %v1390 = vld [vmem:[%s5 + $0x4] sm:$0xf]
      %v1391 = vld [vmem:[%s5 + $0x8] sm:$0xf]
      %v1392 = vld [vmem:[%s5 + $0xc] sm:$0xf]
      %v1393 = vpack.c.bf16 %v1388, %v1387
      %v1394 = vld [vmem:[%s6] sm:$0x1]
      %v1395 = vperm.slane %v1394, 0
      %v1400 = vunpack.c.l.b16 %v1389
      %v1401 = vunpack.c.l.b16 %v1390
      %v1402 = vunpack.c.l.b16 %v1391
      %v1403 = vunpack.c.l.b16 %v1392
      %v1404 = vpack.c.b16 %v1401, %v1400
      %v1405 = vpack.c.b16 %v1403, %v1402
      %v1409 = vsel %vm331, %v1393, 0
      %1411 = vmatpush.bf16.msra.mxu0 0
      %1412 = vmatpush.bf16.msra.mxu0 0
      %1413 = vmatpush.bf16.msra.mxu0 0
      %1414 = vmatpush.bf16.msra.mxu0 0
      %1415 = vmatpush.bf16.msra.mxu0 0
      %1416 = vmatpush.bf16.msra.mxu0 0
      %1417 = vmatpush.bf16.msra.mxu0 %v1405
      %1418 = vmatpush.bf16.msra.mxu0 %v1404
      %1419 = vmatmul.bf16.gmra.mxu0 %v1409
      %v1420 = vpop.f32.mrf.mxu0
      %v1421 = vadd.f32 %v1395, %v1420
      %v1422 = vpop.f32.mrf.mxu0
      %v1423 = vadd.f32 %v1395, %v1422
      %1424 = vdwg.mxu0
      %v1425 = vmax.f32 %v1421, 0.0
      %v1426 = vmax.f32 %v1423, 0.0
      %v1427 = vld [vmem:[%s6 + $0x1] sm:$0x1]
      %v1428 = vld [vmem:[%s6 + $0x2] sm:$0x1]
      %v1429 = vsel %vm331, %v1425, 0.0
      %1430 = vadd.xlane.f32.xlu0 %v1429
      %v1431 = vpop.xlane.xlu0 %1430
      %v1432 = vsel %vm331, %v1426, 0.0
      %1433 = vadd.xlane.f32.xlu0 %v1432
      %v1434 = vpop.xlane.xlu0 %1433
      %v1435 = vmul.f32 %v1431, %v423
      %v1436 = vmul.f32 %v1434, %v423
      %v1437 = vsub.f32 %v1425, %v1435
      %v1438 = vsub.f32 %v1426, %v1436
      %v1439 = vmul.f32 %v1437, %v1437
      %v1440 = vmul.f32 %v1438, %v1438
      %v1441 = vsel %vm331, %v1439, 0.0
      %1442 = vadd.xlane.f32.xlu0 %v1441
      %v1443 = vpop.xlane.xlu0 %1442
      %v1444 = vsel %vm331, %v1440, 0.0
      %1445 = vadd.xlane.f32.xlu0 %v1444
      %v1446 = vpop.xlane.xlu0 %1445
      %v1447 = vmul.f32 %v1443, %v423
      %v1448 = vmul.f32 %v1446, %v423
      %v1449 = vadd.f32 %v1447, 1e-05
      %v1450 = vadd.f32 %v1448, 1e-05
      %v1451 = vrsqrt.pop %v1449
      %v1452 = vmul.f32 %v1451, %v1449
      %v1453 = vmul.f32 %v1452, %v1451
      %v1454 = vmul.f32 0.5, %v1453
      %v1455 = vsub.f32 1.5, %v1454
      %v1456 = vmul.f32 %v1451, %v1455
      %vm1457 = vweird.f32 %v1449
      %vm1458 = vweird.f32 %v1451
      %vm1459 = vmor %vm1457, %vm1458
      %v1460 = vsel %vm1459, %v1451, %v1456
      %v1461 = vrsqrt.pop %v1450
      %v1462 = vmul.f32 %v1461, %v1450
      %v1463 = vmul.f32 %v1462, %v1461
      %v1464 = vmul.f32 0.5, %v1463
      %v1465 = vsub.f32 1.5, %v1464
      %v1466 = vmul.f32 %v1461, %v1465
      %vm1467 = vweird.f32 %v1450
      %vm1468 = vweird.f32 %v1461
      %vm1469 = vmor %vm1467, %vm1468
      %v1470 = vsel %vm1469, %v1461, %v1466
      %v1471 = vmul.f32 %v1437, %v1460
      %v1472 = vmul.f32 %v1438, %v1470
      %v1473 = vperm.slane %v1427, 0
      %v1474 = vmul.f32 %v1471, %v1473
      %v1475 = vmul.f32 %v1472, %v1473
      %v1476 = vperm.slane %v1428, 0
      %v1477 = vadd.f32 %v1474, %v1476
      %v1478 = vadd.f32 %v1475, %v1476
      %v1479 = vld [vmem:[%s4] sm:$0xf]
      %v1480 = vld [vmem:[%s4 + $0x8] sm:$0xf]
      %v1481 = vld [vmem:[%s4 + $0x10] sm:$0xf]
      %v1482 = vld [vmem:[%s4 + $0x18] sm:$0xf]
      %v1483 = vpack.c.bf16 %v1478, %v1477
      %v1484 = vld [vmem:[%s6 + $0x3] sm:$0x1]
      %v1485 = vperm.slane %v1484, 0
      %v1490 = vunpack.c.l.b16 %v1479
      %v1491 = vunpack.c.l.b16 %v1480
      %v1492 = vunpack.c.l.b16 %v1481
      %v1493 = vunpack.c.l.b16 %v1482
      %v1494 = vpack.c.b16 %v1491, %v1490
      %v1495 = vpack.c.b16 %v1493, %v1492
      %v1499 = vsel %vm331, %v1483, 0
      %1501 = vmatpush.bf16.msra.mxu0 0
      %1502 = vmatpush.bf16.msra.mxu0 0
      %1503 = vmatpush.bf16.msra.mxu0 0
      %1504 = vmatpush.bf16.msra.mxu0 0
      %1505 = vmatpush.bf16.msra.mxu0 0
      %1506 = vmatpush.bf16.msra.mxu0 0
      %1507 = vmatpush.bf16.msra.mxu0 %v1495
      %1508 = vmatpush.bf16.msra.mxu0 %v1494
      %1509 = vmatmul.bf16.gmra.mxu0 %v1499
      %v1510 = vpop.f32.mrf.mxu0
      %v1511 = vadd.f32 %v1485, %v1510
      %v1512 = vpop.f32.mrf.mxu0
      %v1513 = vadd.f32 %v1485, %v1512
      %1514 = vdwg.mxu0
      %v1515 = vpack.c.bf16 %v1513, %v1511
      %1517 = vrot.lane.b32.xlu0 %v1515, 96
      %v1518 = vpop.permute.xlu0 %1517
      %v1520 = vsel %vm508, %v1515, 0
      %v1523 = vsel %vm508, %v1518, 0
      %1525 = vmatpush.bf16.xpose.msra.mxu0 0
      %1526 = vmatpush.bf16.xpose.msra.mxu0 0
      %1527 = vmatpush.bf16.xpose.msra.mxu0 0
      %1528 = vmatpush.bf16.xpose.msra.mxu0 0
      %1529 = vmatpush.bf16.xpose.msra.mxu0 0
      %1530 = vmatpush.bf16.xpose.msra.mxu0 0
      %1531 = vmatpush.bf16.xpose.msra.mxu0 0
      %1532 = vmatpush.bf16.xpose.msra.mxu0 %v1523
      %1533 = vmatmul.bf16.gmra.mxu0 %v1520
      %v1534 = vpop.f32.mrf.mxu0
      %v1535 = vadd.f32 0.0, %v1534
      %v1536 = vpop.f32.mrf.mxu0
      %v1537 = vadd.f32 0.0, %v1536
      %1538 = vdwg.mxu0
      %vm1539 = vcmask 130048
      %v1540 = vsel %vm1539, %v1535, -inf
      %1541 = vmax.xlane.f32.xlu0 %v1540
      %v1542 = vpop.xlane.xlu0 %1541
      %v1543 = vsel %vm1539, %v1537, -inf
      %1544 = vmax.xlane.f32.xlu0 %v1543
      %v1545 = vpop.xlane.xlu0 %1544
      %v1546 = vsub.f32 %v1535, %v1542
      %v1547 = vsub.f32 %v1537, %v1545
      %v1548 = vmul.f32 %v1546, 1.442695
      %v1549 = vpow.pop %v1548
      %v1550 = vmul.f32 %v1547, 1.442695
      %v1551 = vpow.pop %v1550
      %v1552 = vsel %vm1539, %v1549, 0.0
      %1553 = vadd.xlane.f32.xlu0 %v1552
      %v1554 = vpop.xlane.xlu0 %1553
      %v1555 = vsel %vm1539, %v1551, 0.0
      %1556 = vadd.xlane.f32.xlu0 %v1555
      %v1557 = vpop.xlane.xlu0 %1556
      %v1558 = vrcp.pop %v1554
      %v1559 = vmul.f32 %v1554, %v1558
      %v1560 = vsub.f32 1.0, %v1559
      %v1561 = vmul.f32 %v1558, %v1560
      %v1562 = vadd.f32 %v1558, %v1561
      %vm1563 = vweird.f32 %v1554
      %vm1564 = vweird.f32 %v1558
      %vm1565 = vmor %vm1563, %vm1564
      %v1566 = vsel %vm1565, %v1558, %v1562
      %v1567 = vand.u32 2147483647, %v1554
      %vm1568 = vcmp.eq.f32.partialorder %v1567, 8.507059e+37
      %v1569 = vand.u32 %v1554, 2147483648
      %v1570 = vor.u32 1.1754944e-38, %v1569
      %v1571 = vsel %vm1568, %v1570, %v1566
      %v1572 = vmul.f32 %v1549, %v1571
      %v1573 = vrcp.pop %v1557
      %v1574 = vmul.f32 %v1557, %v1573
      %v1575 = vsub.f32 1.0, %v1574
      %v1576 = vmul.f32 %v1573, %v1575
      %v1577 = vadd.f32 %v1573, %v1576
      %vm1578 = vweird.f32 %v1557
      %vm1579 = vweird.f32 %v1573
      %vm1580 = vmor %vm1578, %vm1579
      %v1581 = vsel %vm1580, %v1573, %v1577
      %v1582 = vand.u32 2147483647, %v1557
      %vm1583 = vcmp.eq.f32.partialorder %v1582, 8.507059e+37
      %v1584 = vand.u32 %v1557, 2147483648
      %v1585 = vor.u32 1.1754944e-38, %v1584
      %v1586 = vsel %vm1583, %v1585, %v1581
      %v1587 = vmul.f32 %v1551, %v1586
      %v1588 = vpack.c.bf16 %v1587, %v1572
      %1589 = vrot.lane.b32.xlu0 %v1515, 64
      %v1590 = vpop.permute.xlu0 %1589
      %v1593 = vsel %vm1539, %v1588, 0
      %1595 = vmatpush.bf16.msra.mxu0 0
      %1596 = vmatpush.bf16.msra.mxu0 0
      %1597 = vmatpush.bf16.msra.mxu0 0
      %1598 = vmatpush.bf16.msra.mxu0 0
      %1599 = vmatpush.bf16.msra.mxu0 0
      %1600 = vmatpush.bf16.msra.mxu0 0
      %1601 = vmatpush.bf16.msra.mxu0 0
      %1602 = vmatpush.bf16.msra.mxu0 %v1590
      %1603 = vmatmul.bf16.gmra.mxu0 %v1593
      %v1604 = vpop.f32.mrf.mxu0
      %v1605 = vadd.f32 0.0, %v1604
      %v1606 = vpop.f32.mrf.mxu0
      %v1607 = vadd.f32 0.0, %v1606
      %1608 = vdwg.mxu0
      %v1609 = vld [vmem:[%s4] sm:$0xf]
      %v1610 = vpack.c.bf16 %v1607, %v1605
      %1611 = vrot.lane.b32.xlu0 %v1515, 120
      %v1612 = vpop.permute.xlu0 %1611
      %1613 = vrot.lane.b32.xlu0 %v1515, 88
      %v1614 = vpop.permute.xlu0 %1613
      %v1616 = vsel %vm508, %v1612, 0
      %v1619 = vsel %vm508, %v1614, 0
      %1621 = vmatpush.bf16.xpose.msra.mxu0 0
      %1622 = vmatpush.bf16.xpose.msra.mxu0 0
      %1623 = vmatpush.bf16.xpose.msra.mxu0 0
      %1624 = vmatpush.bf16.xpose.msra.mxu0 0
      %1625 = vmatpush.bf16.xpose.msra.mxu0 0
      %1626 = vmatpush.bf16.xpose.msra.mxu0 0
      %1627 = vmatpush.bf16.xpose.msra.mxu0 0
      %1628 = vmatpush.bf16.xpose.msra.mxu0 %v1619
      %1629 = vmatmul.bf16.gmra.mxu0 %v1616
      %v1630 = vpop.f32.mrf.mxu0
      %v1631 = vadd.f32 0.0, %v1630
      %v1632 = vpop.f32.mrf.mxu0
      %v1633 = vadd.f32 0.0, %v1632
      %1634 = vdwg.mxu0
      %v1635 = vsel %vm1539, %v1631, -inf
      %1636 = vmax.xlane.f32.xlu0 %v1635
      %v1637 = vpop.xlane.xlu0 %1636
      %v1638 = vsel %vm1539, %v1633, -inf
      %1639 = vmax.xlane.f32.xlu0 %v1638
      %v1640 = vpop.xlane.xlu0 %1639
      %v1641 = vsub.f32 %v1631, %v1637
      %v1642 = vsub.f32 %v1633, %v1640
      %v1643 = vmul.f32 %v1641, 1.442695
      %v1644 = vpow.pop %v1643
      %v1645 = vmul.f32 %v1642, 1.442695
      %v1646 = vpow.pop %v1645
      %v1647 = vsel %vm1539, %v1644, 0.0
      %1648 = vadd.xlane.f32.xlu0 %v1647
      %v1649 = vpop.xlane.xlu0 %1648
      %v1650 = vsel %vm1539, %v1646, 0.0
      %1651 = vadd.xlane.f32.xlu0 %v1650
      %v1652 = vpop.xlane.xlu0 %1651
      %v1653 = vrcp.pop %v1649
      %v1654 = vmul.f32 %v1649, %v1653
      %v1655 = vsub.f32 1.0, %v1654
      %v1656 = vmul.f32 %v1653, %v1655
      %v1657 = vadd.f32 %v1653, %v1656
      %vm1658 = vweird.f32 %v1649
      %vm1659 = vweird.f32 %v1653
      %vm1660 = vmor %vm1658, %vm1659
      %v1661 = vsel %vm1660, %v1653, %v1657
      %v1662 = vand.u32 2147483647, %v1649
      %vm1663 = vcmp.eq.f32.partialorder %v1662, 8.507059e+37
      %v1664 = vand.u32 %v1649, 2147483648
      %v1665 = vor.u32 1.1754944e-38, %v1664
      %v1666 = vsel %vm1663, %v1665, %v1661
      %v1667 = vmul.f32 %v1644, %v1666
      %v1668 = vrcp.pop %v1652
      %v1669 = vmul.f32 %v1652, %v1668
      %v1670 = vsub.f32 1.0, %v1669
      %v1671 = vmul.f32 %v1668, %v1670
      %v1672 = vadd.f32 %v1668, %v1671
      %vm1673 = vweird.f32 %v1652
      %vm1674 = vweird.f32 %v1668
      %vm1675 = vmor %vm1673, %vm1674
      %v1676 = vsel %vm1675, %v1668, %v1672
      %v1677 = vand.u32 2147483647, %v1652
      %vm1678 = vcmp.eq.f32.partialorder %v1677, 8.507059e+37
      %v1679 = vand.u32 %v1652, 2147483648
      %v1680 = vor.u32 1.1754944e-38, %v1679
      %v1681 = vsel %vm1678, %v1680, %v1676
      %v1682 = vmul.f32 %v1646, %v1681
      %v1683 = vpack.c.bf16 %v1682, %v1667
      %1684 = vrot.lane.b32.xlu0 %v1515, 56
      %v1685 = vpop.permute.xlu0 %1684
      %v1688 = vsel %vm1539, %v1683, 0
      %1690 = vmatpush.bf16.msra.mxu0 0
      %1691 = vmatpush.bf16.msra.mxu0 0
      %1692 = vmatpush.bf16.msra.mxu0 0
      %1693 = vmatpush.bf16.msra.mxu0 0
      %1694 = vmatpush.bf16.msra.mxu0 0
      %1695 = vmatpush.bf16.msra.mxu0 0
      %1696 = vmatpush.bf16.msra.mxu0 0
      %1697 = vmatpush.bf16.msra.mxu0 %v1685
      %1698 = vmatmul.bf16.gmra.mxu0 %v1688
      %v1699 = vpop.f32.mrf.mxu0
      %v1700 = vadd.f32 0.0, %v1699
      %v1701 = vpop.f32.mrf.mxu0
      %v1702 = vadd.f32 0.0, %v1701
      %1703 = vdwg.mxu0
      %v1704 = vld [vmem:[%s4 + $0x8] sm:$0xf]
      %v1705 = vpack.c.bf16 %v1702, %v1700
      %v1707 = vunpack.c.l.b16 %v1704
      %v1708 = vpack.c.b16 %v1707, %v1707
      %1709 = vrot.lane.b32.xlu0 %v1708, 32
      %v1710 = vpop.permute.xlu0 %1709
      %v1712 = vsel %vm508, %v1705, 0
      %v1715 = vsel %vm709, %v1710, 0
      %1717 = vmatpush.bf16.msra.mxu0 0
      %1718 = vmatpush.bf16.msra.mxu0 0
      %1719 = vmatpush.bf16.msra.mxu0 0
      %1720 = vmatpush.bf16.msra.mxu0 0
      %1721 = vmatpush.bf16.msra.mxu0 0
      %1722 = vmatpush.bf16.msra.mxu0 0
      %1723 = vmatpush.bf16.msra.mxu0 0
      %1724 = vmatpush.bf16.msra.mxu0 %v1715
      %1725 = vmatmul.bf16.gmra.mxu0 %v1712
      %v1726 = vpop.f32.mrf.mxu0
      %v1727 = vadd.f32 0.0, %v1726
      %v1728 = vpop.f32.mrf.mxu0
      %v1729 = vadd.f32 0.0, %v1728
      %1730 = vdwg.mxu0
      %v1732 = vunpack.c.l.b16 %v1609
      %v1733 = vpack.c.b16 %v1732, %v1732
      %1734 = vrot.lane.b32.xlu0 %v1733, 32
      %v1735 = vpop.permute.xlu0 %1734
      %v1737 = vsel %vm508, %v1610, 0
      %v1740 = vsel %vm709, %v1735, 0
      %1742 = vmatpush.bf16.msra.mxu0 0
      %1743 = vmatpush.bf16.msra.mxu0 0
      %1744 = vmatpush.bf16.msra.mxu0 0
      %1745 = vmatpush.bf16.msra.mxu0 0
      %1746 = vmatpush.bf16.msra.mxu0 0
      %1747 = vmatpush.bf16.msra.mxu0 0
      %1748 = vmatpush.bf16.msra.mxu0 0
      %1749 = vmatpush.bf16.msra.mxu0 %v1740
      %1750 = vmatmul.bf16.gmra.mxu0 %v1737
      %v1751 = vpop.f32.mrf.mxu0
      %v1752 = vadd.f32 %v1727, %v1751
      %v1753 = vpop.f32.mrf.mxu0
      %v1754 = vadd.f32 %v1729, %v1753
      %1755 = vdwg.mxu0
      %1756 = vrot.lane.b32.xlu0 %v1515, 112
      %v1757 = vpop.permute.xlu0 %1756
      %1758 = vrot.lane.b32.xlu0 %v1515, 80
      %v1759 = vpop.permute.xlu0 %1758
      %v1761 = vsel %vm508, %v1757, 0
      %v1764 = vsel %vm508, %v1759, 0
      %1766 = vmatpush.bf16.xpose.msra.mxu0 0
      %1767 = vmatpush.bf16.xpose.msra.mxu0 0
      %1768 = vmatpush.bf16.xpose.msra.mxu0 0
      %1769 = vmatpush.bf16.xpose.msra.mxu0 0
      %1770 = vmatpush.bf16.xpose.msra.mxu0 0
      %1771 = vmatpush.bf16.xpose.msra.mxu0 0
      %1772 = vmatpush.bf16.xpose.msra.mxu0 0
      %1773 = vmatpush.bf16.xpose.msra.mxu0 %v1764
      %1774 = vmatmul.bf16.gmra.mxu0 %v1761
      %v1775 = vpop.f32.mrf.mxu0
      %v1776 = vadd.f32 0.0, %v1775
      %v1777 = vpop.f32.mrf.mxu0
      %v1778 = vadd.f32 0.0, %v1777
      %1779 = vdwg.mxu0
      %v1780 = vsel %vm1539, %v1776, -inf
      %1781 = vmax.xlane.f32.xlu0 %v1780
      %v1782 = vpop.xlane.xlu0 %1781
      %v1783 = vsel %vm1539, %v1778, -inf
      %1784 = vmax.xlane.f32.xlu0 %v1783
      %v1785 = vpop.xlane.xlu0 %1784
      %v1786 = vsub.f32 %v1776, %v1782
      %v1787 = vsub.f32 %v1778, %v1785
      %v1788 = vmul.f32 %v1786, 1.442695
      %v1789 = vpow.pop %v1788
      %v1790 = vmul.f32 %v1787, 1.442695
      %v1791 = vpow.pop %v1790
      %v1792 = vsel %vm1539, %v1789, 0.0
      %1793 = vadd.xlane.f32.xlu0 %v1792
      %v1794 = vpop.xlane.xlu0 %1793
      %v1795 = vsel %vm1539, %v1791, 0.0
      %1796 = vadd.xlane.f32.xlu0 %v1795
      %v1797 = vpop.xlane.xlu0 %1796
      %v1798 = vrcp.pop %v1794
      %v1799 = vmul.f32 %v1794, %v1798
      %v1800 = vsub.f32 1.0, %v1799
      %v1801 = vmul.f32 %v1798, %v1800
      %v1802 = vadd.f32 %v1798, %v1801
      %vm1803 = vweird.f32 %v1794
      %vm1804 = vweird.f32 %v1798
      %vm1805 = vmor %vm1803, %vm1804
      %v1806 = vsel %vm1805, %v1798, %v1802
      %v1807 = vand.u32 2147483647, %v1794
      %vm1808 = vcmp.eq.f32.partialorder %v1807, 8.507059e+37
      %v1809 = vand.u32 %v1794, 2147483648
      %v1810 = vor.u32 1.1754944e-38, %v1809
      %v1811 = vsel %vm1808, %v1810, %v1806
      %v1812 = vmul.f32 %v1789, %v1811
      %v1813 = vrcp.pop %v1797
      %v1814 = vmul.f32 %v1797, %v1813
      %v1815 = vsub.f32 1.0, %v1814
      %v1816 = vmul.f32 %v1813, %v1815
      %v1817 = vadd.f32 %v1813, %v1816
      %vm1818 = vweird.f32 %v1797
      %vm1819 = vweird.f32 %v1813
      %vm1820 = vmor %vm1818, %vm1819
      %v1821 = vsel %vm1820, %v1813, %v1817
      %v1822 = vand.u32 2147483647, %v1797
      %vm1823 = vcmp.eq.f32.partialorder %v1822, 8.507059e+37
      %v1824 = vand.u32 %v1797, 2147483648
      %v1825 = vor.u32 1.1754944e-38, %v1824
      %v1826 = vsel %vm1823, %v1825, %v1821
      %v1827 = vmul.f32 %v1791, %v1826
      %v1828 = vpack.c.bf16 %v1827, %v1812
      %1829 = vrot.lane.b32.xlu0 %v1515, 48
      %v1830 = vpop.permute.xlu0 %1829
      %v1833 = vsel %vm1539, %v1828, 0
      %1835 = vmatpush.bf16.msra.mxu0 0
      %1836 = vmatpush.bf16.msra.mxu0 0
      %1837 = vmatpush.bf16.msra.mxu0 0
      %1838 = vmatpush.bf16.msra.mxu0 0
      %1839 = vmatpush.bf16.msra.mxu0 0
      %1840 = vmatpush.bf16.msra.mxu0 0
      %1841 = vmatpush.bf16.msra.mxu0 0
      %1842 = vmatpush.bf16.msra.mxu0 %v1830
      %1843 = vmatmul.bf16.gmra.mxu0 %v1833
      %v1844 = vpop.f32.mrf.mxu0
      %v1845 = vadd.f32 0.0, %v1844
      %v1846 = vpop.f32.mrf.mxu0
      %v1847 = vadd.f32 0.0, %v1846
      %1848 = vdwg.mxu0
      %v1849 = vld [vmem:[%s4 + $0x10] sm:$0xf]
      %v1850 = vpack.c.bf16 %v1847, %v1845
      %v1852 = vunpack.c.l.b16 %v1849
      %v1853 = vpack.c.b16 %v1852, %v1852
      %1854 = vrot.lane.b32.xlu0 %v1853, 32
      %v1855 = vpop.permute.xlu0 %1854
      %v1857 = vsel %vm508, %v1850, 0
      %v1860 = vsel %vm709, %v1855, 0
      %1862 = vmatpush.bf16.msra.mxu0 0
      %1863 = vmatpush.bf16.msra.mxu0 0
      %1864 = vmatpush.bf16.msra.mxu0 0
      %1865 = vmatpush.bf16.msra.mxu0 0
      %1866 = vmatpush.bf16.msra.mxu0 0
      %1867 = vmatpush.bf16.msra.mxu0 0
      %1868 = vmatpush.bf16.msra.mxu0 0
      %1869 = vmatpush.bf16.msra.mxu0 %v1860
      %1870 = vmatmul.bf16.gmra.mxu0 %v1857
      %v1871 = vpop.f32.mrf.mxu0
      %v1872 = vadd.f32 0.0, %v1871
      %v1873 = vpop.f32.mrf.mxu0
      %v1874 = vadd.f32 0.0, %v1873
      %1875 = vdwg.mxu0
      %v1876 = vadd.f32 %v1752, %v1872
      %v1877 = vadd.f32 %v1754, %v1874
      %1878 = vrot.lane.b32.xlu0 %v1515, 104
      %v1879 = vpop.permute.xlu0 %1878
      %1880 = vrot.lane.b32.xlu0 %v1515, 72
      %v1881 = vpop.permute.xlu0 %1880
      %v1883 = vsel %vm508, %v1879, 0
      %v1886 = vsel %vm508, %v1881, 0
      %1888 = vmatpush.bf16.xpose.msra.mxu0 0
      %1889 = vmatpush.bf16.xpose.msra.mxu0 0
      %1890 = vmatpush.bf16.xpose.msra.mxu0 0
      %1891 = vmatpush.bf16.xpose.msra.mxu0 0
      %1892 = vmatpush.bf16.xpose.msra.mxu0 0
      %1893 = vmatpush.bf16.xpose.msra.mxu0 0
      %1894 = vmatpush.bf16.xpose.msra.mxu0 0
      %1895 = vmatpush.bf16.xpose.msra.mxu0 %v1886
      %1896 = vmatmul.bf16.gmra.mxu0 %v1883
      %v1897 = vpop.f32.mrf.mxu0
      %v1898 = vadd.f32 0.0, %v1897
      %v1899 = vpop.f32.mrf.mxu0
      %v1900 = vadd.f32 0.0, %v1899
      %1901 = vdwg.mxu0
      %v1902 = vsel %vm1539, %v1898, -inf
      %1903 = vmax.xlane.f32.xlu0 %v1902
      %v1904 = vpop.xlane.xlu0 %1903
      %v1905 = vsel %vm1539, %v1900, -inf
      %1906 = vmax.xlane.f32.xlu0 %v1905
      %v1907 = vpop.xlane.xlu0 %1906
      %v1908 = vsub.f32 %v1898, %v1904
      %v1909 = vsub.f32 %v1900, %v1907
      %v1910 = vmul.f32 %v1908, 1.442695
      %v1911 = vpow.pop %v1910
      %v1912 = vmul.f32 %v1909, 1.442695
      %v1913 = vpow.pop %v1912
      %v1914 = vsel %vm1539, %v1911, 0.0
      %1915 = vadd.xlane.f32.xlu0 %v1914
      %v1916 = vpop.xlane.xlu0 %1915
      %v1917 = vsel %vm1539, %v1913, 0.0
      %1918 = vadd.xlane.f32.xlu0 %v1917
      %v1919 = vpop.xlane.xlu0 %1918
      %v1920 = vrcp.pop %v1916
      %v1921 = vmul.f32 %v1916, %v1920
      %v1922 = vsub.f32 1.0, %v1921
      %v1923 = vmul.f32 %v1920, %v1922
      %v1924 = vadd.f32 %v1920, %v1923
      %vm1925 = vweird.f32 %v1916
      %vm1926 = vweird.f32 %v1920
      %vm1927 = vmor %vm1925, %vm1926
      %v1928 = vsel %vm1927, %v1920, %v1924
      %v1929 = vand.u32 2147483647, %v1916
      %vm1930 = vcmp.eq.f32.partialorder %v1929, 8.507059e+37
      %v1931 = vand.u32 %v1916, 2147483648
      %v1932 = vor.u32 1.1754944e-38, %v1931
      %v1933 = vsel %vm1930, %v1932, %v1928
      %v1934 = vmul.f32 %v1911, %v1933
      %v1935 = vrcp.pop %v1919
      %v1936 = vmul.f32 %v1919, %v1935
      %v1937 = vsub.f32 1.0, %v1936
      %v1938 = vmul.f32 %v1935, %v1937
      %v1939 = vadd.f32 %v1935, %v1938
      %vm1940 = vweird.f32 %v1919
      %vm1941 = vweird.f32 %v1935
      %vm1942 = vmor %vm1940, %vm1941
      %v1943 = vsel %vm1942, %v1935, %v1939
      %v1944 = vand.u32 2147483647, %v1919
      %vm1945 = vcmp.eq.f32.partialorder %v1944, 8.507059e+37
      %v1946 = vand.u32 %v1919, 2147483648
      %v1947 = vor.u32 1.1754944e-38, %v1946
      %v1948 = vsel %vm1945, %v1947, %v1943
      %v1949 = vmul.f32 %v1913, %v1948
      %v1950 = vpack.c.bf16 %v1949, %v1934
      %1951 = vrot.lane.b32.xlu0 %v1515, 40
      %v1952 = vpop.permute.xlu0 %1951
      %v1955 = vsel %vm1539, %v1950, 0
      %1957 = vmatpush.bf16.msra.mxu0 0
      %1958 = vmatpush.bf16.msra.mxu0 0
      %1959 = vmatpush.bf16.msra.mxu0 0
      %1960 = vmatpush.bf16.msra.mxu0 0
      %1961 = vmatpush.bf16.msra.mxu0 0
      %1962 = vmatpush.bf16.msra.mxu0 0
      %1963 = vmatpush.bf16.msra.mxu0 0
      %1964 = vmatpush.bf16.msra.mxu0 %v1952
      %1965 = vmatmul.bf16.gmra.mxu0 %v1955
      %v1966 = vpop.f32.mrf.mxu0
      %v1967 = vadd.f32 0.0, %v1966
      %v1968 = vpop.f32.mrf.mxu0
      %v1969 = vadd.f32 0.0, %v1968
      %1970 = vdwg.mxu0
      %v1971 = vpack.c.bf16 %v1969, %v1967
      %v1972 = vpack.c.b16 %v1493, %v1493
      %1973 = vrot.lane.b32.xlu0 %v1972, 32
      %v1974 = vpop.permute.xlu0 %1973
      %v1976 = vsel %vm508, %v1971, 0
      %v1979 = vsel %vm709, %v1974, 0
      %1981 = vmatpush.bf16.msra.mxu0 0
      %1982 = vmatpush.bf16.msra.mxu0 0
      %1983 = vmatpush.bf16.msra.mxu0 0
      %1984 = vmatpush.bf16.msra.mxu0 0
      %1985 = vmatpush.bf16.msra.mxu0 0
      %1986 = vmatpush.bf16.msra.mxu0 0
      %1987 = vmatpush.bf16.msra.mxu0 0
      %1988 = vmatpush.bf16.msra.mxu0 %v1979
      %1989 = vmatmul.bf16.gmra.mxu0 %v1976
      %v1990 = vpop.f32.mrf.mxu0
      %v1991 = vadd.f32 0.0, %v1990
      %v1992 = vpop.f32.mrf.mxu0
      %v1993 = vadd.f32 0.0, %v1992
      %1994 = vdwg.mxu0
      %v1995 = vadd.f32 %v1876, %v1991
      %v1996 = vadd.f32 %v1877, %v1993
      %v1997 = vld [vmem:[%s6 + $0x4] sm:$0x1]
      %v1998 = vperm.slane %v1997, 0
      %v1999 = vadd.f32 %v1995, %v1998
      %v2000 = vadd.f32 %v1996, %v1998
      %v2001 = vadd.f32 %v1477, %v1999
      %v2002 = vadd.f32 %v1478, %v2000
      %v2003 = vld [vmem:[%s6 + $0x7] sm:$0x1]
      %v2004 = vld [vmem:[%s6 + $0x8] sm:$0x1]
      %v2005 = vsel %vm331, %v2001, 0.0
      %2006 = vadd.xlane.f32.xlu0 %v2005
      %v2007 = vpop.xlane.xlu0 %2006
      %v2008 = vsel %vm331, %v2002, 0.0
      %2009 = vadd.xlane.f32.xlu0 %v2008
      %v2010 = vpop.xlane.xlu0 %2009
      %v2011 = vmul.f32 %v2007, %v423
      %v2012 = vmul.f32 %v2010, %v423
      %v2013 = vsub.f32 %v2001, %v2011
      %v2014 = vsub.f32 %v2002, %v2012
      %v2015 = vmul.f32 %v2013, %v2013
      %v2016 = vmul.f32 %v2014, %v2014
      %v2017 = vsel %vm331, %v2015, 0.0
      %2018 = vadd.xlane.f32.xlu0 %v2017
      %v2019 = vpop.xlane.xlu0 %2018
      %v2020 = vsel %vm331, %v2016, 0.0
      %2021 = vadd.xlane.f32.xlu0 %v2020
      %v2022 = vpop.xlane.xlu0 %2021
      %v2023 = vmul.f32 %v2019, %v423
      %v2024 = vmul.f32 %v2022, %v423
      %v2025 = vadd.f32 %v2023, 1e-05
      %v2026 = vadd.f32 %v2024, 1e-05
      %v2027 = vrsqrt.pop %v2025
      %v2028 = vmul.f32 %v2027, %v2025
      %v2029 = vmul.f32 %v2028, %v2027
      %v2030 = vmul.f32 0.5, %v2029
      %v2031 = vsub.f32 1.5, %v2030
      %v2032 = vmul.f32 %v2027, %v2031
      %vm2033 = vweird.f32 %v2025
      %vm2034 = vweird.f32 %v2027
      %vm2035 = vmor %vm2033, %vm2034
      %v2036 = vsel %vm2035, %v2027, %v2032
      %v2037 = vrsqrt.pop %v2026
      %v2038 = vmul.f32 %v2037, %v2026
      %v2039 = vmul.f32 %v2038, %v2037
      %v2040 = vmul.f32 0.5, %v2039
      %v2041 = vsub.f32 1.5, %v2040
      %v2042 = vmul.f32 %v2037, %v2041
      %vm2043 = vweird.f32 %v2026
      %vm2044 = vweird.f32 %v2037
      %vm2045 = vmor %vm2043, %vm2044
      %v2046 = vsel %vm2045, %v2037, %v2042
      %v2047 = vmul.f32 %v2013, %v2036
      %v2048 = vmul.f32 %v2014, %v2046
      %v2049 = vperm.slane %v2003, 0
      %v2050 = vmul.f32 %v2047, %v2049
      %v2051 = vmul.f32 %v2048, %v2049
      %v2052 = vperm.slane %v2004, 0
      %v2053 = vadd.f32 %v2050, %v2052
      %v2054 = vadd.f32 %v2051, %v2052
      %v2055 = vld [vmem:[%s4 + $0x4] sm:$0xf]
      %v2056 = vld [vmem:[%s4 + $0xc] sm:$0xf]
      %v2057 = vld [vmem:[%s4 + $0x14] sm:$0xf]
      %v2058 = vld [vmem:[%s4 + $0x1c] sm:$0xf]
      %v2059 = vpack.c.bf16 %v2054, %v2053
      %v2060 = vld [vmem:[%s6 + $0x5] sm:$0x1]
      %v2061 = vperm.slane %v2060, 0
      %v2066 = vunpack.c.l.b16 %v2055
      %v2067 = vunpack.c.l.b16 %v2056
      %v2068 = vunpack.c.l.b16 %v2057
      %v2069 = vunpack.c.l.b16 %v2058
      %v2070 = vpack.c.b16 %v2067, %v2066
      %v2071 = vpack.c.b16 %v2069, %v2068
      %v2075 = vsel %vm331, %v2059, 0
      %2077 = vmatpush.bf16.msra.mxu0 0
      %2078 = vmatpush.bf16.msra.mxu0 0
      %2079 = vmatpush.bf16.msra.mxu0 0
      %2080 = vmatpush.bf16.msra.mxu0 0
      %2081 = vmatpush.bf16.msra.mxu0 0
      %2082 = vmatpush.bf16.msra.mxu0 0
      %2083 = vmatpush.bf16.msra.mxu0 %v2071
      %2084 = vmatpush.bf16.msra.mxu0 %v2070
      %2085 = vmatmul.bf16.gmra.mxu0 %v2075
      %v2086 = vpop.f32.mrf.mxu0
      %v2087 = vadd.f32 %v2061, %v2086
      %v2088 = vpop.f32.mrf.mxu0
      %v2089 = vadd.f32 %v2061, %v2088
      %2090 = vdwg.mxu0
      %v2091 = vmax.f32 %v2087, 0.0
      %v2092 = vmax.f32 %v2089, 0.0
      %v2093 = vld [vmem:[%s5 + $0x10] sm:$0xf]
      %v2094 = vld [vmem:[%s5 + $0x14] sm:$0xf]
      %v2095 = vld [vmem:[%s5 + $0x18] sm:$0xf]
      %v2096 = vld [vmem:[%s5 + $0x1c] sm:$0xf]
      %v2097 = vld [vmem:[%s5 + $0x20] sm:$0xf]
      %v2098 = vld [vmem:[%s5 + $0x24] sm:$0xf]
      %v2099 = vld [vmem:[%s5 + $0x28] sm:$0xf]
      %v2100 = vld [vmem:[%s5 + $0x2c] sm:$0xf]
      %v2101 = vld [vmem:[%s5 + $0x30] sm:$0xf]
      %v2102 = vld [vmem:[%s5 + $0x34] sm:$0xf]
      %v2103 = vld [vmem:[%s5 + $0x38] sm:$0xf]
      %v2104 = vld [vmem:[%s5 + $0x3c] sm:$0xf]
      %v2105 = vld [vmem:[%s5 + $0x40] sm:$0xf]
      %v2106 = vld [vmem:[%s5 + $0x44] sm:$0xf]
      %v2107 = vld [vmem:[%s5 + $0x48] sm:$0xf]
      %v2108 = vld [vmem:[%s5 + $0x4c] sm:$0xf]
      %v2109 = vpack.c.bf16 %v2092, %v2091
      %v2110 = vld [vmem:[%s6 + $0x6] sm:$0x1]
      %v2111 = vperm.slane %v2110, 0
      %v2128 = vunpack.c.l.b16 %v2093
      %v2129 = vunpack.c.l.b16 %v2094
      %v2130 = vunpack.c.l.b16 %v2095
      %v2131 = vunpack.c.l.b16 %v2096
      %v2132 = vunpack.c.l.b16 %v2097
      %v2133 = vunpack.c.l.b16 %v2098
      %v2134 = vunpack.c.l.b16 %v2099
      %v2135 = vunpack.c.l.b16 %v2100
      %v2136 = vunpack.c.l.b16 %v2101
      %v2137 = vunpack.c.l.b16 %v2102
      %v2138 = vunpack.c.l.b16 %v2103
      %v2139 = vunpack.c.l.b16 %v2104
      %v2140 = vunpack.c.l.b16 %v2105
      %v2141 = vunpack.c.l.b16 %v2106
      %v2142 = vunpack.c.l.b16 %v2107
      %v2143 = vunpack.c.l.b16 %v2108
      %v2144 = vpack.c.b16 %v2129, %v2128
      %v2145 = vpack.c.b16 %v2131, %v2130
      %v2146 = vpack.c.b16 %v2133, %v2132
      %v2147 = vpack.c.b16 %v2135, %v2134
      %v2148 = vpack.c.b16 %v2137, %v2136
      %v2149 = vpack.c.b16 %v2139, %v2138
      %v2150 = vpack.c.b16 %v2141, %v2140
      %v2151 = vpack.c.b16 %v2143, %v2142
      %2160 = vmatpush.bf16.msra.mxu0 %v2151
      %2161 = vmatpush.bf16.msra.mxu0 %v2150
      %2162 = vmatpush.bf16.msra.mxu0 %v2149
      %2163 = vmatpush.bf16.msra.mxu0 %v2148
      %2164 = vmatpush.bf16.msra.mxu0 %v2147
      %2165 = vmatpush.bf16.msra.mxu0 %v2146
      %2166 = vmatpush.bf16.msra.mxu0 %v2145
      %2167 = vmatpush.bf16.msra.mxu0 %v2144
      %2168 = vmatmul.bf16.gmra.mxu0 %v2109
      %v2169 = vpop.f32.mrf.mxu0
      %v2170 = vadd.f32 %v2111, %v2169
      %v2171 = vpop.f32.mrf.mxu0
      %v2172 = vadd.f32 %v2111, %v2171
      %2173 = vdwg.mxu0
      %v2174 = vadd.f32 %v2053, %v2170
      %v2175 = vadd.f32 %v2054, %v2172
      %v2176 = vld [vmem:[%s6 + $0x9] sm:$0x1]
      %v2177 = vld [vmem:[%s6 + $0xa] sm:$0x1]
      %v2178 = vsel %vm331, %v2174, 0.0
      %2179 = vadd.xlane.f32.xlu0 %v2178
      %v2180 = vpop.xlane.xlu0 %2179
      %v2181 = vsel %vm331, %v2175, 0.0
      %2182 = vadd.xlane.f32.xlu0 %v2181
      %v2183 = vpop.xlane.xlu0 %2182
      %v2184 = vmul.f32 %v2180, %v423
      %v2185 = vmul.f32 %v2183, %v423
      %v2186 = vsub.f32 %v2174, %v2184
      %v2187 = vsub.f32 %v2175, %v2185
      %v2188 = vmul.f32 %v2186, %v2186
      %v2189 = vmul.f32 %v2187, %v2187
      %v2190 = vsel %vm331, %v2188, 0.0
      %2191 = vadd.xlane.f32.xlu0 %v2190
      %v2192 = vpop.xlane.xlu0 %2191
      %v2193 = vsel %vm331, %v2189, 0.0
      %2194 = vadd.xlane.f32.xlu0 %v2193
      %v2195 = vpop.xlane.xlu0 %2194
      %v2196 = vmul.f32 %v2192, %v423
      %v2197 = vmul.f32 %v2195, %v423
      %v2198 = vadd.f32 %v2196, 1e-05
      %v2199 = vadd.f32 %v2197, 1e-05
      %v2200 = vrsqrt.pop %v2198
      %v2201 = vmul.f32 %v2200, %v2198
      %v2202 = vmul.f32 %v2201, %v2200
      %v2203 = vmul.f32 0.5, %v2202
      %v2204 = vsub.f32 1.5, %v2203
      %v2205 = vmul.f32 %v2200, %v2204
      %vm2206 = vweird.f32 %v2198
      %vm2207 = vweird.f32 %v2200
      %vm2208 = vmor %vm2206, %vm2207
      %v2209 = vsel %vm2208, %v2200, %v2205
      %v2210 = vrsqrt.pop %v2199
      %v2211 = vmul.f32 %v2210, %v2199
      %v2212 = vmul.f32 %v2211, %v2210
      %v2213 = vmul.f32 0.5, %v2212
      %v2214 = vsub.f32 1.5, %v2213
      %v2215 = vmul.f32 %v2210, %v2214
      %vm2216 = vweird.f32 %v2199
      %vm2217 = vweird.f32 %v2210
      %vm2218 = vmor %vm2216, %vm2217
      %v2219 = vsel %vm2218, %v2210, %v2215
      %v2220 = vmul.f32 %v2186, %v2209
      %v2221 = vmul.f32 %v2187, %v2219
      %v2222 = vperm.slane %v2176, 0
      %v2223 = vmul.f32 %v2220, %v2222
      %v2224 = vmul.f32 %v2221, %v2222
      %v2225 = vperm.slane %v2177, 0
      %v2226 = vadd.f32 %v2223, %v2225
      %v2227 = vadd.f32 %v2224, %v2225
      %v2228 = vld [vmem:[%s5 + $0x50] sm:$0xf]
      %v2229 = vld [vmem:[%s5 + $0x54] sm:$0xf]
      %v2230 = vld [vmem:[%s5 + $0x58] sm:$0xf]
      %v2231 = vld [vmem:[%s5 + $0x5c] sm:$0xf]
      %v2232 = vpack.c.bf16 %v2227, %v2226
      %v2233 = vld [vmem:[%s6 + $0xb] sm:$0x1]
      %v2234 = vperm.slane %v2233, 0
      %v2239 = vunpack.c.l.b16 %v2228
      %v2240 = vunpack.c.l.b16 %v2229
      %v2241 = vunpack.c.l.b16 %v2230
      %v2242 = vunpack.c.l.b16 %v2231
      %v2243 = vpack.c.b16 %v2240, %v2239
      %v2244 = vpack.c.b16 %v2242, %v2241
      %v2248 = vsel %vm331, %v2232, 0
      %2250 = vmatpush.bf16.msra.mxu0 0
      %2251 = vmatpush.bf16.msra.mxu0 0
      %2252 = vmatpush.bf16.msra.mxu0 0
      %2253 = vmatpush.bf16.msra.mxu0 0
      %2254 = vmatpush.bf16.msra.mxu0 0
      %2255 = vmatpush.bf16.msra.mxu0 0
      %2256 = vmatpush.bf16.msra.mxu0 %v2244
      %2257 = vmatpush.bf16.msra.mxu0 %v2243
      %2258 = vmatmul.bf16.gmra.mxu0 %v2248
      %v2259 = vpop.f32.mrf.mxu0
      %v2260 = vadd.f32 %v2234, %v2259
      %v2261 = vpop.f32.mrf.mxu0
      %v2262 = vadd.f32 %v2234, %v2261
      %2263 = vdwg.mxu0
      %v2264 = vmax.f32 %v2260, 0.0
      %v2265 = vmax.f32 %v2262, 0.0
      %v2266 = vld [vmem:[%s6 + $0xc] sm:$0x1]
      %v2267 = vld [vmem:[%s6 + $0xd] sm:$0x1]
      %v2268 = vsel %vm331, %v2264, 0.0
      %2269 = vadd.xlane.f32.xlu0 %v2268
      %v2270 = vpop.xlane.xlu0 %2269
      %v2271 = vsel %vm331, %v2265, 0.0
      %2272 = vadd.xlane.f32.xlu0 %v2271
      %v2273 = vpop.xlane.xlu0 %2272
      %v2274 = vmul.f32 %v2270, %v423
      %v2275 = vmul.f32 %v2273, %v423
      %v2276 = vsub.f32 %v2264, %v2274
      %v2277 = vsub.f32 %v2265, %v2275
      %v2278 = vmul.f32 %v2276, %v2276
      %v2279 = vmul.f32 %v2277, %v2277
      %v2280 = vsel %vm331, %v2278, 0.0
      %2281 = vadd.xlane.f32.xlu0 %v2280
      %v2282 = vpop.xlane.xlu0 %2281
      %v2283 = vsel %vm331, %v2279, 0.0
      %2284 = vadd.xlane.f32.xlu0 %v2283
      %v2285 = vpop.xlane.xlu0 %2284
      %v2286 = vmul.f32 %v2282, %v423
      %v2287 = vmul.f32 %v2285, %v423
      %v2288 = vadd.f32 %v2286, 1e-05
      %v2289 = vadd.f32 %v2287, 1e-05
      %v2290 = vrsqrt.pop %v2288
      %v2291 = vmul.f32 %v2290, %v2288
      %v2292 = vmul.f32 %v2291, %v2290
      %v2293 = vmul.f32 0.5, %v2292
      %v2294 = vsub.f32 1.5, %v2293
      %v2295 = vmul.f32 %v2290, %v2294
      %vm2296 = vweird.f32 %v2288
      %vm2297 = vweird.f32 %v2290
      %vm2298 = vmor %vm2296, %vm2297
      %v2299 = vsel %vm2298, %v2290, %v2295
      %v2300 = vrsqrt.pop %v2289
      %v2301 = vmul.f32 %v2300, %v2289
      %v2302 = vmul.f32 %v2301, %v2300
      %v2303 = vmul.f32 0.5, %v2302
      %v2304 = vsub.f32 1.5, %v2303
      %v2305 = vmul.f32 %v2300, %v2304
      %vm2306 = vweird.f32 %v2289
      %vm2307 = vweird.f32 %v2300
      %vm2308 = vmor %vm2306, %vm2307
      %v2309 = vsel %vm2308, %v2300, %v2305
      %v2310 = vmul.f32 %v2276, %v2299
      %v2311 = vmul.f32 %v2277, %v2309
      %v2312 = vperm.slane %v2266, 0
      %v2313 = vmul.f32 %v2310, %v2312
      %v2314 = vmul.f32 %v2311, %v2312
      %v2315 = vperm.slane %v2267, 0
      %v2316 = vadd.f32 %v2313, %v2315
      %v2317 = vadd.f32 %v2314, %v2315
      %v2318 = vadd.f32 %v1387, %v2316
      %v2319 = vadd.f32 %v1388, %v2317
      %v2320 = vld [vmem:[%s7] sm:$0xff]
      %v2321 = vld [vmem:[%s7 + $0x8] sm:$0xff]
      %v2322 = vld [vmem:[%s7 + $0x10] sm:$0xff]
      %v2323 = vld [vmem:[%s7 + $0x18] sm:$0xff]
      %v2324 = vpack.c.bf16 %v2319, %v2318
      %v2325 = vpack.c.bf16 %v2321, %v2320
      %v2326 = vpack.c.bf16 %v2323, %v2322
      %v2327 = vld [vmem:[%s7 + $0x20] sm:$0x1]
      %v2328 = vperm.slane %v2327, 0
      %v2330 = vsel %vm331, %v2324, 0
      %2332 = vmatpush.bf16.msra.mxu0 0
      %2333 = vmatpush.bf16.msra.mxu0 0
      %2334 = vmatpush.bf16.msra.mxu0 0
      %2335 = vmatpush.bf16.msra.mxu0 0
      %2336 = vmatpush.bf16.msra.mxu0 0
      %2337 = vmatpush.bf16.msra.mxu0 0
      %2338 = vmatpush.bf16.msra.mxu0 %v2326
      %2339 = vmatpush.bf16.msra.mxu0 %v2325
      %2340 = vmatmul.bf16.gmra.mxu0 %v2330
      %v2341 = vpop.f32.mrf.mxu0
      %v2342 = vadd.f32 %v2328, %v2341
      %v2343 = vpop.f32.mrf.mxu0
      %v2344 = vadd.f32 %v2328, %v2343
      %2345 = vdwg.mxu0
      %2346 = vst [vmem:[%s305] sm:$0xff] %v2342
      %2347 = vst [vmem:[%s305 + $0x8] sm:$0xff] %v2344
      %p2348 = scmp.lt.s32.totalorder %s19, 1
      %s2349 = scalar_select %p2348, %s19, 1
      %s2350 = smul.addr %s2349, 2
      %s2351 = smul.addr %s2350, 8
      %s2352 = scalar_lea.vmem %s8, %s2351
      // Predicated region
      $region53: #{transformer_decoder_forward.1} parent=51 // pred_check
        %p2353 = pneg %p210
      $region54: #{transformer_decoder_forward.1} parent=51 // pred_check_branch
        %2355 = sbr.rel (%p2353) target = $region56
      $region55: #{transformer_decoder_forward.1} parent=51 // pred_region
        _
      $region56: #{transformer_decoder_forward.1} parent=51 // pred_fallthru
        _
    $region52: #{transformer_decoder_forward.1} parent=5 // pred_fallthru
      _
    %p2356 = scmp.le.s32.totalorder 2, %s14
    // Predicated region
    $region57: #{transformer_decoder_forward.1} parent=5 // pred_check
      %p2357 = pneg %p2356
    $region58: #{transformer_decoder_forward.1} parent=5 // pred_check_branch
      %2359 = sbr.rel (%p2357) target = $region60
    $region59: #{transformer_decoder_forward.1} parent=5 // pred_region
      %s2360 = ssub.s32 %s14, 2
      // Predicated region
      $region61: #{transformer_decoder_forward.1} parent=59 // pred_check
        %p2361 = pneg %p216
      $region62: #{transformer_decoder_forward.1} parent=59 // pred_check_branch
        %2363 = sbr.rel (%p2361) target = $region64
      $region63: #{transformer_decoder_forward.1} parent=59 // pred_region
        %p2364 = scmp.lt.s32.totalorder %s20, 1
        %s2365 = scalar_select %p2364, %s20, 1
        %s2366 = smul.addr %s2365, 2
        %s2367 = smul.addr %s2366, 8
        %s2368 = scalar_lea.vmem %s8, %s2367
      $region64: #{transformer_decoder_forward.1} parent=59 // pred_fallthru
        _
    $region60: #{transformer_decoder_forward.1} parent=5 // pred_fallthru
      _
  $region6: #{transformer_decoder_forward.1} parent=0 // loop_footer
    %s18 = sadd.s32 1, %s14
  $region7: #{transformer_decoder_forward.1} parent=0 // loop_footer_branch
    %13 = sbr.rel target = $region3
  $region8: #{transformer_decoder_forward.1} parent=0 // loop_exit
    _

</llo_original>
